<compile_context>
chip_gen: v7x
topology: tpu7x:2x2x1
jax: 0.10.0
libtpu: 0.0.40
codegen_flags: <defaults>
</compile_context>

<pallas_src>
import math
from functools import partial

import jax
import jax.numpy as jnp
from jax import lax
from jax.experimental import pallas as pl
from jax.experimental.pallas import tpu as pltpu  # noqa: F401  (TPU backend)


# --------------------------------------------------------------------------
# Small-parameter pack layout (shared between init packing and the kernel)
# --------------------------------------------------------------------------

def _small_layout(num_layers, H, D, ffn, fc):
    """Returns (offsets dict name -> (offset, size), total length).

    b1 (the ffn-wide bias) is placed first so its slice starts 128-lane aligned.
    """
    sizes = [('b1', ffn)]
    for l in range(num_layers):
        sizes.append((f'lstm_b{l}', 4 * H))
    sizes += [('bqkv', 3 * D), ('bo', D),
              ('n1w', D), ('n1b', D), ('n2w', D), ('n2b', D),
              ('b2', D), ('hb1', fc), ('hw2', fc), ('hb2', 1)]
    offsets, pos = {}, 0
    for name, n in sizes:
        offsets[name] = (pos, n)
        pos += n
    return offsets, pos


# --------------------------------------------------------------------------
# Fused Pallas kernel
# --------------------------------------------------------------------------

def _fused_forward_kernel(nhead, num_layers, offsets, *refs):
    f32 = jnp.float32
    bf16 = jnp.bfloat16

    # ---- unpack refs ------------------------------------------------------
    idx = 0
    x_ref = refs[idx]; idx += 1
    lstm_refs = []
    for _ in range(num_layers):
        lstm_refs.append((refs[idx], refs[idx + 1]))   # (wih_t, whh_t)
        idx += 2
    w_attn_ref = refs[idx]; idx += 1                   # (D, 4D): [Wq|Wk|Wv|Wo]
    w_ffn_ref = refs[idx]; idx += 1                    # (2D, ffn) bf16: [w1.T ; w2]
    hw1_ref = refs[idx]; idx += 1                      # (H, fc)
    small_ref = refs[idx]; idx += 1                    # (1, P) packed small params
    out_ref = refs[idx]

    T, N, _F = x_ref.shape          # LSTM: time = dim0 (B), batch = dim1 (S)
    H = lstm_refs[0][1].shape[0]    # hidden_dim (whh_t is (H, 4H))
    D = N                           # encoder d_model (= sequence_len)

    def sv(name):                   # static slice of the packed small params
        off, n = offsets[name]
        return small_ref[:, off:off + n]               # (1, n)

    # ---- LSTM stack (gate order repacked to i, f, o, g), hoisted ih matmul
    xin = x_ref[...].astype(f32).reshape(T * N, _F)    # rows ordered (t, n)
    for l in range(num_layers):
        wih = lstm_refs[l][0][...]                     # (in_dim, 4H)
        whh = lstm_refs[l][1][...]                     # (H, 4H)
        ih = jnp.dot(xin, wih, preferred_element_type=f32) + sv(f'lstm_b{l}')
        h = jnp.zeros((N, H), f32)
        c = jnp.zeros((N, H), f32)
        outs = []
        for t in range(T):                             # static unroll (T small)
            gates = ih[t * N:(t + 1) * N, :] + jnp.dot(
                h, whh, preferred_element_type=f32)    # (N, 4H)
            sg = jax.nn.sigmoid(gates[:, :3 * H])      # i | f | o  (one EUP pass)
            i_g = sg[:, 0 * H:1 * H]
            f_g = sg[:, 1 * H:2 * H]
            o_g = sg[:, 2 * H:3 * H]
            g_g = jnp.tanh(gates[:, 3 * H:4 * H])
            c = f_g * c + i_g * g_g
            h = o_g * jnp.tanh(c)
            outs.append(h)
        xin = jnp.concatenate(outs, axis=0)            # (T*N, H), t-major rows

    # ---- x.permute(0, 2, 1): one batched transpose --------------------------
    B = T
    Nseq = H                        # encoder sequence length (= lstm hidden)
    h3 = xin.reshape(T, N, H)
    xf = jnp.transpose(h3, (0, 2, 1)).reshape(B * Nseq, D)   # (B*Nseq, D)

    hd = D // nhead
    scale = 1.0 / math.sqrt(hd)

    def ln(y, w, b):
        mu = jnp.mean(y, axis=-1, keepdims=True)
        var = jnp.mean((y - mu) ** 2, axis=-1, keepdims=True)
        return (y - mu) * lax.rsqrt(var + 1e-5) * w + b

    # ---- multi-head self-attention (fused QKV, batch folded into M) --------
    w_attn = w_attn_ref[...]
    qkv = jnp.dot(xf, w_attn[:, :3 * D], preferred_element_type=f32) + sv('bqkv')
    q3 = qkv[:, 0 * D:1 * D].reshape(B, Nseq, D)
    k3 = qkv[:, 1 * D:2 * D].reshape(B, Nseq, D)
    v3 = qkv[:, 2 * D:3 * D].reshape(B, Nseq, D)

    heads = []
    for hh in range(nhead):                            # static, tiny head count
        sl = slice(hh * hd, (hh + 1) * hd)
        sc = jnp.einsum('bqd,bkd->bqk', q3[..., sl], k3[..., sl],
                        preferred_element_type=f32) * scale
        sc = sc - jnp.max(sc, axis=-1, keepdims=True)
        p = jnp.exp(sc)
        p = p * pl.reciprocal(jnp.sum(p, axis=-1, keepdims=True), approx=True)
        heads.append(jnp.einsum('bqk,bkd->bqd', p, v3[..., sl],
                                preferred_element_type=f32))
    attn = jnp.concatenate(heads, axis=-1).reshape(B * Nseq, D)
    attn = jnp.dot(attn, w_attn[:, 3 * D:4 * D],
                   preferred_element_type=f32) + sv('bo')

    y = ln(xf + attn, sv('n1w'), sv('n1b'))            # norm1 (post-norm)

    # ---- FFN: bf16 weights (pre-cast at init), f32 accumulation -------------
    # TODO(synk): bf16 MXU operands are a small precision deviation from the f32
    # PyTorch reference (f32 accumulation kept; validated by tolerance, not bits).
    w_ffn = w_ffn_ref[...]                             # (2D, ffn) bf16
    f = jnp.dot(y.astype(bf16), w_ffn[:D, :],
                preferred_element_type=f32) + sv('b1')
    f = jnp.maximum(f, 0.0)                            # relu
    f = lax.dot_general(f.astype(bf16), w_ffn[D:, :],
                        (((1,), (1,)), ((), ())),
                        preferred_element_type=f32) + sv('b2')
    z = ln(y + f, sv('n2w'), sv('n2b'))                # norm2, (B*Nseq, D)

    # ---- AdaptiveAvgPool1d(1) + Flatten + Linear/ReLU/(Dropout=id)/Linear ---
    g = jnp.mean(z.reshape(B, Nseq, D), axis=-1)       # GAP over d_model -> (B, H)
    h1 = jnp.maximum(
        jnp.dot(g, hw1_ref[...], preferred_element_type=f32) + sv('hb1'), 0.0)
    out = jnp.sum(h1 * sv('hw2'), axis=-1, keepdims=True) + sv('hb2')
    out_ref[...] = out.astype(out_ref.dtype)           # (B, 1)


# --------------------------------------------------------------------------
# pallas_call wrapper
# --------------------------------------------------------------------------

def _full_spec(shape):
    n = len(shape)
    return pl.BlockSpec(shape, lambda *_, n=n: (0,) * n)


def transformer_encoder_lstm_2_forward(x, params, *, nhead):
    B, S, _ = x.shape
    lstm_w = params['lstm_w']                     # list of (wih_t, whh_t)
    num_layers = len(lstm_w)
    H = lstm_w[0][1].shape[0]
    D = S
    ffn = params['w_ffn'].shape[-1]
    fc = params['hw1_t'].shape[-1]
    offsets, _ = _small_layout(num_layers, H, D, ffn, fc)

    inputs = [x]
    for wih_t, whh_t in lstm_w:
        inputs += [wih_t, whh_t]
    inputs += [params['w_attn'], params['w_ffn'], params['hw1_t'], params['small']]

    return pl.pallas_call(
        partial(_fused_forward_kernel, nhead, num_layers, offsets),
        out_shape=jax.ShapeDtypeStruct((B, 1), jnp.float32),
        in_specs=[_full_spec(a.shape) for a in inputs],
        out_specs=_full_spec((B, 1)),
    )(*inputs)


# --------------------------------------------------------------------------
# Deterministic synthetic parameters (PyTorch-layout weights, repacked for TPU)
# --------------------------------------------------------------------------

def init_params(key, F, S, H, num_layers, fc_dim, ffn_dim=2048):
    keys = iter(jax.random.split(key, 64))

    def rnd(shape, scale=0.1):
        return jax.random.normal(next(keys), shape, jnp.float32) * scale

    D = S

    def reorder(w):                                  # gate blocks (i,f,g,o)->(i,f,o,g)
        i, f, g, o = jnp.split(w, 4, axis=0)
        return jnp.concatenate([i, f, o, g], axis=0)

    # LSTM stack (PyTorch weight_ih_l{k}: (4H, in), weight_hh_l{k}: (4H, H))
    lstm_w, lstm_b = [], []
    in_dim = F
    for _ in range(num_layers):
        wih = rnd((4 * H, in_dim))
        whh = rnd((4 * H, H))
        bih = rnd((4 * H,))
        bhh = rnd((4 * H,))
        lstm_w.append((reorder(wih).T, reorder(whh).T))   # (in,4H), (H,4H)
        lstm_b.append(reorder(bih + bhh))
        in_dim = H

    # TransformerEncoderLayer (d_model=S, post-norm, relu, ffn=2048)
    in_proj_w = rnd((3 * D, D)); in_proj_b = rnd((3 * D,))
    out_proj_w = rnd((D, D));    out_proj_b = rnd((D,))
    w1 = rnd((ffn_dim, D)); b1 = rnd((ffn_dim,))
    w2 = rnd((D, ffn_dim)); b2 = rnd((D,))
    w_attn = jnp.concatenate([in_proj_w.T, out_proj_w.T], axis=1)        # (D, 4D)
    w_ffn = jnp.concatenate([w1.T, w2], axis=0).astype(jnp.bfloat16)     # (2D, ffn)

    # Head: Linear(H, fc) -> ReLU -> Dropout(id) -> Linear(fc, 1)
    fw1 = rnd((fc_dim, H)); fb1 = rnd((fc_dim,))
    fw2 = rnd((1, fc_dim)); fb2 = rnd((1,))

    # Pack every small vector into one (1, P) array.
    vec = {'b1': b1, 'bqkv': in_proj_b, 'bo': out_proj_b,
           'n1w': jnp.ones((D,), jnp.float32), 'n1b': jnp.zeros((D,), jnp.float32),
           'n2w': jnp.ones((D,), jnp.float32), 'n2b': jnp.zeros((D,), jnp.float32),
           'b2': b2, 'hb1': fb1, 'hw2': fw2.reshape(-1), 'hb2': fb2}
    for l in range(num_layers):
        vec[f'lstm_b{l}'] = lstm_b[l]
    offsets, total = _small_layout(num_layers, H, D, ffn_dim, fc_dim)
    order = sorted(offsets.items(), key=lambda kv: kv[1][0])
    small = jnp.concatenate(
        [vec[name].reshape(-1).astype(jnp.float32) for name, _ in order]
    ).reshape(1, total)

    return {'lstm_w': lstm_w, 'w_attn': w_attn, 'w_ffn': w_ffn,
            'hw1_t': fw1.T, 'small': small}


# --------------------------------------------------------------------------

if __name__ == "__main__":
    # Small shapes consistent with the module:
    B, S, F = 4, 8, 6            # batch, sequence_len (= d_model), feature_num
    H = 16                       # hidden_dim (LSTM hidden size)
    NLAYERS = 2                  # lstm_num_layers
    NHEAD = 2                    # transformer_encoder_head_num (divides d_model=8)
    FC = 32                      # fc_layer_dim
    # TODO(synk): dropout (lstm_dropout / fc_dropout / encoder dropout) is identity (eval mode).

    key = jax.random.PRNGKey(0)
    kx, kp = jax.random.split(key)
    x = jax.random.normal(kx, (B, S, F), jnp.float32)
    params = init_params(kp, F, S, H, NLAYERS, FC)

    fwd = jax.jit(partial(transformer_encoder_lstm_2_forward, nhead=NHEAD))
    out = fwd(x, params)
    jax.block_until_ready(out)
    assert out.shape == (B, 1) and out.dtype == jnp.float32
    assert bool(jnp.all(jnp.isfinite(out)))
    print("KERNEL_OK")
</pallas_src>

<mosaic_0001>
module attributes {stable_mosaic.version = 11 : i64} {
  func.func @_fused_forward_kernel(%arg0: memref<4x8x6xf32, #tpu.memory_space<vmem>>, %arg1: memref<6x64xf32, #tpu.memory_space<vmem>>, %arg2: memref<16x64xf32, #tpu.memory_space<vmem>>, %arg3: memref<16x64xf32, #tpu.memory_space<vmem>>, %arg4: memref<16x64xf32, #tpu.memory_space<vmem>>, %arg5: memref<8x32xf32, #tpu.memory_space<vmem>>, %arg6: memref<16x2048xbf16, #tpu.memory_space<vmem>>, %arg7: memref<16x32xf32, #tpu.memory_space<vmem>>, %arg8: memref<1x2313xf32, #tpu.memory_space<vmem>>, %arg9: memref<4x1xf32, #tpu.memory_space<vmem>>) attributes {dimension_semantics = [], scalar_prefetch = 0 : i64, scratch_operands = 0 : i64, tpu.core_type = #tpu.core_type<tc>} {
    %c0 = arith.constant 0 : index
    %c0_0 = arith.constant 0 : index
    %c0_1 = arith.constant 0 : index
    %0 = vector.load %arg0[%c0, %c0_0, %c0_1] : memref<4x8x6xf32, #tpu.memory_space<vmem>>, vector<4x8x6xf32>
    %1 = vector.shape_cast %0 : vector<4x8x6xf32> to vector<32x6xf32>
    %c0_2 = arith.constant 0 : index
    %c0_3 = arith.constant 0 : index
    %2 = vector.load %arg1[%c0_2, %c0_3] : memref<6x64xf32, #tpu.memory_space<vmem>>, vector<6x64xf32>
    %c0_4 = arith.constant 0 : index
    %c0_5 = arith.constant 0 : index
    %3 = vector.load %arg2[%c0_4, %c0_5] : memref<16x64xf32, #tpu.memory_space<vmem>>, vector<16x64xf32>
    %cst = arith.constant dense<0.000000e+00> : vector<32x64xf32>
    %4 = tpu.matmul %1, %2, %cst {dimension_numbers = #tpu.dot_dimension_numbers<[1], [0], [0], [1], [0, 0, 1, 1], [], []>} : vector<32x6xf32>, vector<6x64xf32>, vector<32x64xf32> -> vector<32x64xf32>
    %c0_6 = arith.constant 0 : index
    %c2048 = arith.constant 2048 : index
    %5 = vector.load %arg8[%c0_6, %c2048] : memref<1x2313xf32, #tpu.memory_space<vmem>>, vector<1x64xf32>
    %6 = vector.broadcast %5 : vector<1x64xf32> to vector<32x64xf32>
    %7 = arith.addf %4, %6 : vector<32x64xf32>
    %cst_7 = arith.constant 0.000000e+00 : f32
    %8 = vector.broadcast %cst_7 : f32 to vector<8x16xf32>
    %cst_8 = arith.constant 0.000000e+00 : f32
    %9 = vector.broadcast %cst_8 : f32 to vector<8x16xf32>
    %10 = vector.extract_strided_slice %7 {offsets = [0, 0], sizes = [8, 64], strides = [1, 1]} : vector<32x64xf32> to vector<8x64xf32>
    %cst_9 = arith.constant dense<0.000000e+00> : vector<8x64xf32>
    %11 = tpu.matmul %8, %3, %cst_9 {dimension_numbers = #tpu.dot_dimension_numbers<[1], [0], [0], [1], [0, 0, 1, 1], [], []>} : vector<8x16xf32>, vector<16x64xf32>, vector<8x64xf32> -> vector<8x64xf32>
    %12 = arith.addf %10, %11 : vector<8x64xf32>
    %13 = vector.extract_strided_slice %12 {offsets = [0, 0], sizes = [8, 48], strides = [1, 1]} : vector<8x64xf32> to vector<8x48xf32>
    %14 = arith.negf %13 : vector<8x48xf32>
    %15 = math.exp %14 : vector<8x48xf32>
    %cst_10 = arith.constant 1.000000e+00 : f32
    %16 = vector.broadcast %cst_10 : f32 to vector<8x48xf32>
    %17 = arith.addf %16, %15 : vector<8x48xf32>
    %18 = arith.divf %16, %17 : vector<8x48xf32>
    %19 = vector.extract_strided_slice %18 {offsets = [0, 0], sizes = [8, 16], strides = [1, 1]} : vector<8x48xf32> to vector<8x16xf32>
    %20 = vector.extract_strided_slice %18 {offsets = [0, 16], sizes = [8, 16], strides = [1, 1]} : vector<8x48xf32> to vector<8x16xf32>
    %21 = vector.extract_strided_slice %18 {offsets = [0, 32], sizes = [8, 16], strides = [1, 1]} : vector<8x48xf32> to vector<8x16xf32>
    %22 = vector.extract_strided_slice %12 {offsets = [0, 48], sizes = [8, 16], strides = [1, 1]} : vector<8x64xf32> to vector<8x16xf32>
    %23 = math.tanh %22 : vector<8x16xf32>
    %24 = arith.mulf %20, %9 : vector<8x16xf32>
    %25 = arith.mulf %19, %23 : vector<8x16xf32>
    %26 = arith.addf %24, %25 : vector<8x16xf32>
    %27 = math.tanh %26 : vector<8x16xf32>
    %28 = arith.mulf %21, %27 : vector<8x16xf32>
    %29 = vector.extract_strided_slice %7 {offsets = [8, 0], sizes = [8, 64], strides = [1, 1]} : vector<32x64xf32> to vector<8x64xf32>
    %cst_11 = arith.constant dense<0.000000e+00> : vector<8x64xf32>
    %30 = tpu.matmul %28, %3, %cst_11 {dimension_numbers = #tpu.dot_dimension_numbers<[1], [0], [0], [1], [0, 0, 1, 1], [], []>} : vector<8x16xf32>, vector<16x64xf32>, vector<8x64xf32> -> vector<8x64xf32>
    %31 = arith.addf %29, %30 : vector<8x64xf32>
    %32 = vector.extract_strided_slice %31 {offsets = [0, 0], sizes = [8, 48], strides = [1, 1]} : vector<8x64xf32> to vector<8x48xf32>
    %33 = arith.negf %32 : vector<8x48xf32>
    %34 = math.exp %33 : vector<8x48xf32>
    %cst_12 = arith.constant 1.000000e+00 : f32
    %35 = vector.broadcast %cst_12 : f32 to vector<8x48xf32>
    %36 = arith.addf %35, %34 : vector<8x48xf32>
    %37 = arith.divf %35, %36 : vector<8x48xf32>
    %38 = vector.extract_strided_slice %37 {offsets = [0, 0], sizes = [8, 16], strides = [1, 1]} : vector<8x48xf32> to vector<8x16xf32>
    %39 = vector.extract_strided_slice %37 {offsets = [0, 16], sizes = [8, 16], strides = [1, 1]} : vector<8x48xf32> to vector<8x16xf32>
    %40 = vector.extract_strided_slice %37 {offsets = [0, 32], sizes = [8, 16], strides = [1, 1]} : vector<8x48xf32> to vector<8x16xf32>
    %41 = vector.extract_strided_slice %31 {offsets = [0, 48], sizes = [8, 16], strides = [1, 1]} : vector<8x64xf32> to vector<8x16xf32>
    %42 = math.tanh %41 : vector<8x16xf32>
    %43 = arith.mulf %39, %26 : vector<8x16xf32>
    %44 = arith.mulf %38, %42 : vector<8x16xf32>
    %45 = arith.addf %43, %44 : vector<8x16xf32>
    %46 = math.tanh %45 : vector<8x16xf32>
    %47 = arith.mulf %40, %46 : vector<8x16xf32>
    %48 = vector.extract_strided_slice %7 {offsets = [16, 0], sizes = [8, 64], strides = [1, 1]} : vector<32x64xf32> to vector<8x64xf32>
    %cst_13 = arith.constant dense<0.000000e+00> : vector<8x64xf32>
    %49 = tpu.matmul %47, %3, %cst_13 {dimension_numbers = #tpu.dot_dimension_numbers<[1], [0], [0], [1], [0, 0, 1, 1], [], []>} : vector<8x16xf32>, vector<16x64xf32>, vector<8x64xf32> -> vector<8x64xf32>
    %50 = arith.addf %48, %49 : vector<8x64xf32>
    %51 = vector.extract_strided_slice %50 {offsets = [0, 0], sizes = [8, 48], strides = [1, 1]} : vector<8x64xf32> to vector<8x48xf32>
    %52 = arith.negf %51 : vector<8x48xf32>
    %53 = math.exp %52 : vector<8x48xf32>
    %cst_14 = arith.constant 1.000000e+00 : f32
    %54 = vector.broadcast %cst_14 : f32 to vector<8x48xf32>
    %55 = arith.addf %54, %53 : vector<8x48xf32>
    %56 = arith.divf %54, %55 : vector<8x48xf32>
    %57 = vector.extract_strided_slice %56 {offsets = [0, 0], sizes = [8, 16], strides = [1, 1]} : vector<8x48xf32> to vector<8x16xf32>
    %58 = vector.extract_strided_slice %56 {offsets = [0, 16], sizes = [8, 16], strides = [1, 1]} : vector<8x48xf32> to vector<8x16xf32>
    %59 = vector.extract_strided_slice %56 {offsets = [0, 32], sizes = [8, 16], strides = [1, 1]} : vector<8x48xf32> to vector<8x16xf32>
    %60 = vector.extract_strided_slice %50 {offsets = [0, 48], sizes = [8, 16], strides = [1, 1]} : vector<8x64xf32> to vector<8x16xf32>
    %61 = math.tanh %60 : vector<8x16xf32>
    %62 = arith.mulf %58, %45 : vector<8x16xf32>
    %63 = arith.mulf %57, %61 : vector<8x16xf32>
    %64 = arith.addf %62, %63 : vector<8x16xf32>
    %65 = math.tanh %64 : vector<8x16xf32>
    %66 = arith.mulf %59, %65 : vector<8x16xf32>
    %67 = vector.extract_strided_slice %7 {offsets = [24, 0], sizes = [8, 64], strides = [1, 1]} : vector<32x64xf32> to vector<8x64xf32>
    %cst_15 = arith.constant dense<0.000000e+00> : vector<8x64xf32>
    %68 = tpu.matmul %66, %3, %cst_15 {dimension_numbers = #tpu.dot_dimension_numbers<[1], [0], [0], [1], [0, 0, 1, 1], [], []>} : vector<8x16xf32>, vector<16x64xf32>, vector<8x64xf32> -> vector<8x64xf32>
    %69 = arith.addf %67, %68 : vector<8x64xf32>
    %70 = vector.extract_strided_slice %69 {offsets = [0, 0], sizes = [8, 48], strides = [1, 1]} : vector<8x64xf32> to vector<8x48xf32>
    %71 = arith.negf %70 : vector<8x48xf32>
    %72 = math.exp %71 : vector<8x48xf32>
    %cst_16 = arith.constant 1.000000e+00 : f32
    %73 = vector.broadcast %cst_16 : f32 to vector<8x48xf32>
    %74 = arith.addf %73, %72 : vector<8x48xf32>
    %75 = arith.divf %73, %74 : vector<8x48xf32>
    %76 = vector.extract_strided_slice %75 {offsets = [0, 0], sizes = [8, 16], strides = [1, 1]} : vector<8x48xf32> to vector<8x16xf32>
    %77 = vector.extract_strided_slice %75 {offsets = [0, 16], sizes = [8, 16], strides = [1, 1]} : vector<8x48xf32> to vector<8x16xf32>
    %78 = vector.extract_strided_slice %75 {offsets = [0, 32], sizes = [8, 16], strides = [1, 1]} : vector<8x48xf32> to vector<8x16xf32>
    %79 = vector.extract_strided_slice %69 {offsets = [0, 48], sizes = [8, 16], strides = [1, 1]} : vector<8x64xf32> to vector<8x16xf32>
    %80 = math.tanh %79 : vector<8x16xf32>
    %81 = arith.mulf %77, %64 : vector<8x16xf32>
    %82 = arith.mulf %76, %80 : vector<8x16xf32>
    %83 = arith.addf %81, %82 : vector<8x16xf32>
    %84 = math.tanh %83 : vector<8x16xf32>
    %85 = arith.mulf %78, %84 : vector<8x16xf32>
    %86 = tpu.concatenate %28, %47, %66, %85 in 0 : vector<8x16xf32>, vector<8x16xf32>, vector<8x16xf32>, vector<8x16xf32> -> vector<32x16xf32>
    %c0_17 = arith.constant 0 : index
    %c0_18 = arith.constant 0 : index
    %87 = vector.load %arg3[%c0_17, %c0_18] : memref<16x64xf32, #tpu.memory_space<vmem>>, vector<16x64xf32>
    %c0_19 = arith.constant 0 : index
    %c0_20 = arith.constant 0 : index
    %88 = vector.load %arg4[%c0_19, %c0_20] : memref<16x64xf32, #tpu.memory_space<vmem>>, vector<16x64xf32>
    %cst_21 = arith.constant dense<0.000000e+00> : vector<32x64xf32>
    %89 = tpu.matmul %86, %87, %cst_21 {dimension_numbers = #tpu.dot_dimension_numbers<[1], [0], [0], [1], [0, 0, 1, 1], [], []>} : vector<32x16xf32>, vector<16x64xf32>, vector<32x64xf32> -> vector<32x64xf32>
    %c0_22 = arith.constant 0 : index
    %c2112 = arith.constant 2112 : index
    %90 = vector.load %arg8[%c0_22, %c2112] : memref<1x2313xf32, #tpu.memory_space<vmem>>, vector<1x64xf32>
    %91 = vector.broadcast %90 : vector<1x64xf32> to vector<32x64xf32>
    %92 = arith.addf %89, %91 : vector<32x64xf32>
    %cst_23 = arith.constant 0.000000e+00 : f32
    %93 = vector.broadcast %cst_23 : f32 to vector<8x16xf32>
    %cst_24 = arith.constant 0.000000e+00 : f32
    %94 = vector.broadcast %cst_24 : f32 to vector<8x16xf32>
    %95 = vector.extract_strided_slice %92 {offsets = [0, 0], sizes = [8, 64], strides = [1, 1]} : vector<32x64xf32> to vector<8x64xf32>
    %cst_25 = arith.constant dense<0.000000e+00> : vector<8x64xf32>
    %96 = tpu.matmul %93, %88, %cst_25 {dimension_numbers = #tpu.dot_dimension_numbers<[1], [0], [0], [1], [0, 0, 1, 1], [], []>} : vector<8x16xf32>, vector<16x64xf32>, vector<8x64xf32> -> vector<8x64xf32>
    %97 = arith.addf %95, %96 : vector<8x64xf32>
    %98 = vector.extract_strided_slice %97 {offsets = [0, 0], sizes = [8, 48], strides = [1, 1]} : vector<8x64xf32> to vector<8x48xf32>
    %99 = arith.negf %98 : vector<8x48xf32>
    %100 = math.exp %99 : vector<8x48xf32>
    %cst_26 = arith.constant 1.000000e+00 : f32
    %101 = vector.broadcast %cst_26 : f32 to vector<8x48xf32>
    %102 = arith.addf %101, %100 : vector<8x48xf32>
    %103 = arith.divf %101, %102 : vector<8x48xf32>
    %104 = vector.extract_strided_slice %103 {offsets = [0, 0], sizes = [8, 16], strides = [1, 1]} : vector<8x48xf32> to vector<8x16xf32>
    %105 = vector.extract_strided_slice %103 {offsets = [0, 16], sizes = [8, 16], strides = [1, 1]} : vector<8x48xf32> to vector<8x16xf32>
    %106 = vector.extract_strided_slice %103 {offsets = [0, 32], sizes = [8, 16], strides = [1, 1]} : vector<8x48xf32> to vector<8x16xf32>
    %107 = vector.extract_strided_slice %97 {offsets = [0, 48], sizes = [8, 16], strides = [1, 1]} : vector<8x64xf32> to vector<8x16xf32>
    %108 = math.tanh %107 : vector<8x16xf32>
    %109 = arith.mulf %105, %94 : vector<8x16xf32>
    %110 = arith.mulf %104, %108 : vector<8x16xf32>
    %111 = arith.addf %109, %110 : vector<8x16xf32>
    %112 = math.tanh %111 : vector<8x16xf32>
    %113 = arith.mulf %106, %112 : vector<8x16xf32>
    %114 = vector.extract_strided_slice %92 {offsets = [8, 0], sizes = [8, 64], strides = [1, 1]} : vector<32x64xf32> to vector<8x64xf32>
    %cst_27 = arith.constant dense<0.000000e+00> : vector<8x64xf32>
    %115 = tpu.matmul %113, %88, %cst_27 {dimension_numbers = #tpu.dot_dimension_numbers<[1], [0], [0], [1], [0, 0, 1, 1], [], []>} : vector<8x16xf32>, vector<16x64xf32>, vector<8x64xf32> -> vector<8x64xf32>
    %116 = arith.addf %114, %115 : vector<8x64xf32>
    %117 = vector.extract_strided_slice %116 {offsets = [0, 0], sizes = [8, 48], strides = [1, 1]} : vector<8x64xf32> to vector<8x48xf32>
    %118 = arith.negf %117 : vector<8x48xf32>
    %119 = math.exp %118 : vector<8x48xf32>
    %cst_28 = arith.constant 1.000000e+00 : f32
    %120 = vector.broadcast %cst_28 : f32 to vector<8x48xf32>
    %121 = arith.addf %120, %119 : vector<8x48xf32>
    %122 = arith.divf %120, %121 : vector<8x48xf32>
    %123 = vector.extract_strided_slice %122 {offsets = [0, 0], sizes = [8, 16], strides = [1, 1]} : vector<8x48xf32> to vector<8x16xf32>
    %124 = vector.extract_strided_slice %122 {offsets = [0, 16], sizes = [8, 16], strides = [1, 1]} : vector<8x48xf32> to vector<8x16xf32>
    %125 = vector.extract_strided_slice %122 {offsets = [0, 32], sizes = [8, 16], strides = [1, 1]} : vector<8x48xf32> to vector<8x16xf32>
    %126 = vector.extract_strided_slice %116 {offsets = [0, 48], sizes = [8, 16], strides = [1, 1]} : vector<8x64xf32> to vector<8x16xf32>
    %127 = math.tanh %126 : vector<8x16xf32>
    %128 = arith.mulf %124, %111 : vector<8x16xf32>
    %129 = arith.mulf %123, %127 : vector<8x16xf32>
    %130 = arith.addf %128, %129 : vector<8x16xf32>
    %131 = math.tanh %130 : vector<8x16xf32>
    %132 = arith.mulf %125, %131 : vector<8x16xf32>
    %133 = vector.extract_strided_slice %92 {offsets = [16, 0], sizes = [8, 64], strides = [1, 1]} : vector<32x64xf32> to vector<8x64xf32>
    %cst_29 = arith.constant dense<0.000000e+00> : vector<8x64xf32>
    %134 = tpu.matmul %132, %88, %cst_29 {dimension_numbers = #tpu.dot_dimension_numbers<[1], [0], [0], [1], [0, 0, 1, 1], [], []>} : vector<8x16xf32>, vector<16x64xf32>, vector<8x64xf32> -> vector<8x64xf32>
    %135 = arith.addf %133, %134 : vector<8x64xf32>
    %136 = vector.extract_strided_slice %135 {offsets = [0, 0], sizes = [8, 48], strides = [1, 1]} : vector<8x64xf32> to vector<8x48xf32>
    %137 = arith.negf %136 : vector<8x48xf32>
    %138 = math.exp %137 : vector<8x48xf32>
    %cst_30 = arith.constant 1.000000e+00 : f32
    %139 = vector.broadcast %cst_30 : f32 to vector<8x48xf32>
    %140 = arith.addf %139, %138 : vector<8x48xf32>
    %141 = arith.divf %139, %140 : vector<8x48xf32>
    %142 = vector.extract_strided_slice %141 {offsets = [0, 0], sizes = [8, 16], strides = [1, 1]} : vector<8x48xf32> to vector<8x16xf32>
    %143 = vector.extract_strided_slice %141 {offsets = [0, 16], sizes = [8, 16], strides = [1, 1]} : vector<8x48xf32> to vector<8x16xf32>
    %144 = vector.extract_strided_slice %141 {offsets = [0, 32], sizes = [8, 16], strides = [1, 1]} : vector<8x48xf32> to vector<8x16xf32>
    %145 = vector.extract_strided_slice %135 {offsets = [0, 48], sizes = [8, 16], strides = [1, 1]} : vector<8x64xf32> to vector<8x16xf32>
    %146 = math.tanh %145 : vector<8x16xf32>
    %147 = arith.mulf %143, %130 : vector<8x16xf32>
    %148 = arith.mulf %142, %146 : vector<8x16xf32>
    %149 = arith.addf %147, %148 : vector<8x16xf32>
    %150 = math.tanh %149 : vector<8x16xf32>
    %151 = arith.mulf %144, %150 : vector<8x16xf32>
    %152 = vector.extract_strided_slice %92 {offsets = [24, 0], sizes = [8, 64], strides = [1, 1]} : vector<32x64xf32> to vector<8x64xf32>
    %cst_31 = arith.constant dense<0.000000e+00> : vector<8x64xf32>
    %153 = tpu.matmul %151, %88, %cst_31 {dimension_numbers = #tpu.dot_dimension_numbers<[1], [0], [0], [1], [0, 0, 1, 1], [], []>} : vector<8x16xf32>, vector<16x64xf32>, vector<8x64xf32> -> vector<8x64xf32>
    %154 = arith.addf %152, %153 : vector<8x64xf32>
    %155 = vector.extract_strided_slice %154 {offsets = [0, 0], sizes = [8, 48], strides = [1, 1]} : vector<8x64xf32> to vector<8x48xf32>
    %156 = arith.negf %155 : vector<8x48xf32>
    %157 = math.exp %156 : vector<8x48xf32>
    %cst_32 = arith.constant 1.000000e+00 : f32
    %158 = vector.broadcast %cst_32 : f32 to vector<8x48xf32>
    %159 = arith.addf %158, %157 : vector<8x48xf32>
    %160 = arith.divf %158, %159 : vector<8x48xf32>
    %161 = vector.extract_strided_slice %160 {offsets = [0, 0], sizes = [8, 16], strides = [1, 1]} : vector<8x48xf32> to vector<8x16xf32>
    %162 = vector.extract_strided_slice %160 {offsets = [0, 16], sizes = [8, 16], strides = [1, 1]} : vector<8x48xf32> to vector<8x16xf32>
    %163 = vector.extract_strided_slice %160 {offsets = [0, 32], sizes = [8, 16], strides = [1, 1]} : vector<8x48xf32> to vector<8x16xf32>
    %164 = vector.extract_strided_slice %154 {offsets = [0, 48], sizes = [8, 16], strides = [1, 1]} : vector<8x64xf32> to vector<8x16xf32>
    %165 = math.tanh %164 : vector<8x16xf32>
    %166 = arith.mulf %162, %149 : vector<8x16xf32>
    %167 = arith.mulf %161, %165 : vector<8x16xf32>
    %168 = arith.addf %166, %167 : vector<8x16xf32>
    %169 = math.tanh %168 : vector<8x16xf32>
    %170 = arith.mulf %163, %169 : vector<8x16xf32>
    %171 = tpu.concatenate %113, %132, %151, %170 in 0 : vector<8x16xf32>, vector<8x16xf32>, vector<8x16xf32>, vector<8x16xf32> -> vector<32x16xf32>
    %172 = vector.shape_cast %171 : vector<32x16xf32> to vector<4x8x16xf32>
    %173 = tpu.transpose %172, [0, 2, 1] : vector<4x8x16xf32> -> vector<4x16x8xf32>
    %174 = vector.shape_cast %173 : vector<4x16x8xf32> to vector<64x8xf32>
    %c0_33 = arith.constant 0 : index
    %c0_34 = arith.constant 0 : index
    %175 = vector.load %arg5[%c0_33, %c0_34] : memref<8x32xf32, #tpu.memory_space<vmem>>, vector<8x32xf32>
    %176 = vector.extract_strided_slice %175 {offsets = [0, 0], sizes = [8, 24], strides = [1, 1]} : vector<8x32xf32> to vector<8x24xf32>
    %cst_35 = arith.constant dense<0.000000e+00> : vector<64x24xf32>
    %177 = tpu.matmul %174, %176, %cst_35 {dimension_numbers = #tpu.dot_dimension_numbers<[1], [0], [0], [1], [0, 0, 1, 1], [], []>} : vector<64x8xf32>, vector<8x24xf32>, vector<64x24xf32> -> vector<64x24xf32>
    %c0_36 = arith.constant 0 : index
    %c2176 = arith.constant 2176 : index
    %178 = vector.load %arg8[%c0_36, %c2176] : memref<1x2313xf32, #tpu.memory_space<vmem>>, vector<1x24xf32>
    %179 = vector.broadcast %178 : vector<1x24xf32> to vector<64x24xf32>
    %180 = arith.addf %177, %179 : vector<64x24xf32>
    %181 = vector.extract_strided_slice %180 {offsets = [0, 0], sizes = [64, 8], strides = [1, 1]} : vector<64x24xf32> to vector<64x8xf32>
    %182 = vector.shape_cast %181 : vector<64x8xf32> to vector<4x16x8xf32>
    %183 = vector.extract_strided_slice %180 {offsets = [0, 8], sizes = [64, 8], strides = [1, 1]} : vector<64x24xf32> to vector<64x8xf32>
    %184 = vector.shape_cast %183 : vector<64x8xf32> to vector<4x16x8xf32>
    %185 = vector.extract_strided_slice %180 {offsets = [0, 16], sizes = [64, 8], strides = [1, 1]} : vector<64x24xf32> to vector<64x8xf32>
    %186 = vector.shape_cast %185 : vector<64x8xf32> to vector<4x16x8xf32>
    %187 = vector.extract_strided_slice %182 {offsets = [0, 0, 0], sizes = [4, 16, 4], strides = [1, 1, 1]} : vector<4x16x8xf32> to vector<4x16x4xf32>
    %188 = vector.extract_strided_slice %184 {offsets = [0, 0, 0], sizes = [4, 16, 4], strides = [1, 1, 1]} : vector<4x16x8xf32> to vector<4x16x4xf32>
    "tpu.trace_start"() <{level = 10 : i32, message = "bqd,bkd->bqk"}> : () -> ()
    %cst_37 = arith.constant dense<0.000000e+00> : vector<4x16x16xf32>
    %189 = tpu.matmul %187, %188, %cst_37 {dimension_numbers = #tpu.dot_dimension_numbers<[2], [2], [1], [1], [0, 0, 0, 1, 1, 1], [0], [0]>} : vector<4x16x4xf32>, vector<4x16x4xf32>, vector<4x16x16xf32> -> vector<4x16x16xf32>
    "tpu.trace_stop"() : () -> ()
    %cst_38 = arith.constant 5.000000e-01 : f32
    %190 = vector.broadcast %cst_38 : f32 to vector<4x16x16xf32>
    %191 = arith.mulf %189, %190 : vector<4x16x16xf32>
    %cst_39 = arith.constant dense<0xFF800000> : vector<4x16xf32>
    %192 = vector.multi_reduction <maximumf>, %191, %cst_39 [2] : vector<4x16x16xf32> to vector<4x16xf32>
    %193 = vector.shape_cast %192 : vector<4x16xf32> to vector<4x16x1xf32>
    %194 = vector.broadcast %193 : vector<4x16x1xf32> to vector<4x16x16xf32>
    %195 = arith.subf %191, %194 : vector<4x16x16xf32>
    %196 = math.exp %195 : vector<4x16x16xf32>
    %cst_40 = arith.constant dense<0.000000e+00> : vector<4x16xf32>
    %197 = vector.multi_reduction <add>, %196, %cst_40 [2] : vector<4x16x16xf32> to vector<4x16xf32>
    %198 = vector.shape_cast %197 : vector<4x16xf32> to vector<4x16x1xf32>
    %199 = tpu.reciprocal %198 {approx = true} : vector<4x16x1xf32> -> vector<4x16x1xf32>
    %200 = vector.broadcast %199 : vector<4x16x1xf32> to vector<4x16x16xf32>
    %201 = arith.mulf %196, %200 : vector<4x16x16xf32>
    %202 = vector.extract_strided_slice %186 {offsets = [0, 0, 0], sizes = [4, 16, 4], strides = [1, 1, 1]} : vector<4x16x8xf32> to vector<4x16x4xf32>
    "tpu.trace_start"() <{level = 10 : i32, message = "bqk,bkd->bqd"}> : () -> ()
    %cst_41 = arith.constant dense<0.000000e+00> : vector<4x16x4xf32>
    %203 = tpu.matmul %201, %202, %cst_41 {dimension_numbers = #tpu.dot_dimension_numbers<[2], [1], [1], [2], [0, 0, 0, 1, 1, 2], [0], [0]>} : vector<4x16x16xf32>, vector<4x16x4xf32>, vector<4x16x4xf32> -> vector<4x16x4xf32>
    "tpu.trace_stop"() : () -> ()
    %204 = vector.extract_strided_slice %182 {offsets = [0, 0, 4], sizes = [4, 16, 4], strides = [1, 1, 1]} : vector<4x16x8xf32> to vector<4x16x4xf32>
    %205 = vector.extract_strided_slice %184 {offsets = [0, 0, 4], sizes = [4, 16, 4], strides = [1, 1, 1]} : vector<4x16x8xf32> to vector<4x16x4xf32>
    "tpu.trace_start"() <{level = 10 : i32, message = "bqd,bkd->bqk"}> : () -> ()
    %cst_42 = arith.constant dense<0.000000e+00> : vector<4x16x16xf32>
    %206 = tpu.matmul %204, %205, %cst_42 {dimension_numbers = #tpu.dot_dimension_numbers<[2], [2], [1], [1], [0, 0, 0, 1, 1, 1], [0], [0]>} : vector<4x16x4xf32>, vector<4x16x4xf32>, vector<4x16x16xf32> -> vector<4x16x16xf32>
    "tpu.trace_stop"() : () -> ()
    %cst_43 = arith.constant 5.000000e-01 : f32
    %207 = vector.broadcast %cst_43 : f32 to vector<4x16x16xf32>
    %208 = arith.mulf %206, %207 : vector<4x16x16xf32>
    %cst_44 = arith.constant dense<0xFF800000> : vector<4x16xf32>
    %209 = vector.multi_reduction <maximumf>, %208, %cst_44 [2] : vector<4x16x16xf32> to vector<4x16xf32>
    %210 = vector.shape_cast %209 : vector<4x16xf32> to vector<4x16x1xf32>
    %211 = vector.broadcast %210 : vector<4x16x1xf32> to vector<4x16x16xf32>
    %212 = arith.subf %208, %211 : vector<4x16x16xf32>
    %213 = math.exp %212 : vector<4x16x16xf32>
    %cst_45 = arith.constant dense<0.000000e+00> : vector<4x16xf32>
    %214 = vector.multi_reduction <add>, %213, %cst_45 [2] : vector<4x16x16xf32> to vector<4x16xf32>
    %215 = vector.shape_cast %214 : vector<4x16xf32> to vector<4x16x1xf32>
    %216 = tpu.reciprocal %215 {approx = true} : vector<4x16x1xf32> -> vector<4x16x1xf32>
    %217 = vector.broadcast %216 : vector<4x16x1xf32> to vector<4x16x16xf32>
    %218 = arith.mulf %213, %217 : vector<4x16x16xf32>
    %219 = vector.extract_strided_slice %186 {offsets = [0, 0, 4], sizes = [4, 16, 4], strides = [1, 1, 1]} : vector<4x16x8xf32> to vector<4x16x4xf32>
    "tpu.trace_start"() <{level = 10 : i32, message = "bqk,bkd->bqd"}> : () -> ()
    %cst_46 = arith.constant dense<0.000000e+00> : vector<4x16x4xf32>
    %220 = tpu.matmul %218, %219, %cst_46 {dimension_numbers = #tpu.dot_dimension_numbers<[2], [1], [1], [2], [0, 0, 0, 1, 1, 2], [0], [0]>} : vector<4x16x16xf32>, vector<4x16x4xf32>, vector<4x16x4xf32> -> vector<4x16x4xf32>
    "tpu.trace_stop"() : () -> ()
    %221 = tpu.concatenate %203, %220 in 2 : vector<4x16x4xf32>, vector<4x16x4xf32> -> vector<4x16x8xf32>
    %222 = vector.shape_cast %221 : vector<4x16x8xf32> to vector<64x8xf32>
    %223 = vector.extract_strided_slice %175 {offsets = [0, 24], sizes = [8, 8], strides = [1, 1]} : vector<8x32xf32> to vector<8x8xf32>
    %cst_47 = arith.constant dense<0.000000e+00> : vector<64x8xf32>
    %224 = tpu.matmul %222, %223, %cst_47 {dimension_numbers = #tpu.dot_dimension_numbers<[1], [0], [0], [1], [0, 0, 1, 1], [], []>} : vector<64x8xf32>, vector<8x8xf32>, vector<64x8xf32> -> vector<64x8xf32>
    %c0_48 = arith.constant 0 : index
    %c2200 = arith.constant 2200 : index
    %225 = vector.load %arg8[%c0_48, %c2200] : memref<1x2313xf32, #tpu.memory_space<vmem>>, vector<1x8xf32>
    %226 = vector.broadcast %225 : vector<1x8xf32> to vector<64x8xf32>
    %227 = arith.addf %224, %226 : vector<64x8xf32>
    %228 = arith.addf %174, %227 : vector<64x8xf32>
    %c0_49 = arith.constant 0 : index
    %c2208 = arith.constant 2208 : index
    %229 = vector.load %arg8[%c0_49, %c2208] : memref<1x2313xf32, #tpu.memory_space<vmem>>, vector<1x8xf32>
    %c0_50 = arith.constant 0 : index
    %c2216 = arith.constant 2216 : index
    %230 = vector.load %arg8[%c0_50, %c2216] : memref<1x2313xf32, #tpu.memory_space<vmem>>, vector<1x8xf32>
    %cst_51 = arith.constant dense<0.000000e+00> : vector<64xf32>
    %231 = vector.multi_reduction <add>, %228, %cst_51 [1] : vector<64x8xf32> to vector<64xf32>
    %232 = vector.shape_cast %231 : vector<64xf32> to vector<64x1xf32>
    %cst_52 = arith.constant 8.000000e+00 : f32
    %233 = vector.broadcast %cst_52 : f32 to vector<64x1xf32>
    %234 = arith.divf %232, %233 : vector<64x1xf32>
    %235 = vector.broadcast %234 : vector<64x1xf32> to vector<64x8xf32>
    %236 = arith.subf %228, %235 : vector<64x8xf32>
    %237 = arith.mulf %236, %236 : vector<64x8xf32>
    %cst_53 = arith.constant dense<0.000000e+00> : vector<64xf32>
    %238 = vector.multi_reduction <add>, %237, %cst_53 [1] : vector<64x8xf32> to vector<64xf32>
    %239 = vector.shape_cast %238 : vector<64xf32> to vector<64x1xf32>
    %cst_54 = arith.constant 8.000000e+00 : f32
    %240 = vector.broadcast %cst_54 : f32 to vector<64x1xf32>
    %241 = arith.divf %239, %240 : vector<64x1xf32>
    %242 = vector.broadcast %234 : vector<64x1xf32> to vector<64x8xf32>
    %243 = arith.subf %228, %242 : vector<64x8xf32>
    %cst_55 = arith.constant 9.99999974E-6 : f32
    %244 = vector.broadcast %cst_55 : f32 to vector<64x1xf32>
    %245 = arith.addf %241, %244 : vector<64x1xf32>
    %246 = math.rsqrt %245 : vector<64x1xf32>
    %247 = vector.broadcast %246 : vector<64x1xf32> to vector<64x8xf32>
    %248 = arith.mulf %243, %247 : vector<64x8xf32>
    %249 = vector.broadcast %229 : vector<1x8xf32> to vector<64x8xf32>
    %250 = arith.mulf %248, %249 : vector<64x8xf32>
    %251 = vector.broadcast %230 : vector<1x8xf32> to vector<64x8xf32>
    %252 = arith.addf %250, %251 : vector<64x8xf32>
    %c0_56 = arith.constant 0 : index
    %c0_57 = arith.constant 0 : index
    %253 = vector.load %arg6[%c0_56, %c0_57] : memref<16x2048xbf16, #tpu.memory_space<vmem>>, vector<16x2048xbf16>
    %254 = arith.truncf %252 : vector<64x8xf32> to vector<64x8xbf16>
    %255 = vector.extract_strided_slice %253 {offsets = [0, 0], sizes = [8, 2048], strides = [1, 1]} : vector<16x2048xbf16> to vector<8x2048xbf16>
    %cst_58 = arith.constant dense<0.000000e+00> : vector<64x2048xf32>
    %256 = tpu.matmul %254, %255, %cst_58 {dimension_numbers = #tpu.dot_dimension_numbers<[1], [0], [0], [1], [0, 0, 1, 1], [], []>} : vector<64x8xbf16>, vector<8x2048xbf16>, vector<64x2048xf32> -> vector<64x2048xf32>
    %c0_59 = arith.constant 0 : index
    %c0_60 = arith.constant 0 : index
    %257 = vector.load %arg8[%c0_59, %c0_60] : memref<1x2313xf32, #tpu.memory_space<vmem>>, vector<1x2048xf32>
    %258 = vector.broadcast %257 : vector<1x2048xf32> to vector<64x2048xf32>
    %259 = arith.addf %256, %258 : vector<64x2048xf32>
    %cst_61 = arith.constant 0.000000e+00 : f32
    %260 = vector.broadcast %cst_61 : f32 to vector<64x2048xf32>
    %261 = arith.maximumf %259, %260 : vector<64x2048xf32>
    %262 = arith.truncf %261 : vector<64x2048xf32> to vector<64x2048xbf16>
    %263 = vector.extract_strided_slice %253 {offsets = [8, 0], sizes = [8, 2048], strides = [1, 1]} : vector<16x2048xbf16> to vector<8x2048xbf16>
    %cst_62 = arith.constant dense<0.000000e+00> : vector<64x8xf32>
    %264 = tpu.matmul %262, %263, %cst_62 {dimension_numbers = #tpu.dot_dimension_numbers<[1], [1], [0], [0], [0, 0, 1, 0], [], []>} : vector<64x2048xbf16>, vector<8x2048xbf16>, vector<64x8xf32> -> vector<64x8xf32>
    %c0_63 = arith.constant 0 : index
    %c2240 = arith.constant 2240 : index
    %265 = vector.load %arg8[%c0_63, %c2240] : memref<1x2313xf32, #tpu.memory_space<vmem>>, vector<1x8xf32>
    %266 = vector.broadcast %265 : vector<1x8xf32> to vector<64x8xf32>
    %267 = arith.addf %264, %266 : vector<64x8xf32>
    %268 = arith.addf %252, %267 : vector<64x8xf32>
    %c0_64 = arith.constant 0 : index
    %c2224 = arith.constant 2224 : index
    %269 = vector.load %arg8[%c0_64, %c2224] : memref<1x2313xf32, #tpu.memory_space<vmem>>, vector<1x8xf32>
    %c0_65 = arith.constant 0 : index
    %c2232 = arith.constant 2232 : index
    %270 = vector.load %arg8[%c0_65, %c2232] : memref<1x2313xf32, #tpu.memory_space<vmem>>, vector<1x8xf32>
    %cst_66 = arith.constant dense<0.000000e+00> : vector<64xf32>
    %271 = vector.multi_reduction <add>, %268, %cst_66 [1] : vector<64x8xf32> to vector<64xf32>
    %272 = vector.shape_cast %271 : vector<64xf32> to vector<64x1xf32>
    %cst_67 = arith.constant 8.000000e+00 : f32
    %273 = vector.broadcast %cst_67 : f32 to vector<64x1xf32>
    %274 = arith.divf %272, %273 : vector<64x1xf32>
    %275 = vector.broadcast %274 : vector<64x1xf32> to vector<64x8xf32>
    %276 = arith.subf %268, %275 : vector<64x8xf32>
    %277 = arith.mulf %276, %276 : vector<64x8xf32>
    %cst_68 = arith.constant dense<0.000000e+00> : vector<64xf32>
    %278 = vector.multi_reduction <add>, %277, %cst_68 [1] : vector<64x8xf32> to vector<64xf32>
    %279 = vector.shape_cast %278 : vector<64xf32> to vector<64x1xf32>
    %cst_69 = arith.constant 8.000000e+00 : f32
    %280 = vector.broadcast %cst_69 : f32 to vector<64x1xf32>
    %281 = arith.divf %279, %280 : vector<64x1xf32>
    %282 = vector.broadcast %274 : vector<64x1xf32> to vector<64x8xf32>
    %283 = arith.subf %268, %282 : vector<64x8xf32>
    %cst_70 = arith.constant 9.99999974E-6 : f32
    %284 = vector.broadcast %cst_70 : f32 to vector<64x1xf32>
    %285 = arith.addf %281, %284 : vector<64x1xf32>
    %286 = math.rsqrt %285 : vector<64x1xf32>
    %287 = vector.broadcast %286 : vector<64x1xf32> to vector<64x8xf32>
    %288 = arith.mulf %283, %287 : vector<64x8xf32>
    %289 = vector.broadcast %269 : vector<1x8xf32> to vector<64x8xf32>
    %290 = arith.mulf %288, %289 : vector<64x8xf32>
    %291 = vector.broadcast %270 : vector<1x8xf32> to vector<64x8xf32>
    %292 = arith.addf %290, %291 : vector<64x8xf32>
    %293 = vector.shape_cast %292 : vector<64x8xf32> to vector<4x16x8xf32>
    %cst_71 = arith.constant dense<0.000000e+00> : vector<4x16xf32>
    %294 = vector.multi_reduction <add>, %293, %cst_71 [2] : vector<4x16x8xf32> to vector<4x16xf32>
    %cst_72 = arith.constant 8.000000e+00 : f32
    %295 = vector.broadcast %cst_72 : f32 to vector<4x16xf32>
    %296 = arith.divf %294, %295 : vector<4x16xf32>
    %c0_73 = arith.constant 0 : index
    %c0_74 = arith.constant 0 : index
    %297 = vector.load %arg7[%c0_73, %c0_74] : memref<16x32xf32, #tpu.memory_space<vmem>>, vector<16x32xf32>
    %cst_75 = arith.constant dense<0.000000e+00> : vector<4x32xf32>
    %298 = tpu.matmul %296, %297, %cst_75 {dimension_numbers = #tpu.dot_dimension_numbers<[1], [0], [0], [1], [0, 0, 1, 1], [], []>} : vector<4x16xf32>, vector<16x32xf32>, vector<4x32xf32> -> vector<4x32xf32>
    %c0_76 = arith.constant 0 : index
    %c2248 = arith.constant 2248 : index
    %299 = vector.load %arg8[%c0_76, %c2248] : memref<1x2313xf32, #tpu.memory_space<vmem>>, vector<1x32xf32>
    %300 = vector.broadcast %299 : vector<1x32xf32> to vector<4x32xf32>
    %301 = arith.addf %298, %300 : vector<4x32xf32>
    %cst_77 = arith.constant 0.000000e+00 : f32
    %302 = vector.broadcast %cst_77 : f32 to vector<4x32xf32>
    %303 = arith.maximumf %301, %302 : vector<4x32xf32>
    %c0_78 = arith.constant 0 : index
    %c2280 = arith.constant 2280 : index
    %304 = vector.load %arg8[%c0_78, %c2280] : memref<1x2313xf32, #tpu.memory_space<vmem>>, vector<1x32xf32>
    %305 = vector.broadcast %304 : vector<1x32xf32> to vector<4x32xf32>
    %306 = arith.mulf %303, %305 : vector<4x32xf32>
    %cst_79 = arith.constant dense<0.000000e+00> : vector<4xf32>
    %307 = vector.multi_reduction <add>, %306, %cst_79 [1] : vector<4x32xf32> to vector<4xf32>
    %308 = vector.shape_cast %307 : vector<4xf32> to vector<4x1xf32>
    %c0_80 = arith.constant 0 : index
    %c2312 = arith.constant 2312 : index
    %309 = vector.load %arg8[%c0_80, %c2312] : memref<1x2313xf32, #tpu.memory_space<vmem>>, vector<1x1xf32>
    %310 = vector.broadcast %309 : vector<1x1xf32> to vector<4x1xf32>
    %311 = arith.addf %308, %310 : vector<4x1xf32>
    %c0_81 = arith.constant 0 : index
    %c0_82 = arith.constant 0 : index
    %312 = vector.load %arg9[%c0_81, %c0_82] : memref<4x1xf32, #tpu.memory_space<vmem>>, vector<4x1xf32>
    tpu.vector_store %arg9[%c0_81, %c0_82], %311 {strides = array<i32>} : memref<4x1xf32, #tpu.memory_space<vmem>>, vector<4x1xf32>,
    return
  }
}

</mosaic_0001>

<llo_original>
// kernel: transformer_encoder_lstm_2_forward.1
$region0: #{transformer_encoder_lstm_2_forward.1}
  #allocation0 [shape = 'u32[]', space=smem, size = 0x4, offset = 0x4, fixed_abs, tag = 'smem constant byte address 0x4 - core index']
  #allocation1 [shape = 'u32[144,128]{1,0:T(1,128)}', space=vmem, size = 0x12000, scoped, tag = 'internal scratch']
  %s0 = inlined_call_operand.vmem [shape: f32[4,8,6], index: 0, kind: input, shape index: {}]
  %s1 = inlined_call_operand.hbm [shape: f32[6,64], index: 1, kind: input, shape index: {}]
  %s2 = inlined_call_operand.vmem [shape: f32[16,64], index: 2, kind: input, shape index: {}]
  %s3 = inlined_call_operand.vmem [shape: f32[16,64], index: 3, kind: input, shape index: {}]
  %s4 = inlined_call_operand.vmem [shape: f32[16,64], index: 4, kind: input, shape index: {}]
  %s5 = inlined_call_operand.vmem [shape: f32[8,32], index: 5, kind: input, shape index: {}]
  %s6 = inlined_call_operand.hbm [shape: bf16[16,2048], index: 6, kind: input, shape index: {}]
  %s7 = inlined_call_operand.hbm [shape: f32[16,32], index: 7, kind: input, shape index: {}]
  %s8 = inlined_call_operand.vmem [shape: f32[1,2313], index: 8, kind: input, shape index: {}]
  %s9 = inlined_call_operand.vmem [shape: f32[4,1], index: 9, kind: output, shape index: {}]
  %s10 = sld [smem:[#allocation0]]
  $region58: #{transformer_encoder_lstm_2_forward.1} parent=0
    _
  %s12 = ssub.s32 1, %s10
  %s13 = scalar_select 0, %s12, %s10
  $region1: #{transformer_encoder_lstm_2_forward.1} parent=0
    #allocation2 [shape = 'u8[4096]{0}', space=vmem, size = 0x1000, scoped, tag = 'input window, operand 1, single buffered']
    #allocation3 [shape = 's32[1]{0}', space=sflag, size = 0x4, scoped, tag = 'scoped memory for transformer_encoder_lstm_2_forward.1']
    #allocation4 [shape = 'u8[65536]{0}', space=vmem, size = 0x10000, scoped, tag = 'input window, operand 6, single buffered']
    #allocation5 [shape = 's32[1]{0}', space=sflag, size = 0x4, scoped, tag = 'scoped memory for transformer_encoder_lstm_2_forward.1']
    #allocation6 [shape = 'u8[8192]{0}', space=vmem, size = 0x2000, scoped, tag = 'input window, operand 7, single buffered']
    %14 = vsyncpa [#allocation3], 0
    %15 = vsyncpa [#allocation5], 0
    // Predicated region
    $region2: #{transformer_encoder_lstm_2_forward.1} parent=1 // pred_check
      _
    $region3: #{transformer_encoder_lstm_2_forward.1} parent=1 // pred_check_branch
      %17 = sbr.rel (0) target = $region5
    $region4: #{transformer_encoder_lstm_2_forward.1} parent=1 // pred_region
      _
    $region5: #{transformer_encoder_lstm_2_forward.1} parent=1 // pred_fallthru
      _
    // Predicated region
    $region6: #{transformer_encoder_lstm_2_forward.1} parent=1 // pred_check
      _
    $region7: #{transformer_encoder_lstm_2_forward.1} parent=1 // pred_check_branch
      %19 = sbr.rel (0) target = $region9
    $region8: #{transformer_encoder_lstm_2_forward.1} parent=1 // pred_region
      %s21 = ssub.s32 128, 128
      %22 = vsyncadd [#allocation3], %s21
      %s24 = sshll.u32 [#allocation2], 4
      %s25 = int_to_ptr.vmem [resolvable:$true] %s24
      %27 = dma.hbm_to_vmem [thread:$0]  %s1, 128, %s25, [#allocation3]
    $region9: #{transformer_encoder_lstm_2_forward.1} parent=1 // pred_fallthru
      _
    // Predicated region
    $region10: #{transformer_encoder_lstm_2_forward.1} parent=1 // pred_check
      _
    $region11: #{transformer_encoder_lstm_2_forward.1} parent=1 // pred_check_branch
      %29 = sbr.rel (0) target = $region13
    $region12: #{transformer_encoder_lstm_2_forward.1} parent=1 // pred_region
      _
    $region13: #{transformer_encoder_lstm_2_forward.1} parent=1 // pred_fallthru
      _
    // Predicated region
    $region14: #{transformer_encoder_lstm_2_forward.1} parent=1 // pred_check
      _
    $region15: #{transformer_encoder_lstm_2_forward.1} parent=1 // pred_check_branch
      %31 = sbr.rel (0) target = $region17
    $region16: #{transformer_encoder_lstm_2_forward.1} parent=1 // pred_region
      _
    $region17: #{transformer_encoder_lstm_2_forward.1} parent=1 // pred_fallthru
      _
    // Predicated region
    $region18: #{transformer_encoder_lstm_2_forward.1} parent=1 // pred_check
      _
    $region19: #{transformer_encoder_lstm_2_forward.1} parent=1 // pred_check_branch
      %33 = sbr.rel (0) target = $region21
    $region20: #{transformer_encoder_lstm_2_forward.1} parent=1 // pred_region
      _
    $region21: #{transformer_encoder_lstm_2_forward.1} parent=1 // pred_fallthru
      _
    // Predicated region
    $region22: #{transformer_encoder_lstm_2_forward.1} parent=1 // pred_check
      _
    $region23: #{transformer_encoder_lstm_2_forward.1} parent=1 // pred_check_branch
      %35 = sbr.rel (0) target = $region25
    $region24: #{transformer_encoder_lstm_2_forward.1} parent=1 // pred_region
      _
    $region25: #{transformer_encoder_lstm_2_forward.1} parent=1 // pred_fallthru
      _
    // Predicated region
    $region26: #{transformer_encoder_lstm_2_forward.1} parent=1 // pred_check
      _
    $region27: #{transformer_encoder_lstm_2_forward.1} parent=1 // pred_check_branch
      %37 = sbr.rel (0) target = $region29
    $region28: #{transformer_encoder_lstm_2_forward.1} parent=1 // pred_region
      %s39 = ssub.s32 2048, 2048
      %40 = vsyncadd [#allocation5], %s39
      %s41 = sshll.u32 [#allocation4], 4
      %s42 = int_to_ptr.vmem [resolvable:$true] %s41
      %47 = dma.hbm_to_vmem [thread:$0]  %s6, 2048, %s42, [#allocation5], 1024, 1024, 64
    $region29: #{transformer_encoder_lstm_2_forward.1} parent=1 // pred_fallthru
      _
    // Predicated region
    $region30: #{transformer_encoder_lstm_2_forward.1} parent=1 // pred_check
      _
    $region31: #{transformer_encoder_lstm_2_forward.1} parent=1 // pred_check_branch
      %49 = sbr.rel (0) target = $region33
    $region32: #{transformer_encoder_lstm_2_forward.1} parent=1 // pred_region
      %s51 = ssub.s32 256, 256
      %52 = vsyncadd [#allocation5], %s51
      %s53 = sshll.u32 [#allocation6], 4
      %s54 = int_to_ptr.vmem [resolvable:$true] %s53
      %59 = dma.hbm_to_vmem [thread:$0]  %s7, 256, %s54, [#allocation5], 128, 128, 8
    $region33: #{transformer_encoder_lstm_2_forward.1} parent=1 // pred_fallthru
      _
    // Predicated region
    $region34: #{transformer_encoder_lstm_2_forward.1} parent=1 // pred_check
      _
    $region35: #{transformer_encoder_lstm_2_forward.1} parent=1 // pred_check_branch
      %61 = sbr.rel (0) target = $region37
    $region36: #{transformer_encoder_lstm_2_forward.1} parent=1 // pred_region
      _
    $region37: #{transformer_encoder_lstm_2_forward.1} parent=1 // pred_fallthru
      _
    // Predicated region
    $region38: #{transformer_encoder_lstm_2_forward.1} parent=1 // pred_check
      _
    $region39: #{transformer_encoder_lstm_2_forward.1} parent=1 // pred_check_branch
      %63 = sbr.rel (0) target = $region41
    $region40: #{transformer_encoder_lstm_2_forward.1} parent=1 // pred_region
      %64 = dma.done [#allocation3], 128
    $region41: #{transformer_encoder_lstm_2_forward.1} parent=1 // pred_fallthru
      _
    // Predicated region
    $region42: #{transformer_encoder_lstm_2_forward.1} parent=1 // pred_check
      _
    $region43: #{transformer_encoder_lstm_2_forward.1} parent=1 // pred_check_branch
      %66 = sbr.rel (0) target = $region45
    $region44: #{transformer_encoder_lstm_2_forward.1} parent=1 // pred_region
      %67 = dma.done [#allocation5], 2048
    $region45: #{transformer_encoder_lstm_2_forward.1} parent=1 // pred_fallthru
      _
    // Predicated region
    $region46: #{transformer_encoder_lstm_2_forward.1} parent=1 // pred_check
      _
    $region47: #{transformer_encoder_lstm_2_forward.1} parent=1 // pred_check_branch
      %69 = sbr.rel (0) target = $region49
    $region48: #{transformer_encoder_lstm_2_forward.1} parent=1 // pred_region
      %70 = dma.done [#allocation5], 256
    $region49: #{transformer_encoder_lstm_2_forward.1} parent=1 // pred_fallthru
      _
    %v72 = vld [vmem:[%s0] sm:$0xff]
    %v73 = vld [vmem:[%s0 + $0x8] sm:$0xff]
    %v74 = vld [vmem:[%s0 + $0x10] sm:$0xff]
    %v75 = vld [vmem:[%s0 + $0x18] sm:$0xff]
    %v76 = vld [vmem:[#allocation2] sm:$0x3f]
    %v77 = vld [vmem:[%s2] sm:$0xff]
    %v78 = vld [vmem:[%s2 + $0x8] sm:$0xff]
    %v79 = vld [vmem:[%s8 + $0x10] sm:$0x1]
    %v81 = vlaneseq
    %v82 = vshrl.u32 %v81, 7
    %v83 = vsub.s32 0, %v82
    %v84 = vrot.slane %v79, %v83
    %vm86 = vcmask 48128
    %v88 = vsel %vm86, %v72, 0
    %v91 = vsel %vm86, %v73, 0
    %v94 = vsel %vm86, %v74, 0
    %v97 = vsel %vm86, %v75, 0
    %vm99 = vcmask 1045504
    %v101 = vsel %vm99, %v76, 0
    %103 = vmatprep.subr.mxu0 0.0
    %104 = vmatpush1.msra.mxu0 %v101
    %105 = vmatprep.subr.mxu0 0.0
    %106 = vmatpush1.msra.mxu0 0.0
    %107 = vmatprep.subr.mxu0 0.0
    %108 = vmatpush1.msra.mxu0 0.0
    %109 = vmatprep.subr.mxu0 0.0
    %110 = vmatpush1.msra.mxu0 0.0
    %111 = vmatprep.subr.mxu0 0.0
    %112 = vmatpush1.msra.mxu0 0.0
    %113 = vmatprep.subr.mxu0 0.0
    %114 = vmatpush1.msra.mxu0 0.0
    %115 = vmatprep.subr.mxu0 0.0
    %116 = vmatpush1.msra.mxu0 0.0
    %117 = vmatprep.subr.mxu0 0.0
    %118 = vmatpush1.msra.mxu0 0.0
    %119 = vmatprep.subr.mxu0 0.0
    %120 = vmatpush1.msra.mxu0 0.0
    %121 = vmatprep.subr.mxu0 0.0
    %122 = vmatpush1.msra.mxu0 0.0
    %123 = vmatprep.subr.mxu0 0.0
    %124 = vmatpush1.msra.mxu0 0.0
    %125 = vmatprep.subr.mxu0 0.0
    %126 = vmatpush1.msra.mxu0 0.0
    %127 = vmatprep.subr.mxu0 0.0
    %128 = vmatpush1.msra.mxu0 0.0
    %129 = vmatprep.subr.mxu0 0.0
    %130 = vmatpush1.msra.mxu0 0.0
    %131 = vmatprep.subr.mxu0 0.0
    %132 = vmatpush1.msra.mxu0 0.0
    %133 = vmatprep.subr.mxu0 0.0
    %134 = vmatpush1.msra.mxu0 0.0
    %135 = vmatprep.subr.mxu0 0.0
    %136 = vmatpush1.msra.mxu0 0.0
    %137 = vmatprep.subr.mxu0 0.0
    %138 = vmatpush1.msra.mxu0 0.0
    %139 = vmatprep.subr.mxu0 0.0
    %140 = vmatpush1.msra.mxu0 0.0
    %141 = vmatprep.subr.mxu0 0.0
    %142 = vmatpush1.msra.mxu0 0.0
    %143 = vmatprep.subr.mxu0 0.0
    %144 = vmatpush1.msra.mxu0 0.0
    %145 = vmatprep.subr.mxu0 0.0
    %146 = vmatpush1.msra.mxu0 0.0
    %147 = vmatprep.subr.mxu0 0.0
    %148 = vmatpush1.msra.mxu0 0.0
    %149 = vmatprep.subr.mxu0 0.0
    %150 = vmatpush1.msra.mxu0 0.0
    %151 = vmatprep.subr.mxu0 0.0
    %152 = vmatpush1.msra.mxu0 0.0
    %153 = vmatprep.subr.mxu0 0.0
    %154 = vmatpush1.msra.mxu0 0.0
    %155 = vmatprep.subr.mxu0 0.0
    %156 = vmatpush1.msra.mxu0 0.0
    %157 = vmatprep.subr.mxu0 0.0
    %158 = vmatpush1.msra.mxu0 0.0
    %159 = vmatprep.subr.mxu0 0.0
    %160 = vmatpush1.msra.mxu0 0.0
    %161 = vmatprep.subr.mxu0 0.0
    %162 = vmatpush1.msra.mxu0 0.0
    %163 = vmatprep.subr.mxu0 0.0
    %164 = vmatpush1.msra.mxu0 0.0
    %165 = vmatprep.subr.mxu0 0.0
    %166 = vmatpush1.msra.mxu0 0.0
    %167 = vmatprep.mubr.f32.mxu0 0.0
    %168 = vmatmul.mubr.f32.gmra.mrb[0].mxu0 %v88
    %v169 = vpop.f32.mrb[0].mxu0
    %v170 = vadd.f32 %v84, %v169
    %v171 = vpop.f32.mrb[0].mxu0
    %172 = vmatprep.mubr.f32.mxu0 0.0
    %173 = vmatmul.mubr.f32.gmra.mrb[0].mxu0 %v91
    %v174 = vpop.f32.mrb[0].mxu0
    %v175 = vadd.f32 %v84, %v174
    %v176 = vpop.f32.mrb[0].mxu0
    %177 = vmatprep.mubr.f32.mxu0 0.0
    %178 = vmatmul.mubr.f32.gmra.mrb[0].mxu0 %v94
    %v179 = vpop.f32.mrb[0].mxu0
    %v180 = vadd.f32 %v84, %v179
    %v181 = vpop.f32.mrb[0].mxu0
    %182 = vmatprep.mubr.f32.mxu0 0.0
    %183 = vmatmul.mubr.f32.gmra.mrb[0].mxu0 %v97
    %v184 = vpop.f32.mrb[0].mxu0
    %v185 = vadd.f32 %v84, %v184
    %v186 = vpop.f32.mrb[0].mxu0
    %187 = vdwg.mxu0
    %vm188 = vcmask 130048
    %v190 = vsel %vm188, 0.0, 0
    %192 = vmatprep.subr.mxu0 0.0
    %193 = vmatpush1.msra.mxu0 %v77
    %194 = vmatprep.subr.mxu0 0.0
    %195 = vmatpush1.msra.mxu0 %v78
    %196 = vmatprep.subr.mxu0 0.0
    %197 = vmatpush1.msra.mxu0 0.0
    %198 = vmatprep.subr.mxu0 0.0
    %199 = vmatpush1.msra.mxu0 0.0
    %200 = vmatprep.subr.mxu0 0.0
    %201 = vmatpush1.msra.mxu0 0.0
    %202 = vmatprep.subr.mxu0 0.0
    %203 = vmatpush1.msra.mxu0 0.0
    %204 = vmatprep.subr.mxu0 0.0
    %205 = vmatpush1.msra.mxu0 0.0
    %206 = vmatprep.subr.mxu0 0.0
    %207 = vmatpush1.msra.mxu0 0.0
    %208 = vmatprep.subr.mxu0 0.0
    %209 = vmatpush1.msra.mxu0 0.0
    %210 = vmatprep.subr.mxu0 0.0
    %211 = vmatpush1.msra.mxu0 0.0
    %212 = vmatprep.subr.mxu0 0.0
    %213 = vmatpush1.msra.mxu0 0.0
    %214 = vmatprep.subr.mxu0 0.0
    %215 = vmatpush1.msra.mxu0 0.0
    %216 = vmatprep.subr.mxu0 0.0
    %217 = vmatpush1.msra.mxu0 0.0
    %218 = vmatprep.subr.mxu0 0.0
    %219 = vmatpush1.msra.mxu0 0.0
    %220 = vmatprep.subr.mxu0 0.0
    %221 = vmatpush1.msra.mxu0 0.0
    %222 = vmatprep.subr.mxu0 0.0
    %223 = vmatpush1.msra.mxu0 0.0
    %224 = vmatprep.subr.mxu0 0.0
    %225 = vmatpush1.msra.mxu0 0.0
    %226 = vmatprep.subr.mxu0 0.0
    %227 = vmatpush1.msra.mxu0 0.0
    %228 = vmatprep.subr.mxu0 0.0
    %229 = vmatpush1.msra.mxu0 0.0
    %230 = vmatprep.subr.mxu0 0.0
    %231 = vmatpush1.msra.mxu0 0.0
    %232 = vmatprep.subr.mxu0 0.0
    %233 = vmatpush1.msra.mxu0 0.0
    %234 = vmatprep.subr.mxu0 0.0
    %235 = vmatpush1.msra.mxu0 0.0
    %236 = vmatprep.subr.mxu0 0.0
    %237 = vmatpush1.msra.mxu0 0.0
    %238 = vmatprep.subr.mxu0 0.0
    %239 = vmatpush1.msra.mxu0 0.0
    %240 = vmatprep.subr.mxu0 0.0
    %241 = vmatpush1.msra.mxu0 0.0
    %242 = vmatprep.subr.mxu0 0.0
    %243 = vmatpush1.msra.mxu0 0.0
    %244 = vmatprep.subr.mxu0 0.0
    %245 = vmatpush1.msra.mxu0 0.0
    %246 = vmatprep.subr.mxu0 0.0
    %247 = vmatpush1.msra.mxu0 0.0
    %248 = vmatprep.subr.mxu0 0.0
    %249 = vmatpush1.msra.mxu0 0.0
    %250 = vmatprep.subr.mxu0 0.0
    %251 = vmatpush1.msra.mxu0 0.0
    %252 = vmatprep.subr.mxu0 0.0
    %253 = vmatpush1.msra.mxu0 0.0
    %254 = vmatprep.subr.mxu0 0.0
    %255 = vmatpush1.msra.mxu0 0.0
    %256 = vmatprep.mubr.f32.mxu0 0.0
    %257 = vmatmul.mubr.f32.gmra.mrb[0].mxu0 %v190
    %v258 = vpop.f32.mrb[0].mxu0
    %v259 = vadd.f32 0.0, %v258
    %v260 = vpop.f32.mrb[0].mxu0
    %261 = vdwg.mxu0
    %v262 = vadd.f32 %v170, %v259
    %v263 = vxor.u32 %v262, 2147483648
    %v264 = vmul.f32 %v263, 1.442695
    %v265 = vpow.pop %v264
    %v266 = vadd.f32 %v265, 1.0
    %v267 = vrcp.pop %v266
    %v268 = vmul.f32 1.0, %v267
    %v269 = vtanh.pop %v262
    %v270 = vmul.f32 %v268, 0.0
    %272 = vrot.lane.b32.xlu0 %v269, 80
    %v273 = vpop.permute.xlu0 %272
    %v275 = vmul.f32 %v268, %v273
    %277 = vrot.lane.b32.xlu0 %v275, 16
    %v278 = vpop.permute.xlu0 %277
    %v280 = vadd.f32 %v270, %v278
    %v281 = vtanh.pop %v280
    %283 = vrot.lane.b32.xlu0 %v281, 16
    %v284 = vpop.permute.xlu0 %283
    %v286 = vmul.f32 %v268, %v284
    %288 = vrot.lane.b32.xlu0 %v286, 96
    %v289 = vpop.permute.xlu0 %288
    %v290 = vsel %vm188, %v289, 0
    %292 = vmatprep.subr.mxu0 0.0
    %293 = vmatpush1.msra.mxu0 %v77
    %294 = vmatprep.subr.mxu0 0.0
    %295 = vmatpush1.msra.mxu0 %v78
    %296 = vmatprep.subr.mxu0 0.0
    %297 = vmatpush1.msra.mxu0 0.0
    %298 = vmatprep.subr.mxu0 0.0
    %299 = vmatpush1.msra.mxu0 0.0
    %300 = vmatprep.subr.mxu0 0.0
    %301 = vmatpush1.msra.mxu0 0.0
    %302 = vmatprep.subr.mxu0 0.0
    %303 = vmatpush1.msra.mxu0 0.0
    %304 = vmatprep.subr.mxu0 0.0
    %305 = vmatpush1.msra.mxu0 0.0
    %306 = vmatprep.subr.mxu0 0.0
    %307 = vmatpush1.msra.mxu0 0.0
    %308 = vmatprep.subr.mxu0 0.0
    %309 = vmatpush1.msra.mxu0 0.0
    %310 = vmatprep.subr.mxu0 0.0
    %311 = vmatpush1.msra.mxu0 0.0
    %312 = vmatprep.subr.mxu0 0.0
    %313 = vmatpush1.msra.mxu0 0.0
    %314 = vmatprep.subr.mxu0 0.0
    %315 = vmatpush1.msra.mxu0 0.0
    %316 = vmatprep.subr.mxu0 0.0
    %317 = vmatpush1.msra.mxu0 0.0
    %318 = vmatprep.subr.mxu0 0.0
    %319 = vmatpush1.msra.mxu0 0.0
    %320 = vmatprep.subr.mxu0 0.0
    %321 = vmatpush1.msra.mxu0 0.0
    %322 = vmatprep.subr.mxu0 0.0
    %323 = vmatpush1.msra.mxu0 0.0
    %324 = vmatprep.subr.mxu0 0.0
    %325 = vmatpush1.msra.mxu0 0.0
    %326 = vmatprep.subr.mxu0 0.0
    %327 = vmatpush1.msra.mxu0 0.0
    %328 = vmatprep.subr.mxu0 0.0
    %329 = vmatpush1.msra.mxu0 0.0
    %330 = vmatprep.subr.mxu0 0.0
    %331 = vmatpush1.msra.mxu0 0.0
    %332 = vmatprep.subr.mxu0 0.0
    %333 = vmatpush1.msra.mxu0 0.0
    %334 = vmatprep.subr.mxu0 0.0
    %335 = vmatpush1.msra.mxu0 0.0
    %336 = vmatprep.subr.mxu0 0.0
    %337 = vmatpush1.msra.mxu0 0.0
    %338 = vmatprep.subr.mxu0 0.0
    %339 = vmatpush1.msra.mxu0 0.0
    %340 = vmatprep.subr.mxu0 0.0
    %341 = vmatpush1.msra.mxu0 0.0
    %342 = vmatprep.subr.mxu0 0.0
    %343 = vmatpush1.msra.mxu0 0.0
    %344 = vmatprep.subr.mxu0 0.0
    %345 = vmatpush1.msra.mxu0 0.0
    %346 = vmatprep.subr.mxu0 0.0
    %347 = vmatpush1.msra.mxu0 0.0
    %348 = vmatprep.subr.mxu0 0.0
    %349 = vmatpush1.msra.mxu0 0.0
    %350 = vmatprep.subr.mxu0 0.0
    %351 = vmatpush1.msra.mxu0 0.0
    %352 = vmatprep.subr.mxu0 0.0
    %353 = vmatpush1.msra.mxu0 0.0
    %354 = vmatprep.subr.mxu0 0.0
    %355 = vmatpush1.msra.mxu0 0.0
    %356 = vmatprep.mubr.f32.mxu0 0.0
    %357 = vmatmul.mubr.f32.gmra.mrb[0].mxu0 %v290
    %v358 = vpop.f32.mrb[0].mxu0
    %v359 = vadd.f32 0.0, %v358
    %v360 = vpop.f32.mrb[0].mxu0
    %361 = vdwg.mxu0
    %v362 = vadd.f32 %v175, %v359
    %v363 = vxor.u32 %v362, 2147483648
    %v364 = vmul.f32 %v363, 1.442695
    %v365 = vpow.pop %v364
    %v366 = vadd.f32 %v365, 1.0
    %v367 = vrcp.pop %v366
    %v368 = vmul.f32 1.0, %v367
    %v369 = vtanh.pop %v362
    %v370 = vmul.f32 %v368, %v280
    %372 = vrot.lane.b32.xlu0 %v369, 80
    %v373 = vpop.permute.xlu0 %372
    %v375 = vmul.f32 %v368, %v373
    %377 = vrot.lane.b32.xlu0 %v375, 16
    %v378 = vpop.permute.xlu0 %377
    %v380 = vadd.f32 %v370, %v378
    %v381 = vtanh.pop %v380
    %383 = vrot.lane.b32.xlu0 %v381, 16
    %v384 = vpop.permute.xlu0 %383
    %v386 = vmul.f32 %v368, %v384
    %388 = vrot.lane.b32.xlu0 %v386, 96
    %v389 = vpop.permute.xlu0 %388
    %v390 = vsel %vm188, %v389, 0
    %392 = vmatprep.subr.mxu0 0.0
    %393 = vmatpush1.msra.mxu0 %v77
    %394 = vmatprep.subr.mxu0 0.0
    %395 = vmatpush1.msra.mxu0 %v78
    %396 = vmatprep.subr.mxu0 0.0
    %397 = vmatpush1.msra.mxu0 0.0
    %398 = vmatprep.subr.mxu0 0.0
    %399 = vmatpush1.msra.mxu0 0.0
    %400 = vmatprep.subr.mxu0 0.0
    %401 = vmatpush1.msra.mxu0 0.0
    %402 = vmatprep.subr.mxu0 0.0
    %403 = vmatpush1.msra.mxu0 0.0
    %404 = vmatprep.subr.mxu0 0.0
    %405 = vmatpush1.msra.mxu0 0.0
    %406 = vmatprep.subr.mxu0 0.0
    %407 = vmatpush1.msra.mxu0 0.0
    %408 = vmatprep.subr.mxu0 0.0
    %409 = vmatpush1.msra.mxu0 0.0
    %410 = vmatprep.subr.mxu0 0.0
    %411 = vmatpush1.msra.mxu0 0.0
    %412 = vmatprep.subr.mxu0 0.0
    %413 = vmatpush1.msra.mxu0 0.0
    %414 = vmatprep.subr.mxu0 0.0
    %415 = vmatpush1.msra.mxu0 0.0
    %416 = vmatprep.subr.mxu0 0.0
    %417 = vmatpush1.msra.mxu0 0.0
    %418 = vmatprep.subr.mxu0 0.0
    %419 = vmatpush1.msra.mxu0 0.0
    %420 = vmatprep.subr.mxu0 0.0
    %421 = vmatpush1.msra.mxu0 0.0
    %422 = vmatprep.subr.mxu0 0.0
    %423 = vmatpush1.msra.mxu0 0.0
    %424 = vmatprep.subr.mxu0 0.0
    %425 = vmatpush1.msra.mxu0 0.0
    %426 = vmatprep.subr.mxu0 0.0
    %427 = vmatpush1.msra.mxu0 0.0
    %428 = vmatprep.subr.mxu0 0.0
    %429 = vmatpush1.msra.mxu0 0.0
    %430 = vmatprep.subr.mxu0 0.0
    %431 = vmatpush1.msra.mxu0 0.0
    %432 = vmatprep.subr.mxu0 0.0
    %433 = vmatpush1.msra.mxu0 0.0
    %434 = vmatprep.subr.mxu0 0.0
    %435 = vmatpush1.msra.mxu0 0.0
    %436 = vmatprep.subr.mxu0 0.0
    %437 = vmatpush1.msra.mxu0 0.0
    %438 = vmatprep.subr.mxu0 0.0
    %439 = vmatpush1.msra.mxu0 0.0
    %440 = vmatprep.subr.mxu0 0.0
    %441 = vmatpush1.msra.mxu0 0.0
    %442 = vmatprep.subr.mxu0 0.0
    %443 = vmatpush1.msra.mxu0 0.0
    %444 = vmatprep.subr.mxu0 0.0
    %445 = vmatpush1.msra.mxu0 0.0
    %446 = vmatprep.subr.mxu0 0.0
    %447 = vmatpush1.msra.mxu0 0.0
    %448 = vmatprep.subr.mxu0 0.0
    %449 = vmatpush1.msra.mxu0 0.0
    %450 = vmatprep.subr.mxu0 0.0
    %451 = vmatpush1.msra.mxu0 0.0
    %452 = vmatprep.subr.mxu0 0.0
    %453 = vmatpush1.msra.mxu0 0.0
    %454 = vmatprep.subr.mxu0 0.0
    %455 = vmatpush1.msra.mxu0 0.0
    %456 = vmatprep.mubr.f32.mxu0 0.0
    %457 = vmatmul.mubr.f32.gmra.mrb[0].mxu0 %v390
    %v458 = vpop.f32.mrb[0].mxu0
    %v459 = vadd.f32 0.0, %v458
    %v460 = vpop.f32.mrb[0].mxu0
    %461 = vdwg.mxu0
    %v462 = vadd.f32 %v180, %v459
    %v463 = vxor.u32 %v462, 2147483648
    %v464 = vmul.f32 %v463, 1.442695
    %v465 = vpow.pop %v464
    %v466 = vadd.f32 %v465, 1.0
    %v467 = vrcp.pop %v466
    %v468 = vmul.f32 1.0, %v467
    %v469 = vtanh.pop %v462
    %v470 = vmul.f32 %v468, %v380
    %472 = vrot.lane.b32.xlu0 %v469, 80
    %v473 = vpop.permute.xlu0 %472
    %v475 = vmul.f32 %v468, %v473
    %477 = vrot.lane.b32.xlu0 %v475, 16
    %v478 = vpop.permute.xlu0 %477
    %v480 = vadd.f32 %v470, %v478
    %v481 = vtanh.pop %v480
    %483 = vrot.lane.b32.xlu0 %v481, 16
    %v484 = vpop.permute.xlu0 %483
    %v486 = vmul.f32 %v468, %v484
    %488 = vrot.lane.b32.xlu0 %v486, 96
    %v489 = vpop.permute.xlu0 %488
    %v490 = vsel %vm188, %v489, 0
    %492 = vmatprep.subr.mxu0 0.0
    %493 = vmatpush1.msra.mxu0 %v77
    %494 = vmatprep.subr.mxu0 0.0
    %495 = vmatpush1.msra.mxu0 %v78
    %496 = vmatprep.subr.mxu0 0.0
    %497 = vmatpush1.msra.mxu0 0.0
    %498 = vmatprep.subr.mxu0 0.0
    %499 = vmatpush1.msra.mxu0 0.0
    %500 = vmatprep.subr.mxu0 0.0
    %501 = vmatpush1.msra.mxu0 0.0
    %502 = vmatprep.subr.mxu0 0.0
    %503 = vmatpush1.msra.mxu0 0.0
    %504 = vmatprep.subr.mxu0 0.0
    %505 = vmatpush1.msra.mxu0 0.0
    %506 = vmatprep.subr.mxu0 0.0
    %507 = vmatpush1.msra.mxu0 0.0
    %508 = vmatprep.subr.mxu0 0.0
    %509 = vmatpush1.msra.mxu0 0.0
    %510 = vmatprep.subr.mxu0 0.0
    %511 = vmatpush1.msra.mxu0 0.0
    %512 = vmatprep.subr.mxu0 0.0
    %513 = vmatpush1.msra.mxu0 0.0
    %514 = vmatprep.subr.mxu0 0.0
    %515 = vmatpush1.msra.mxu0 0.0
    %516 = vmatprep.subr.mxu0 0.0
    %517 = vmatpush1.msra.mxu0 0.0
    %518 = vmatprep.subr.mxu0 0.0
    %519 = vmatpush1.msra.mxu0 0.0
    %520 = vmatprep.subr.mxu0 0.0
    %521 = vmatpush1.msra.mxu0 0.0
    %522 = vmatprep.subr.mxu0 0.0
    %523 = vmatpush1.msra.mxu0 0.0
    %524 = vmatprep.subr.mxu0 0.0
    %525 = vmatpush1.msra.mxu0 0.0
    %526 = vmatprep.subr.mxu0 0.0
    %527 = vmatpush1.msra.mxu0 0.0
    %528 = vmatprep.subr.mxu0 0.0
    %529 = vmatpush1.msra.mxu0 0.0
    %530 = vmatprep.subr.mxu0 0.0
    %531 = vmatpush1.msra.mxu0 0.0
    %532 = vmatprep.subr.mxu0 0.0
    %533 = vmatpush1.msra.mxu0 0.0
    %534 = vmatprep.subr.mxu0 0.0
    %535 = vmatpush1.msra.mxu0 0.0
    %536 = vmatprep.subr.mxu0 0.0
    %537 = vmatpush1.msra.mxu0 0.0
    %538 = vmatprep.subr.mxu0 0.0
    %539 = vmatpush1.msra.mxu0 0.0
    %540 = vmatprep.subr.mxu0 0.0
    %541 = vmatpush1.msra.mxu0 0.0
    %542 = vmatprep.subr.mxu0 0.0
    %543 = vmatpush1.msra.mxu0 0.0
    %544 = vmatprep.subr.mxu0 0.0
    %545 = vmatpush1.msra.mxu0 0.0
    %546 = vmatprep.subr.mxu0 0.0
    %547 = vmatpush1.msra.mxu0 0.0
    %548 = vmatprep.subr.mxu0 0.0
    %549 = vmatpush1.msra.mxu0 0.0
    %550 = vmatprep.subr.mxu0 0.0
    %551 = vmatpush1.msra.mxu0 0.0
    %552 = vmatprep.subr.mxu0 0.0
    %553 = vmatpush1.msra.mxu0 0.0
    %554 = vmatprep.subr.mxu0 0.0
    %555 = vmatpush1.msra.mxu0 0.0
    %556 = vmatprep.mubr.f32.mxu0 0.0
    %557 = vmatmul.mubr.f32.gmra.mrb[0].mxu0 %v490
    %v558 = vpop.f32.mrb[0].mxu0
    %v559 = vadd.f32 0.0, %v558
    %v560 = vpop.f32.mrb[0].mxu0
    %561 = vdwg.mxu0
    %v562 = vadd.f32 %v185, %v559
    %v563 = vxor.u32 %v562, 2147483648
    %v564 = vmul.f32 %v563, 1.442695
    %v565 = vpow.pop %v564
    %v566 = vadd.f32 %v565, 1.0
    %v567 = vrcp.pop %v566
    %v568 = vmul.f32 1.0, %v567
    %v569 = vtanh.pop %v562
    %v570 = vmul.f32 %v568, %v480
    %572 = vrot.lane.b32.xlu0 %v569, 80
    %v573 = vpop.permute.xlu0 %572
    %v575 = vmul.f32 %v568, %v573
    %577 = vrot.lane.b32.xlu0 %v575, 16
    %v578 = vpop.permute.xlu0 %577
    %v580 = vadd.f32 %v570, %v578
    %v581 = vtanh.pop %v580
    %583 = vrot.lane.b32.xlu0 %v581, 16
    %v584 = vpop.permute.xlu0 %583
    %v586 = vmul.f32 %v568, %v584
    %v587 = vld [vmem:[%s3] sm:$0xff]
    %v588 = vld [vmem:[%s3 + $0x8] sm:$0xff]
    %v589 = vld [vmem:[%s4] sm:$0xff]
    %v590 = vld [vmem:[%s4 + $0x8] sm:$0xff]
    %592 = vrot.lane.b32.xlu0 %v586, 96
    %v593 = vpop.permute.xlu0 %592
    %594 = vrot.lane.b32.xlu0 %v84, 64
    %v595 = vpop.permute.xlu0 %594
    %v597 = vsel %vm188, %v593, 0
    %599 = vmatprep.subr.mxu0 0.0
    %600 = vmatpush1.msra.mxu0 %v587
    %601 = vmatprep.subr.mxu0 0.0
    %602 = vmatpush1.msra.mxu0 %v588
    %603 = vmatprep.subr.mxu0 0.0
    %604 = vmatpush1.msra.mxu0 0.0
    %605 = vmatprep.subr.mxu0 0.0
    %606 = vmatpush1.msra.mxu0 0.0
    %607 = vmatprep.subr.mxu0 0.0
    %608 = vmatpush1.msra.mxu0 0.0
    %609 = vmatprep.subr.mxu0 0.0
    %610 = vmatpush1.msra.mxu0 0.0
    %611 = vmatprep.subr.mxu0 0.0
    %612 = vmatpush1.msra.mxu0 0.0
    %613 = vmatprep.subr.mxu0 0.0
    %614 = vmatpush1.msra.mxu0 0.0
    %615 = vmatprep.subr.mxu0 0.0
    %616 = vmatpush1.msra.mxu0 0.0
    %617 = vmatprep.subr.mxu0 0.0
    %618 = vmatpush1.msra.mxu0 0.0
    %619 = vmatprep.subr.mxu0 0.0
    %620 = vmatpush1.msra.mxu0 0.0
    %621 = vmatprep.subr.mxu0 0.0
    %622 = vmatpush1.msra.mxu0 0.0
    %623 = vmatprep.subr.mxu0 0.0
    %624 = vmatpush1.msra.mxu0 0.0
    %625 = vmatprep.subr.mxu0 0.0
    %626 = vmatpush1.msra.mxu0 0.0
    %627 = vmatprep.subr.mxu0 0.0
    %628 = vmatpush1.msra.mxu0 0.0
    %629 = vmatprep.subr.mxu0 0.0
    %630 = vmatpush1.msra.mxu0 0.0
    %631 = vmatprep.subr.mxu0 0.0
    %632 = vmatpush1.msra.mxu0 0.0
    %633 = vmatprep.subr.mxu0 0.0
    %634 = vmatpush1.msra.mxu0 0.0
    %635 = vmatprep.subr.mxu0 0.0
    %636 = vmatpush1.msra.mxu0 0.0
    %637 = vmatprep.subr.mxu0 0.0
    %638 = vmatpush1.msra.mxu0 0.0
    %639 = vmatprep.subr.mxu0 0.0
    %640 = vmatpush1.msra.mxu0 0.0
    %641 = vmatprep.subr.mxu0 0.0
    %642 = vmatpush1.msra.mxu0 0.0
    %643 = vmatprep.subr.mxu0 0.0
    %644 = vmatpush1.msra.mxu0 0.0
    %645 = vmatprep.subr.mxu0 0.0
    %646 = vmatpush1.msra.mxu0 0.0
    %647 = vmatprep.subr.mxu0 0.0
    %648 = vmatpush1.msra.mxu0 0.0
    %649 = vmatprep.subr.mxu0 0.0
    %650 = vmatpush1.msra.mxu0 0.0
    %651 = vmatprep.subr.mxu0 0.0
    %652 = vmatpush1.msra.mxu0 0.0
    %653 = vmatprep.subr.mxu0 0.0
    %654 = vmatpush1.msra.mxu0 0.0
    %655 = vmatprep.subr.mxu0 0.0
    %656 = vmatpush1.msra.mxu0 0.0
    %657 = vmatprep.subr.mxu0 0.0
    %658 = vmatpush1.msra.mxu0 0.0
    %659 = vmatprep.subr.mxu0 0.0
    %660 = vmatpush1.msra.mxu0 0.0
    %661 = vmatprep.subr.mxu0 0.0
    %662 = vmatpush1.msra.mxu0 0.0
    %663 = vmatprep.mubr.f32.mxu0 0.0
    %664 = vmatmul.mubr.f32.gmra.mrb[0].mxu0 %v290
    %v665 = vpop.f32.mrb[0].mxu0
    %v666 = vadd.f32 %v595, %v665
    %v667 = vpop.f32.mrb[0].mxu0
    %668 = vmatprep.mubr.f32.mxu0 0.0
    %669 = vmatmul.mubr.f32.gmra.mrb[0].mxu0 %v390
    %v670 = vpop.f32.mrb[0].mxu0
    %v671 = vadd.f32 %v595, %v670
    %v672 = vpop.f32.mrb[0].mxu0
    %673 = vmatprep.mubr.f32.mxu0 0.0
    %674 = vmatmul.mubr.f32.gmra.mrb[0].mxu0 %v490
    %v675 = vpop.f32.mrb[0].mxu0
    %v676 = vadd.f32 %v595, %v675
    %v677 = vpop.f32.mrb[0].mxu0
    %678 = vmatprep.mubr.f32.mxu0 0.0
    %679 = vmatmul.mubr.f32.gmra.mrb[0].mxu0 %v597
    %v680 = vpop.f32.mrb[0].mxu0
    %v681 = vadd.f32 %v595, %v680
    %v682 = vpop.f32.mrb[0].mxu0
    %683 = vdwg.mxu0
    %684 = vmatprep.subr.mxu0 0.0
    %685 = vmatpush1.msra.mxu0 %v589
    %686 = vmatprep.subr.mxu0 0.0
    %687 = vmatpush1.msra.mxu0 %v590
    %688 = vmatprep.subr.mxu0 0.0
    %689 = vmatpush1.msra.mxu0 0.0
    %690 = vmatprep.subr.mxu0 0.0
    %691 = vmatpush1.msra.mxu0 0.0
    %692 = vmatprep.subr.mxu0 0.0
    %693 = vmatpush1.msra.mxu0 0.0
    %694 = vmatprep.subr.mxu0 0.0
    %695 = vmatpush1.msra.mxu0 0.0
    %696 = vmatprep.subr.mxu0 0.0
    %697 = vmatpush1.msra.mxu0 0.0
    %698 = vmatprep.subr.mxu0 0.0
    %699 = vmatpush1.msra.mxu0 0.0
    %700 = vmatprep.subr.mxu0 0.0
    %701 = vmatpush1.msra.mxu0 0.0
    %702 = vmatprep.subr.mxu0 0.0
    %703 = vmatpush1.msra.mxu0 0.0
    %704 = vmatprep.subr.mxu0 0.0
    %705 = vmatpush1.msra.mxu0 0.0
    %706 = vmatprep.subr.mxu0 0.0
    %707 = vmatpush1.msra.mxu0 0.0
    %708 = vmatprep.subr.mxu0 0.0
    %709 = vmatpush1.msra.mxu0 0.0
    %710 = vmatprep.subr.mxu0 0.0
    %711 = vmatpush1.msra.mxu0 0.0
    %712 = vmatprep.subr.mxu0 0.0
    %713 = vmatpush1.msra.mxu0 0.0
    %714 = vmatprep.subr.mxu0 0.0
    %715 = vmatpush1.msra.mxu0 0.0
    %716 = vmatprep.subr.mxu0 0.0
    %717 = vmatpush1.msra.mxu0 0.0
    %718 = vmatprep.subr.mxu0 0.0
    %719 = vmatpush1.msra.mxu0 0.0
    %720 = vmatprep.subr.mxu0 0.0
    %721 = vmatpush1.msra.mxu0 0.0
    %722 = vmatprep.subr.mxu0 0.0
    %723 = vmatpush1.msra.mxu0 0.0
    %724 = vmatprep.subr.mxu0 0.0
    %725 = vmatpush1.msra.mxu0 0.0
    %726 = vmatprep.subr.mxu0 0.0
    %727 = vmatpush1.msra.mxu0 0.0
    %728 = vmatprep.subr.mxu0 0.0
    %729 = vmatpush1.msra.mxu0 0.0
    %730 = vmatprep.subr.mxu0 0.0
    %731 = vmatpush1.msra.mxu0 0.0
    %732 = vmatprep.subr.mxu0 0.0
    %733 = vmatpush1.msra.mxu0 0.0
    %734 = vmatprep.subr.mxu0 0.0
    %735 = vmatpush1.msra.mxu0 0.0
    %736 = vmatprep.subr.mxu0 0.0
    %737 = vmatpush1.msra.mxu0 0.0
    %738 = vmatprep.subr.mxu0 0.0
    %739 = vmatpush1.msra.mxu0 0.0
    %740 = vmatprep.subr.mxu0 0.0
    %741 = vmatpush1.msra.mxu0 0.0
    %742 = vmatprep.subr.mxu0 0.0
    %743 = vmatpush1.msra.mxu0 0.0
    %744 = vmatprep.subr.mxu0 0.0
    %745 = vmatpush1.msra.mxu0 0.0
    %746 = vmatprep.subr.mxu0 0.0
    %747 = vmatpush1.msra.mxu0 0.0
    %748 = vmatprep.mubr.f32.mxu0 0.0
    %749 = vmatmul.mubr.f32.gmra.mrb[0].mxu0 %v190
    %v750 = vpop.f32.mrb[0].mxu0
    %v751 = vadd.f32 0.0, %v750
    %v752 = vpop.f32.mrb[0].mxu0
    %753 = vdwg.mxu0
    %v754 = vadd.f32 %v666, %v751
    %v755 = vxor.u32 %v754, 2147483648
    %v756 = vmul.f32 %v755, 1.442695
    %v757 = vpow.pop %v756
    %v758 = vadd.f32 %v757, 1.0
    %v759 = vrcp.pop %v758
    %v760 = vmul.f32 1.0, %v759
    %v761 = vtanh.pop %v754
    %v762 = vmul.f32 %v760, 0.0
    %764 = vrot.lane.b32.xlu0 %v761, 80
    %v765 = vpop.permute.xlu0 %764
    %v767 = vmul.f32 %v760, %v765
    %769 = vrot.lane.b32.xlu0 %v767, 16
    %v770 = vpop.permute.xlu0 %769
    %v772 = vadd.f32 %v762, %v770
    %v773 = vtanh.pop %v772
    %775 = vrot.lane.b32.xlu0 %v773, 16
    %v776 = vpop.permute.xlu0 %775
    %v778 = vmul.f32 %v760, %v776
    %780 = vrot.lane.b32.xlu0 %v778, 96
    %v781 = vpop.permute.xlu0 %780
    %v782 = vsel %vm188, %v781, 0
    %784 = vmatprep.subr.mxu0 0.0
    %785 = vmatpush1.msra.mxu0 %v589
    %786 = vmatprep.subr.mxu0 0.0
    %787 = vmatpush1.msra.mxu0 %v590
    %788 = vmatprep.subr.mxu0 0.0
    %789 = vmatpush1.msra.mxu0 0.0
    %790 = vmatprep.subr.mxu0 0.0
    %791 = vmatpush1.msra.mxu0 0.0
    %792 = vmatprep.subr.mxu0 0.0
    %793 = vmatpush1.msra.mxu0 0.0
    %794 = vmatprep.subr.mxu0 0.0
    %795 = vmatpush1.msra.mxu0 0.0
    %796 = vmatprep.subr.mxu0 0.0
    %797 = vmatpush1.msra.mxu0 0.0
    %798 = vmatprep.subr.mxu0 0.0
    %799 = vmatpush1.msra.mxu0 0.0
    %800 = vmatprep.subr.mxu0 0.0
    %801 = vmatpush1.msra.mxu0 0.0
    %802 = vmatprep.subr.mxu0 0.0
    %803 = vmatpush1.msra.mxu0 0.0
    %804 = vmatprep.subr.mxu0 0.0
    %805 = vmatpush1.msra.mxu0 0.0
    %806 = vmatprep.subr.mxu0 0.0
    %807 = vmatpush1.msra.mxu0 0.0
    %808 = vmatprep.subr.mxu0 0.0
    %809 = vmatpush1.msra.mxu0 0.0
    %810 = vmatprep.subr.mxu0 0.0
    %811 = vmatpush1.msra.mxu0 0.0
    %812 = vmatprep.subr.mxu0 0.0
    %813 = vmatpush1.msra.mxu0 0.0
    %814 = vmatprep.subr.mxu0 0.0
    %815 = vmatpush1.msra.mxu0 0.0
    %816 = vmatprep.subr.mxu0 0.0
    %817 = vmatpush1.msra.mxu0 0.0
    %818 = vmatprep.subr.mxu0 0.0
    %819 = vmatpush1.msra.mxu0 0.0
    %820 = vmatprep.subr.mxu0 0.0
    %821 = vmatpush1.msra.mxu0 0.0
    %822 = vmatprep.subr.mxu0 0.0
    %823 = vmatpush1.msra.mxu0 0.0
    %824 = vmatprep.subr.mxu0 0.0
    %825 = vmatpush1.msra.mxu0 0.0
    %826 = vmatprep.subr.mxu0 0.0
    %827 = vmatpush1.msra.mxu0 0.0
    %828 = vmatprep.subr.mxu0 0.0
    %829 = vmatpush1.msra.mxu0 0.0
    %830 = vmatprep.subr.mxu0 0.0
    %831 = vmatpush1.msra.mxu0 0.0
    %832 = vmatprep.subr.mxu0 0.0
    %833 = vmatpush1.msra.mxu0 0.0
    %834 = vmatprep.subr.mxu0 0.0
    %835 = vmatpush1.msra.mxu0 0.0
    %836 = vmatprep.subr.mxu0 0.0
    %837 = vmatpush1.msra.mxu0 0.0
    %838 = vmatprep.subr.mxu0 0.0
    %839 = vmatpush1.msra.mxu0 0.0
    %840 = vmatprep.subr.mxu0 0.0
    %841 = vmatpush1.msra.mxu0 0.0
    %842 = vmatprep.subr.mxu0 0.0
    %843 = vmatpush1.msra.mxu0 0.0
    %844 = vmatprep.subr.mxu0 0.0
    %845 = vmatpush1.msra.mxu0 0.0
    %846 = vmatprep.subr.mxu0 0.0
    %847 = vmatpush1.msra.mxu0 0.0
    %848 = vmatprep.mubr.f32.mxu0 0.0
    %849 = vmatmul.mubr.f32.gmra.mrb[0].mxu0 %v782
    %v850 = vpop.f32.mrb[0].mxu0
    %v851 = vadd.f32 0.0, %v850
    %v852 = vpop.f32.mrb[0].mxu0
    %853 = vdwg.mxu0
    %v854 = vadd.f32 %v671, %v851
    %v855 = vxor.u32 %v854, 2147483648
    %v856 = vmul.f32 %v855, 1.442695
    %v857 = vpow.pop %v856
    %v858 = vadd.f32 %v857, 1.0
    %v859 = vrcp.pop %v858
    %v860 = vmul.f32 1.0, %v859
    %v861 = vtanh.pop %v854
    %v862 = vmul.f32 %v860, %v772
    %864 = vrot.lane.b32.xlu0 %v861, 80
    %v865 = vpop.permute.xlu0 %864
    %v867 = vmul.f32 %v860, %v865
    %869 = vrot.lane.b32.xlu0 %v867, 16
    %v870 = vpop.permute.xlu0 %869
    %v872 = vadd.f32 %v862, %v870
    %v873 = vtanh.pop %v872
    %875 = vrot.lane.b32.xlu0 %v873, 16
    %v876 = vpop.permute.xlu0 %875
    %v878 = vmul.f32 %v860, %v876
    %880 = vrot.lane.b32.xlu0 %v878, 96
    %v881 = vpop.permute.xlu0 %880
    %v882 = vsel %vm188, %v881, 0
    %884 = vmatprep.subr.mxu0 0.0
    %885 = vmatpush1.msra.mxu0 %v589
    %886 = vmatprep.subr.mxu0 0.0
    %887 = vmatpush1.msra.mxu0 %v590
    %888 = vmatprep.subr.mxu0 0.0
    %889 = vmatpush1.msra.mxu0 0.0
    %890 = vmatprep.subr.mxu0 0.0
    %891 = vmatpush1.msra.mxu0 0.0
    %892 = vmatprep.subr.mxu0 0.0
    %893 = vmatpush1.msra.mxu0 0.0
    %894 = vmatprep.subr.mxu0 0.0
    %895 = vmatpush1.msra.mxu0 0.0
    %896 = vmatprep.subr.mxu0 0.0
    %897 = vmatpush1.msra.mxu0 0.0
    %898 = vmatprep.subr.mxu0 0.0
    %899 = vmatpush1.msra.mxu0 0.0
    %900 = vmatprep.subr.mxu0 0.0
    %901 = vmatpush1.msra.mxu0 0.0
    %902 = vmatprep.subr.mxu0 0.0
    %903 = vmatpush1.msra.mxu0 0.0
    %904 = vmatprep.subr.mxu0 0.0
    %905 = vmatpush1.msra.mxu0 0.0
    %906 = vmatprep.subr.mxu0 0.0
    %907 = vmatpush1.msra.mxu0 0.0
    %908 = vmatprep.subr.mxu0 0.0
    %909 = vmatpush1.msra.mxu0 0.0
    %910 = vmatprep.subr.mxu0 0.0
    %911 = vmatpush1.msra.mxu0 0.0
    %912 = vmatprep.subr.mxu0 0.0
    %913 = vmatpush1.msra.mxu0 0.0
    %914 = vmatprep.subr.mxu0 0.0
    %915 = vmatpush1.msra.mxu0 0.0
    %916 = vmatprep.subr.mxu0 0.0
    %917 = vmatpush1.msra.mxu0 0.0
    %918 = vmatprep.subr.mxu0 0.0
    %919 = vmatpush1.msra.mxu0 0.0
    %920 = vmatprep.subr.mxu0 0.0
    %921 = vmatpush1.msra.mxu0 0.0
    %922 = vmatprep.subr.mxu0 0.0
    %923 = vmatpush1.msra.mxu0 0.0
    %924 = vmatprep.subr.mxu0 0.0
    %925 = vmatpush1.msra.mxu0 0.0
    %926 = vmatprep.subr.mxu0 0.0
    %927 = vmatpush1.msra.mxu0 0.0
    %928 = vmatprep.subr.mxu0 0.0
    %929 = vmatpush1.msra.mxu0 0.0
    %930 = vmatprep.subr.mxu0 0.0
    %931 = vmatpush1.msra.mxu0 0.0
    %932 = vmatprep.subr.mxu0 0.0
    %933 = vmatpush1.msra.mxu0 0.0
    %934 = vmatprep.subr.mxu0 0.0
    %935 = vmatpush1.msra.mxu0 0.0
    %936 = vmatprep.subr.mxu0 0.0
    %937 = vmatpush1.msra.mxu0 0.0
    %938 = vmatprep.subr.mxu0 0.0
    %939 = vmatpush1.msra.mxu0 0.0
    %940 = vmatprep.subr.mxu0 0.0
    %941 = vmatpush1.msra.mxu0 0.0
    %942 = vmatprep.subr.mxu0 0.0
    %943 = vmatpush1.msra.mxu0 0.0
    %944 = vmatprep.subr.mxu0 0.0
    %945 = vmatpush1.msra.mxu0 0.0
    %946 = vmatprep.subr.mxu0 0.0
    %947 = vmatpush1.msra.mxu0 0.0
    %948 = vmatprep.mubr.f32.mxu0 0.0
    %949 = vmatmul.mubr.f32.gmra.mrb[0].mxu0 %v882
    %v950 = vpop.f32.mrb[0].mxu0
    %v951 = vadd.f32 0.0, %v950
    %v952 = vpop.f32.mrb[0].mxu0
    %953 = vdwg.mxu0
    %v954 = vadd.f32 %v676, %v951
    %v955 = vxor.u32 %v954, 2147483648
    %v956 = vmul.f32 %v955, 1.442695
    %v957 = vpow.pop %v956
    %v958 = vadd.f32 %v957, 1.0
    %v959 = vrcp.pop %v958
    %v960 = vmul.f32 1.0, %v959
    %v961 = vtanh.pop %v954
    %v962 = vmul.f32 %v960, %v872
    %964 = vrot.lane.b32.xlu0 %v961, 80
    %v965 = vpop.permute.xlu0 %964
    %v967 = vmul.f32 %v960, %v965
    %969 = vrot.lane.b32.xlu0 %v967, 16
    %v970 = vpop.permute.xlu0 %969
    %v972 = vadd.f32 %v962, %v970
    %v973 = vtanh.pop %v972
    %975 = vrot.lane.b32.xlu0 %v973, 16
    %v976 = vpop.permute.xlu0 %975
    %v978 = vmul.f32 %v960, %v976
    %980 = vrot.lane.b32.xlu0 %v978, 96
    %v981 = vpop.permute.xlu0 %980
    %v982 = vsel %vm188, %v981, 0
    %984 = vmatprep.subr.mxu0 0.0
    %985 = vmatpush1.msra.mxu0 %v589
    %986 = vmatprep.subr.mxu0 0.0
    %987 = vmatpush1.msra.mxu0 %v590
    %988 = vmatprep.subr.mxu0 0.0
    %989 = vmatpush1.msra.mxu0 0.0
    %990 = vmatprep.subr.mxu0 0.0
    %991 = vmatpush1.msra.mxu0 0.0
    %992 = vmatprep.subr.mxu0 0.0
    %993 = vmatpush1.msra.mxu0 0.0
    %994 = vmatprep.subr.mxu0 0.0
    %995 = vmatpush1.msra.mxu0 0.0
    %996 = vmatprep.subr.mxu0 0.0
    %997 = vmatpush1.msra.mxu0 0.0
    %998 = vmatprep.subr.mxu0 0.0
    %999 = vmatpush1.msra.mxu0 0.0
    %1000 = vmatprep.subr.mxu0 0.0
    %1001 = vmatpush1.msra.mxu0 0.0
    %1002 = vmatprep.subr.mxu0 0.0
    %1003 = vmatpush1.msra.mxu0 0.0
    %1004 = vmatprep.subr.mxu0 0.0
    %1005 = vmatpush1.msra.mxu0 0.0
    %1006 = vmatprep.subr.mxu0 0.0
    %1007 = vmatpush1.msra.mxu0 0.0
    %1008 = vmatprep.subr.mxu0 0.0
    %1009 = vmatpush1.msra.mxu0 0.0
    %1010 = vmatprep.subr.mxu0 0.0
    %1011 = vmatpush1.msra.mxu0 0.0
    %1012 = vmatprep.subr.mxu0 0.0
    %1013 = vmatpush1.msra.mxu0 0.0
    %1014 = vmatprep.subr.mxu0 0.0
    %1015 = vmatpush1.msra.mxu0 0.0
    %1016 = vmatprep.subr.mxu0 0.0
    %1017 = vmatpush1.msra.mxu0 0.0
    %1018 = vmatprep.subr.mxu0 0.0
    %1019 = vmatpush1.msra.mxu0 0.0
    %1020 = vmatprep.subr.mxu0 0.0
    %1021 = vmatpush1.msra.mxu0 0.0
    %1022 = vmatprep.subr.mxu0 0.0
    %1023 = vmatpush1.msra.mxu0 0.0
    %1024 = vmatprep.subr.mxu0 0.0
    %1025 = vmatpush1.msra.mxu0 0.0
    %1026 = vmatprep.subr.mxu0 0.0
    %1027 = vmatpush1.msra.mxu0 0.0
    %1028 = vmatprep.subr.mxu0 0.0
    %1029 = vmatpush1.msra.mxu0 0.0
    %1030 = vmatprep.subr.mxu0 0.0
    %1031 = vmatpush1.msra.mxu0 0.0
    %1032 = vmatprep.subr.mxu0 0.0
    %1033 = vmatpush1.msra.mxu0 0.0
    %1034 = vmatprep.subr.mxu0 0.0
    %1035 = vmatpush1.msra.mxu0 0.0
    %1036 = vmatprep.subr.mxu0 0.0
    %1037 = vmatpush1.msra.mxu0 0.0
    %1038 = vmatprep.subr.mxu0 0.0
    %1039 = vmatpush1.msra.mxu0 0.0
    %1040 = vmatprep.subr.mxu0 0.0
    %1041 = vmatpush1.msra.mxu0 0.0
    %1042 = vmatprep.subr.mxu0 0.0
    %1043 = vmatpush1.msra.mxu0 0.0
    %1044 = vmatprep.subr.mxu0 0.0
    %1045 = vmatpush1.msra.mxu0 0.0
    %1046 = vmatprep.subr.mxu0 0.0
    %1047 = vmatpush1.msra.mxu0 0.0
    %1048 = vmatprep.mubr.f32.mxu0 0.0
    %1049 = vmatmul.mubr.f32.gmra.mrb[0].mxu0 %v982
    %v1050 = vpop.f32.mrb[0].mxu0
    %v1051 = vadd.f32 0.0, %v1050
    %v1052 = vpop.f32.mrb[0].mxu0
    %1053 = vdwg.mxu0
    %v1054 = vadd.f32 %v681, %v1051
    %v1055 = vxor.u32 %v1054, 2147483648
    %v1056 = vmul.f32 %v1055, 1.442695
    %v1057 = vpow.pop %v1056
    %v1058 = vadd.f32 %v1057, 1.0
    %v1059 = vrcp.pop %v1058
    %v1060 = vmul.f32 1.0, %v1059
    %v1061 = vtanh.pop %v1054
    %v1062 = vmul.f32 %v1060, %v972
    %1064 = vrot.lane.b32.xlu0 %v1061, 80
    %v1065 = vpop.permute.xlu0 %1064
    %v1067 = vmul.f32 %v1060, %v1065
    %1069 = vrot.lane.b32.xlu0 %v1067, 16
    %v1070 = vpop.permute.xlu0 %1069
    %v1072 = vadd.f32 %v1062, %v1070
    %v1073 = vtanh.pop %v1072
    %1075 = vrot.lane.b32.xlu0 %v1073, 16
    %v1076 = vpop.permute.xlu0 %1075
    %v1078 = vmul.f32 %v1060, %v1076
    %1080 = vrot.lane.b32.xlu0 %v1078, 96
    %v1081 = vpop.permute.xlu0 %1080
    %1086 = vxpose.xlu0.b32.start [1/16] %v781, 128
    %1087 = vxpose.xlu0.b32.cont [2/16] 0.0, 128
    %1088 = vxpose.xlu0.b32.cont [3/16] 0.0, 128
    %1089 = vxpose.xlu0.b32.cont [4/16] 0.0, 128
    %1090 = vxpose.xlu0.b32.cont [5/16] 0.0, 128
    %1091 = vxpose.xlu0.b32.cont [6/16] 0.0, 128
    %1092 = vxpose.xlu0.b32.cont [7/16] 0.0, 128
    %1093 = vxpose.xlu0.b32.cont [8/16] 0.0, 128
    %1094 = vxpose.xlu0.b32.cont [9/16] 0.0, 128
    %1095 = vxpose.xlu0.b32.cont [10/16] 0.0, 128
    %1096 = vxpose.xlu0.b32.cont [11/16] 0.0, 128
    %1097 = vxpose.xlu0.b32.cont [12/16] 0.0, 128
    %1098 = vxpose.xlu0.b32.cont [13/16] 0.0, 128
    %1099 = vxpose.xlu0.b32.cont [14/16] 0.0, 128
    %1100 = vxpose.xlu0.b32.cont [15/16] 0.0, 128
    %1101 = vxpose.xlu0.b32.end [16/16] 0.0, 128
    %v1102 = vpop.trf.xlu0
    %v1103 = vpop.trf.xlu0
    %v1104 = vpop.trf.xlu0
    %v1105 = vpop.trf.xlu0
    %v1106 = vpop.trf.xlu0
    %v1107 = vpop.trf.xlu0
    %v1108 = vpop.trf.xlu0
    %v1109 = vpop.trf.xlu0
    %v1110 = vpop.trf.xlu0
    %v1111 = vpop.trf.xlu0
    %v1112 = vpop.trf.xlu0
    %v1113 = vpop.trf.xlu0
    %v1114 = vpop.trf.xlu0
    %v1115 = vpop.trf.xlu0
    %v1116 = vpop.trf.xlu0
    %v1117 = vpop.trf.xlu0
    %1118 = vxpose.xlu0.b32.start [1/16] %v881, 128
    %1119 = vxpose.xlu0.b32.cont [2/16] 0.0, 128
    %1120 = vxpose.xlu0.b32.cont [3/16] 0.0, 128
    %1121 = vxpose.xlu0.b32.cont [4/16] 0.0, 128
    %1122 = vxpose.xlu0.b32.cont [5/16] 0.0, 128
    %1123 = vxpose.xlu0.b32.cont [6/16] 0.0, 128
    %1124 = vxpose.xlu0.b32.cont [7/16] 0.0, 128
    %1125 = vxpose.xlu0.b32.cont [8/16] 0.0, 128
    %1126 = vxpose.xlu0.b32.cont [9/16] 0.0, 128
    %1127 = vxpose.xlu0.b32.cont [10/16] 0.0, 128
    %1128 = vxpose.xlu0.b32.cont [11/16] 0.0, 128
    %1129 = vxpose.xlu0.b32.cont [12/16] 0.0, 128
    %1130 = vxpose.xlu0.b32.cont [13/16] 0.0, 128
    %1131 = vxpose.xlu0.b32.cont [14/16] 0.0, 128
    %1132 = vxpose.xlu0.b32.cont [15/16] 0.0, 128
    %1133 = vxpose.xlu0.b32.end [16/16] 0.0, 128
    %v1134 = vpop.trf.xlu0
    %v1135 = vpop.trf.xlu0
    %v1136 = vpop.trf.xlu0
    %v1137 = vpop.trf.xlu0
    %v1138 = vpop.trf.xlu0
    %v1139 = vpop.trf.xlu0
    %v1140 = vpop.trf.xlu0
    %v1141 = vpop.trf.xlu0
    %v1142 = vpop.trf.xlu0
    %v1143 = vpop.trf.xlu0
    %v1144 = vpop.trf.xlu0
    %v1145 = vpop.trf.xlu0
    %v1146 = vpop.trf.xlu0
    %v1147 = vpop.trf.xlu0
    %v1148 = vpop.trf.xlu0
    %v1149 = vpop.trf.xlu0
    %1150 = vxpose.xlu0.b32.start [1/16] %v981, 128
    %1151 = vxpose.xlu0.b32.cont [2/16] 0.0, 128
    %1152 = vxpose.xlu0.b32.cont [3/16] 0.0, 128
    %1153 = vxpose.xlu0.b32.cont [4/16] 0.0, 128
    %1154 = vxpose.xlu0.b32.cont [5/16] 0.0, 128
    %1155 = vxpose.xlu0.b32.cont [6/16] 0.0, 128
    %1156 = vxpose.xlu0.b32.cont [7/16] 0.0, 128
    %1157 = vxpose.xlu0.b32.cont [8/16] 0.0, 128
    %1158 = vxpose.xlu0.b32.cont [9/16] 0.0, 128
    %1159 = vxpose.xlu0.b32.cont [10/16] 0.0, 128
    %1160 = vxpose.xlu0.b32.cont [11/16] 0.0, 128
    %1161 = vxpose.xlu0.b32.cont [12/16] 0.0, 128
    %1162 = vxpose.xlu0.b32.cont [13/16] 0.0, 128
    %1163 = vxpose.xlu0.b32.cont [14/16] 0.0, 128
    %1164 = vxpose.xlu0.b32.cont [15/16] 0.0, 128
    %1165 = vxpose.xlu0.b32.end [16/16] 0.0, 128
    %v1166 = vpop.trf.xlu0
    %v1167 = vpop.trf.xlu0
    %v1168 = vpop.trf.xlu0
    %v1169 = vpop.trf.xlu0
    %v1170 = vpop.trf.xlu0
    %v1171 = vpop.trf.xlu0
    %v1172 = vpop.trf.xlu0
    %v1173 = vpop.trf.xlu0
    %v1174 = vpop.trf.xlu0
    %v1175 = vpop.trf.xlu0
    %v1176 = vpop.trf.xlu0
    %v1177 = vpop.trf.xlu0
    %v1178 = vpop.trf.xlu0
    %v1179 = vpop.trf.xlu0
    %v1180 = vpop.trf.xlu0
    %v1181 = vpop.trf.xlu0
    %1182 = vxpose.xlu0.b32.start [1/16] %v1081, 128
    %1183 = vxpose.xlu0.b32.cont [2/16] 0.0, 128
    %1184 = vxpose.xlu0.b32.cont [3/16] 0.0, 128
    %1185 = vxpose.xlu0.b32.cont [4/16] 0.0, 128
    %1186 = vxpose.xlu0.b32.cont [5/16] 0.0, 128
    %1187 = vxpose.xlu0.b32.cont [6/16] 0.0, 128
    %1188 = vxpose.xlu0.b32.cont [7/16] 0.0, 128
    %1189 = vxpose.xlu0.b32.cont [8/16] 0.0, 128
    %1190 = vxpose.xlu0.b32.cont [9/16] 0.0, 128
    %1191 = vxpose.xlu0.b32.cont [10/16] 0.0, 128
    %1192 = vxpose.xlu0.b32.cont [11/16] 0.0, 128
    %1193 = vxpose.xlu0.b32.cont [12/16] 0.0, 128
    %1194 = vxpose.xlu0.b32.cont [13/16] 0.0, 128
    %1195 = vxpose.xlu0.b32.cont [14/16] 0.0, 128
    %1196 = vxpose.xlu0.b32.cont [15/16] 0.0, 128
    %1197 = vxpose.xlu0.b32.end [16/16] 0.0, 128
    %v1198 = vpop.trf.xlu0
    %v1199 = vpop.trf.xlu0
    %v1200 = vpop.trf.xlu0
    %v1201 = vpop.trf.xlu0
    %v1202 = vpop.trf.xlu0
    %v1203 = vpop.trf.xlu0
    %v1204 = vpop.trf.xlu0
    %v1205 = vpop.trf.xlu0
    %v1206 = vpop.trf.xlu0
    %v1207 = vpop.trf.xlu0
    %v1208 = vpop.trf.xlu0
    %v1209 = vpop.trf.xlu0
    %v1210 = vpop.trf.xlu0
    %v1211 = vpop.trf.xlu0
    %v1212 = vpop.trf.xlu0
    %v1213 = vpop.trf.xlu0
    %v1214 = vld [vmem:[%s5] sm:$0xff]
    %v1215 = vld [vmem:[%s8 + $0x11] sm:$0x1]
    %v1217 = vlaneseq
    %v1218 = vshrl.u32 %v1217, 7
    %v1219 = vsub.s32 0, %v1218
    %v1220 = vrot.slane %v1215, %v1219
    %vm1222 = vcmask 64512
    %v1224 = vsel %vm1222, %v1102, 0
    %v1227 = vsel %vm1222, %v1103, 0
    %v1230 = vsel %vm1222, %v1134, 0
    %v1233 = vsel %vm1222, %v1135, 0
    %v1236 = vsel %vm1222, %v1166, 0
    %v1239 = vsel %vm1222, %v1167, 0
    %v1242 = vsel %vm1222, %v1198, 0
    %v1245 = vsel %vm1222, %v1199, 0
    %1247 = vmatprep.subr.mxu0 0.0
    %1248 = vmatpush1.msra.mxu0 %v1214
    %1249 = vmatprep.subr.mxu0 0.0
    %1250 = vmatpush1.msra.mxu0 0.0
    %1251 = vmatprep.subr.mxu0 0.0
    %1252 = vmatpush1.msra.mxu0 0.0
    %1253 = vmatprep.subr.mxu0 0.0
    %1254 = vmatpush1.msra.mxu0 0.0
    %1255 = vmatprep.subr.mxu0 0.0
    %1256 = vmatpush1.msra.mxu0 0.0
    %1257 = vmatprep.subr.mxu0 0.0
    %1258 = vmatpush1.msra.mxu0 0.0
    %1259 = vmatprep.subr.mxu0 0.0
    %1260 = vmatpush1.msra.mxu0 0.0
    %1261 = vmatprep.subr.mxu0 0.0
    %1262 = vmatpush1.msra.mxu0 0.0
    %1263 = vmatprep.subr.mxu0 0.0
    %1264 = vmatpush1.msra.mxu0 0.0
    %1265 = vmatprep.subr.mxu0 0.0
    %1266 = vmatpush1.msra.mxu0 0.0
    %1267 = vmatprep.subr.mxu0 0.0
    %1268 = vmatpush1.msra.mxu0 0.0
    %1269 = vmatprep.subr.mxu0 0.0
    %1270 = vmatpush1.msra.mxu0 0.0
    %1271 = vmatprep.subr.mxu0 0.0
    %1272 = vmatpush1.msra.mxu0 0.0
    %1273 = vmatprep.subr.mxu0 0.0
    %1274 = vmatpush1.msra.mxu0 0.0
    %1275 = vmatprep.subr.mxu0 0.0
    %1276 = vmatpush1.msra.mxu0 0.0
    %1277 = vmatprep.subr.mxu0 0.0
    %1278 = vmatpush1.msra.mxu0 0.0
    %1279 = vmatprep.subr.mxu0 0.0
    %1280 = vmatpush1.msra.mxu0 0.0
    %1281 = vmatprep.subr.mxu0 0.0
    %1282 = vmatpush1.msra.mxu0 0.0
    %1283 = vmatprep.subr.mxu0 0.0
    %1284 = vmatpush1.msra.mxu0 0.0
    %1285 = vmatprep.subr.mxu0 0.0
    %1286 = vmatpush1.msra.mxu0 0.0
    %1287 = vmatprep.subr.mxu0 0.0
    %1288 = vmatpush1.msra.mxu0 0.0
    %1289 = vmatprep.subr.mxu0 0.0
    %1290 = vmatpush1.msra.mxu0 0.0
    %1291 = vmatprep.subr.mxu0 0.0
    %1292 = vmatpush1.msra.mxu0 0.0
    %1293 = vmatprep.subr.mxu0 0.0
    %1294 = vmatpush1.msra.mxu0 0.0
    %1295 = vmatprep.subr.mxu0 0.0
    %1296 = vmatpush1.msra.mxu0 0.0
    %1297 = vmatprep.subr.mxu0 0.0
    %1298 = vmatpush1.msra.mxu0 0.0
    %1299 = vmatprep.subr.mxu0 0.0
    %1300 = vmatpush1.msra.mxu0 0.0
    %1301 = vmatprep.subr.mxu0 0.0
    %1302 = vmatpush1.msra.mxu0 0.0
    %1303 = vmatprep.subr.mxu0 0.0
    %1304 = vmatpush1.msra.mxu0 0.0
    %1305 = vmatprep.subr.mxu0 0.0
    %1306 = vmatpush1.msra.mxu0 0.0
    %1307 = vmatprep.subr.mxu0 0.0
    %1308 = vmatpush1.msra.mxu0 0.0
    %1309 = vmatprep.subr.mxu0 0.0
    %1310 = vmatpush1.msra.mxu0 0.0
    %1311 = vmatprep.mubr.f32.mxu0 0.0
    %1312 = vmatmul.mubr.f32.gmra.mrb[0].mxu0 %v1224
    %v1313 = vpop.f32.mrb[0].mxu0
    %v1314 = vadd.f32 %v1220, %v1313
    %v1315 = vpop.f32.mrb[0].mxu0
    %1316 = vmatprep.mubr.f32.mxu0 0.0
    %1317 = vmatmul.mubr.f32.gmra.mrb[0].mxu0 %v1227
    %v1318 = vpop.f32.mrb[0].mxu0
    %v1319 = vadd.f32 %v1220, %v1318
    %v1320 = vpop.f32.mrb[0].mxu0
    %1321 = vmatprep.mubr.f32.mxu0 0.0
    %1322 = vmatmul.mubr.f32.gmra.mrb[0].mxu0 %v1230
    %v1323 = vpop.f32.mrb[0].mxu0
    %v1324 = vadd.f32 %v1220, %v1323
    %v1325 = vpop.f32.mrb[0].mxu0
    %1326 = vmatprep.mubr.f32.mxu0 0.0
    %1327 = vmatmul.mubr.f32.gmra.mrb[0].mxu0 %v1233
    %v1328 = vpop.f32.mrb[0].mxu0
    %v1329 = vadd.f32 %v1220, %v1328
    %v1330 = vpop.f32.mrb[0].mxu0
    %1331 = vmatprep.mubr.f32.mxu0 0.0
    %1332 = vmatmul.mubr.f32.gmra.mrb[0].mxu0 %v1236
    %v1333 = vpop.f32.mrb[0].mxu0
    %v1334 = vadd.f32 %v1220, %v1333
    %v1335 = vpop.f32.mrb[0].mxu0
    %1336 = vmatprep.mubr.f32.mxu0 0.0
    %1337 = vmatmul.mubr.f32.gmra.mrb[0].mxu0 %v1239
    %v1338 = vpop.f32.mrb[0].mxu0
    %v1339 = vadd.f32 %v1220, %v1338
    %v1340 = vpop.f32.mrb[0].mxu0
    %1341 = vmatprep.mubr.f32.mxu0 0.0
    %1342 = vmatmul.mubr.f32.gmra.mrb[0].mxu0 %v1242
    %v1343 = vpop.f32.mrb[0].mxu0
    %v1344 = vadd.f32 %v1220, %v1343
    %v1345 = vpop.f32.mrb[0].mxu0
    %1346 = vmatprep.mubr.f32.mxu0 0.0
    %1347 = vmatmul.mubr.f32.gmra.mrb[0].mxu0 %v1245
    %v1348 = vpop.f32.mrb[0].mxu0
    %v1349 = vadd.f32 %v1220, %v1348
    %v1350 = vpop.f32.mrb[0].mxu0
    %1351 = vdwg.mxu0
    %1354 = vrot.lane.b32.xlu0 %v1314, 120
    %v1355 = vpop.permute.xlu0 %1354
    %1356 = vrot.lane.b32.xlu0 %v1319, 120
    %v1357 = vpop.permute.xlu0 %1356
    %vm1358 = vcmask 31744
    %v1359 = vsel %vm1358, %v1314, 0
    %v1361 = vsel %vm1358, %v1319, 0
    %v1363 = vsel %vm1358, %v1355, 0
    %v1365 = vsel %vm1358, %v1357, 0
    %1367 = vmatprep.subr.mxu0 0.0
    %1368 = vmatpush1.xpose.msra.mxu0 %v1363
    %1369 = vmatprep.subr.mxu0 0.0
    %1370 = vmatpush1.xpose.msra.mxu0 %v1365
    %1371 = vmatprep.subr.mxu0 0.0
    %1372 = vmatpush1.xpose.msra.mxu0 0.0
    %1373 = vmatprep.subr.mxu0 0.0
    %1374 = vmatpush1.xpose.msra.mxu0 0.0
    %1375 = vmatprep.subr.mxu0 0.0
    %1376 = vmatpush1.xpose.msra.mxu0 0.0
    %1377 = vmatprep.subr.mxu0 0.0
    %1378 = vmatpush1.xpose.msra.mxu0 0.0
    %1379 = vmatprep.subr.mxu0 0.0
    %1380 = vmatpush1.xpose.msra.mxu0 0.0
    %1381 = vmatprep.subr.mxu0 0.0
    %1382 = vmatpush1.xpose.msra.mxu0 0.0
    %1383 = vmatprep.subr.mxu0 0.0
    %1384 = vmatpush1.xpose.msra.mxu0 0.0
    %1385 = vmatprep.subr.mxu0 0.0
    %1386 = vmatpush1.xpose.msra.mxu0 0.0
    %1387 = vmatprep.subr.mxu0 0.0
    %1388 = vmatpush1.xpose.msra.mxu0 0.0
    %1389 = vmatprep.subr.mxu0 0.0
    %1390 = vmatpush1.xpose.msra.mxu0 0.0
    %1391 = vmatprep.subr.mxu0 0.0
    %1392 = vmatpush1.xpose.msra.mxu0 0.0
    %1393 = vmatprep.subr.mxu0 0.0
    %1394 = vmatpush1.xpose.msra.mxu0 0.0
    %1395 = vmatprep.subr.mxu0 0.0
    %1396 = vmatpush1.xpose.msra.mxu0 0.0
    %1397 = vmatprep.subr.mxu0 0.0
    %1398 = vmatpush1.xpose.msra.mxu0 0.0
    %1399 = vmatprep.subr.mxu0 0.0
    %1400 = vmatpush1.xpose.msra.mxu0 0.0
    %1401 = vmatprep.subr.mxu0 0.0
    %1402 = vmatpush1.xpose.msra.mxu0 0.0
    %1403 = vmatprep.subr.mxu0 0.0
    %1404 = vmatpush1.xpose.msra.mxu0 0.0
    %1405 = vmatprep.subr.mxu0 0.0
    %1406 = vmatpush1.xpose.msra.mxu0 0.0
    %1407 = vmatprep.subr.mxu0 0.0
    %1408 = vmatpush1.xpose.msra.mxu0 0.0
    %1409 = vmatprep.subr.mxu0 0.0
    %1410 = vmatpush1.xpose.msra.mxu0 0.0
    %1411 = vmatprep.subr.mxu0 0.0
    %1412 = vmatpush1.xpose.msra.mxu0 0.0
    %1413 = vmatprep.subr.mxu0 0.0
    %1414 = vmatpush1.xpose.msra.mxu0 0.0
    %1415 = vmatprep.subr.mxu0 0.0
    %1416 = vmatpush1.xpose.msra.mxu0 0.0
    %1417 = vmatprep.subr.mxu0 0.0
    %1418 = vmatpush1.xpose.msra.mxu0 0.0
    %1419 = vmatprep.subr.mxu0 0.0
    %1420 = vmatpush1.xpose.msra.mxu0 0.0
    %1421 = vmatprep.subr.mxu0 0.0
    %1422 = vmatpush1.xpose.msra.mxu0 0.0
    %1423 = vmatprep.subr.mxu0 0.0
    %1424 = vmatpush1.xpose.msra.mxu0 0.0
    %1425 = vmatprep.subr.mxu0 0.0
    %1426 = vmatpush1.xpose.msra.mxu0 0.0
    %1427 = vmatprep.subr.mxu0 0.0
    %1428 = vmatpush1.xpose.msra.mxu0 0.0
    %1429 = vmatprep.subr.mxu0 0.0
    %1430 = vmatpush1.xpose.msra.mxu0 0.0
    %1431 = vmatprep.mubr.f32.mxu0 0.0
    %1432 = vmatmul.mubr.f32.gmra.mrb[0].mxu0 %v1359
    %v1433 = vpop.f32.mrb[0].mxu0
    %v1434 = vadd.f32 0.0, %v1433
    %v1435 = vpop.f32.mrb[0].mxu0
    %1436 = vmatprep.mubr.f32.mxu0 0.0
    %1437 = vmatmul.mubr.f32.gmra.mrb[0].mxu0 %v1361
    %v1438 = vpop.f32.mrb[0].mxu0
    %v1439 = vadd.f32 0.0, %v1438
    %v1440 = vpop.f32.mrb[0].mxu0
    %1441 = vdwg.mxu0
    %1444 = vrot.lane.b32.xlu0 %v1324, 120
    %v1445 = vpop.permute.xlu0 %1444
    %1446 = vrot.lane.b32.xlu0 %v1329, 120
    %v1447 = vpop.permute.xlu0 %1446
    %v1448 = vsel %vm1358, %v1324, 0
    %v1450 = vsel %vm1358, %v1329, 0
    %v1452 = vsel %vm1358, %v1445, 0
    %v1454 = vsel %vm1358, %v1447, 0
    %1456 = vmatprep.subr.mxu0 0.0
    %1457 = vmatpush1.xpose.msra.mxu0 %v1452
    %1458 = vmatprep.subr.mxu0 0.0
    %1459 = vmatpush1.xpose.msra.mxu0 %v1454
    %1460 = vmatprep.subr.mxu0 0.0
    %1461 = vmatpush1.xpose.msra.mxu0 0.0
    %1462 = vmatprep.subr.mxu0 0.0
    %1463 = vmatpush1.xpose.msra.mxu0 0.0
    %1464 = vmatprep.subr.mxu0 0.0
    %1465 = vmatpush1.xpose.msra.mxu0 0.0
    %1466 = vmatprep.subr.mxu0 0.0
    %1467 = vmatpush1.xpose.msra.mxu0 0.0
    %1468 = vmatprep.subr.mxu0 0.0
    %1469 = vmatpush1.xpose.msra.mxu0 0.0
    %1470 = vmatprep.subr.mxu0 0.0
    %1471 = vmatpush1.xpose.msra.mxu0 0.0
    %1472 = vmatprep.subr.mxu0 0.0
    %1473 = vmatpush1.xpose.msra.mxu0 0.0
    %1474 = vmatprep.subr.mxu0 0.0
    %1475 = vmatpush1.xpose.msra.mxu0 0.0
    %1476 = vmatprep.subr.mxu0 0.0
    %1477 = vmatpush1.xpose.msra.mxu0 0.0
    %1478 = vmatprep.subr.mxu0 0.0
    %1479 = vmatpush1.xpose.msra.mxu0 0.0
    %1480 = vmatprep.subr.mxu0 0.0
    %1481 = vmatpush1.xpose.msra.mxu0 0.0
    %1482 = vmatprep.subr.mxu0 0.0
    %1483 = vmatpush1.xpose.msra.mxu0 0.0
    %1484 = vmatprep.subr.mxu0 0.0
    %1485 = vmatpush1.xpose.msra.mxu0 0.0
    %1486 = vmatprep.subr.mxu0 0.0
    %1487 = vmatpush1.xpose.msra.mxu0 0.0
    %1488 = vmatprep.subr.mxu0 0.0
    %1489 = vmatpush1.xpose.msra.mxu0 0.0
    %1490 = vmatprep.subr.mxu0 0.0
    %1491 = vmatpush1.xpose.msra.mxu0 0.0
    %1492 = vmatprep.subr.mxu0 0.0
    %1493 = vmatpush1.xpose.msra.mxu0 0.0
    %1494 = vmatprep.subr.mxu0 0.0
    %1495 = vmatpush1.xpose.msra.mxu0 0.0
    %1496 = vmatprep.subr.mxu0 0.0
    %1497 = vmatpush1.xpose.msra.mxu0 0.0
    %1498 = vmatprep.subr.mxu0 0.0
    %1499 = vmatpush1.xpose.msra.mxu0 0.0
    %1500 = vmatprep.subr.mxu0 0.0
    %1501 = vmatpush1.xpose.msra.mxu0 0.0
    %1502 = vmatprep.subr.mxu0 0.0
    %1503 = vmatpush1.xpose.msra.mxu0 0.0
    %1504 = vmatprep.subr.mxu0 0.0
    %1505 = vmatpush1.xpose.msra.mxu0 0.0
    %1506 = vmatprep.subr.mxu0 0.0
    %1507 = vmatpush1.xpose.msra.mxu0 0.0
    %1508 = vmatprep.subr.mxu0 0.0
    %1509 = vmatpush1.xpose.msra.mxu0 0.0
    %1510 = vmatprep.subr.mxu0 0.0
    %1511 = vmatpush1.xpose.msra.mxu0 0.0
    %1512 = vmatprep.subr.mxu0 0.0
    %1513 = vmatpush1.xpose.msra.mxu0 0.0
    %1514 = vmatprep.subr.mxu0 0.0
    %1515 = vmatpush1.xpose.msra.mxu0 0.0
    %1516 = vmatprep.subr.mxu0 0.0
    %1517 = vmatpush1.xpose.msra.mxu0 0.0
    %1518 = vmatprep.subr.mxu0 0.0
    %1519 = vmatpush1.xpose.msra.mxu0 0.0
    %1520 = vmatprep.mubr.f32.mxu0 0.0
    %1521 = vmatmul.mubr.f32.gmra.mrb[0].mxu0 %v1448
    %v1522 = vpop.f32.mrb[0].mxu0
    %v1523 = vadd.f32 0.0, %v1522
    %v1524 = vpop.f32.mrb[0].mxu0
    %1525 = vmatprep.mubr.f32.mxu0 0.0
    %1526 = vmatmul.mubr.f32.gmra.mrb[0].mxu0 %v1450
    %v1527 = vpop.f32.mrb[0].mxu0
    %v1528 = vadd.f32 0.0, %v1527
    %v1529 = vpop.f32.mrb[0].mxu0
    %1530 = vdwg.mxu0
    %1533 = vrot.lane.b32.xlu0 %v1334, 120
    %v1534 = vpop.permute.xlu0 %1533
    %1535 = vrot.lane.b32.xlu0 %v1339, 120
    %v1536 = vpop.permute.xlu0 %1535
    %v1537 = vsel %vm1358, %v1334, 0
    %v1539 = vsel %vm1358, %v1339, 0
    %v1541 = vsel %vm1358, %v1534, 0
    %v1543 = vsel %vm1358, %v1536, 0
    %1545 = vmatprep.subr.mxu0 0.0
    %1546 = vmatpush1.xpose.msra.mxu0 %v1541
    %1547 = vmatprep.subr.mxu0 0.0
    %1548 = vmatpush1.xpose.msra.mxu0 %v1543
    %1549 = vmatprep.subr.mxu0 0.0
    %1550 = vmatpush1.xpose.msra.mxu0 0.0
    %1551 = vmatprep.subr.mxu0 0.0
    %1552 = vmatpush1.xpose.msra.mxu0 0.0
    %1553 = vmatprep.subr.mxu0 0.0
    %1554 = vmatpush1.xpose.msra.mxu0 0.0
    %1555 = vmatprep.subr.mxu0 0.0
    %1556 = vmatpush1.xpose.msra.mxu0 0.0
    %1557 = vmatprep.subr.mxu0 0.0
    %1558 = vmatpush1.xpose.msra.mxu0 0.0
    %1559 = vmatprep.subr.mxu0 0.0
    %1560 = vmatpush1.xpose.msra.mxu0 0.0
    %1561 = vmatprep.subr.mxu0 0.0
    %1562 = vmatpush1.xpose.msra.mxu0 0.0
    %1563 = vmatprep.subr.mxu0 0.0
    %1564 = vmatpush1.xpose.msra.mxu0 0.0
    %1565 = vmatprep.subr.mxu0 0.0
    %1566 = vmatpush1.xpose.msra.mxu0 0.0
    %1567 = vmatprep.subr.mxu0 0.0
    %1568 = vmatpush1.xpose.msra.mxu0 0.0
    %1569 = vmatprep.subr.mxu0 0.0
    %1570 = vmatpush1.xpose.msra.mxu0 0.0
    %1571 = vmatprep.subr.mxu0 0.0
    %1572 = vmatpush1.xpose.msra.mxu0 0.0
    %1573 = vmatprep.subr.mxu0 0.0
    %1574 = vmatpush1.xpose.msra.mxu0 0.0
    %1575 = vmatprep.subr.mxu0 0.0
    %1576 = vmatpush1.xpose.msra.mxu0 0.0
    %1577 = vmatprep.subr.mxu0 0.0
    %1578 = vmatpush1.xpose.msra.mxu0 0.0
    %1579 = vmatprep.subr.mxu0 0.0
    %1580 = vmatpush1.xpose.msra.mxu0 0.0
    %1581 = vmatprep.subr.mxu0 0.0
    %1582 = vmatpush1.xpose.msra.mxu0 0.0
    %1583 = vmatprep.subr.mxu0 0.0
    %1584 = vmatpush1.xpose.msra.mxu0 0.0
    %1585 = vmatprep.subr.mxu0 0.0
    %1586 = vmatpush1.xpose.msra.mxu0 0.0
    %1587 = vmatprep.subr.mxu0 0.0
    %1588 = vmatpush1.xpose.msra.mxu0 0.0
    %1589 = vmatprep.subr.mxu0 0.0
    %1590 = vmatpush1.xpose.msra.mxu0 0.0
    %1591 = vmatprep.subr.mxu0 0.0
    %1592 = vmatpush1.xpose.msra.mxu0 0.0
    %1593 = vmatprep.subr.mxu0 0.0
    %1594 = vmatpush1.xpose.msra.mxu0 0.0
    %1595 = vmatprep.subr.mxu0 0.0
    %1596 = vmatpush1.xpose.msra.mxu0 0.0
    %1597 = vmatprep.subr.mxu0 0.0
    %1598 = vmatpush1.xpose.msra.mxu0 0.0
    %1599 = vmatprep.subr.mxu0 0.0
    %1600 = vmatpush1.xpose.msra.mxu0 0.0
    %1601 = vmatprep.subr.mxu0 0.0
    %1602 = vmatpush1.xpose.msra.mxu0 0.0
    %1603 = vmatprep.subr.mxu0 0.0
    %1604 = vmatpush1.xpose.msra.mxu0 0.0
    %1605 = vmatprep.subr.mxu0 0.0
    %1606 = vmatpush1.xpose.msra.mxu0 0.0
    %1607 = vmatprep.subr.mxu0 0.0
    %1608 = vmatpush1.xpose.msra.mxu0 0.0
    %1609 = vmatprep.mubr.f32.mxu0 0.0
    %1610 = vmatmul.mubr.f32.gmra.mrb[0].mxu0 %v1537
    %v1611 = vpop.f32.mrb[0].mxu0
    %v1612 = vadd.f32 0.0, %v1611
    %v1613 = vpop.f32.mrb[0].mxu0
    %1614 = vmatprep.mubr.f32.mxu0 0.0
    %1615 = vmatmul.mubr.f32.gmra.mrb[0].mxu0 %v1539
    %v1616 = vpop.f32.mrb[0].mxu0
    %v1617 = vadd.f32 0.0, %v1616
    %v1618 = vpop.f32.mrb[0].mxu0
    %1619 = vdwg.mxu0
    %1622 = vrot.lane.b32.xlu0 %v1344, 120
    %v1623 = vpop.permute.xlu0 %1622
    %1624 = vrot.lane.b32.xlu0 %v1349, 120
    %v1625 = vpop.permute.xlu0 %1624
    %v1626 = vsel %vm1358, %v1344, 0
    %v1628 = vsel %vm1358, %v1349, 0
    %v1630 = vsel %vm1358, %v1623, 0
    %v1632 = vsel %vm1358, %v1625, 0
    %1634 = vmatprep.subr.mxu0 0.0
    %1635 = vmatpush1.xpose.msra.mxu0 %v1630
    %1636 = vmatprep.subr.mxu0 0.0
    %1637 = vmatpush1.xpose.msra.mxu0 %v1632
    %1638 = vmatprep.subr.mxu0 0.0
    %1639 = vmatpush1.xpose.msra.mxu0 0.0
    %1640 = vmatprep.subr.mxu0 0.0
    %1641 = vmatpush1.xpose.msra.mxu0 0.0
    %1642 = vmatprep.subr.mxu0 0.0
    %1643 = vmatpush1.xpose.msra.mxu0 0.0
    %1644 = vmatprep.subr.mxu0 0.0
    %1645 = vmatpush1.xpose.msra.mxu0 0.0
    %1646 = vmatprep.subr.mxu0 0.0
    %1647 = vmatpush1.xpose.msra.mxu0 0.0
    %1648 = vmatprep.subr.mxu0 0.0
    %1649 = vmatpush1.xpose.msra.mxu0 0.0
    %1650 = vmatprep.subr.mxu0 0.0
    %1651 = vmatpush1.xpose.msra.mxu0 0.0
    %1652 = vmatprep.subr.mxu0 0.0
    %1653 = vmatpush1.xpose.msra.mxu0 0.0
    %1654 = vmatprep.subr.mxu0 0.0
    %1655 = vmatpush1.xpose.msra.mxu0 0.0
    %1656 = vmatprep.subr.mxu0 0.0
    %1657 = vmatpush1.xpose.msra.mxu0 0.0
    %1658 = vmatprep.subr.mxu0 0.0
    %1659 = vmatpush1.xpose.msra.mxu0 0.0
    %1660 = vmatprep.subr.mxu0 0.0
    %1661 = vmatpush1.xpose.msra.mxu0 0.0
    %1662 = vmatprep.subr.mxu0 0.0
    %1663 = vmatpush1.xpose.msra.mxu0 0.0
    %1664 = vmatprep.subr.mxu0 0.0
    %1665 = vmatpush1.xpose.msra.mxu0 0.0
    %1666 = vmatprep.subr.mxu0 0.0
    %1667 = vmatpush1.xpose.msra.mxu0 0.0
    %1668 = vmatprep.subr.mxu0 0.0
    %1669 = vmatpush1.xpose.msra.mxu0 0.0
    %1670 = vmatprep.subr.mxu0 0.0
    %1671 = vmatpush1.xpose.msra.mxu0 0.0
    %1672 = vmatprep.subr.mxu0 0.0
    %1673 = vmatpush1.xpose.msra.mxu0 0.0
    %1674 = vmatprep.subr.mxu0 0.0
    %1675 = vmatpush1.xpose.msra.mxu0 0.0
    %1676 = vmatprep.subr.mxu0 0.0
    %1677 = vmatpush1.xpose.msra.mxu0 0.0
    %1678 = vmatprep.subr.mxu0 0.0
    %1679 = vmatpush1.xpose.msra.mxu0 0.0
    %1680 = vmatprep.subr.mxu0 0.0
    %1681 = vmatpush1.xpose.msra.mxu0 0.0
    %1682 = vmatprep.subr.mxu0 0.0
    %1683 = vmatpush1.xpose.msra.mxu0 0.0
    %1684 = vmatprep.subr.mxu0 0.0
    %1685 = vmatpush1.xpose.msra.mxu0 0.0
    %1686 = vmatprep.subr.mxu0 0.0
    %1687 = vmatpush1.xpose.msra.mxu0 0.0
    %1688 = vmatprep.subr.mxu0 0.0
    %1689 = vmatpush1.xpose.msra.mxu0 0.0
    %1690 = vmatprep.subr.mxu0 0.0
    %1691 = vmatpush1.xpose.msra.mxu0 0.0
    %1692 = vmatprep.subr.mxu0 0.0
    %1693 = vmatpush1.xpose.msra.mxu0 0.0
    %1694 = vmatprep.subr.mxu0 0.0
    %1695 = vmatpush1.xpose.msra.mxu0 0.0
    %1696 = vmatprep.subr.mxu0 0.0
    %1697 = vmatpush1.xpose.msra.mxu0 0.0
    %1698 = vmatprep.mubr.f32.mxu0 0.0
    %1699 = vmatmul.mubr.f32.gmra.mrb[0].mxu0 %v1626
    %v1700 = vpop.f32.mrb[0].mxu0
    %v1701 = vadd.f32 0.0, %v1700
    %v1702 = vpop.f32.mrb[0].mxu0
    %1703 = vmatprep.mubr.f32.mxu0 0.0
    %1704 = vmatmul.mubr.f32.gmra.mrb[0].mxu0 %v1628
    %v1705 = vpop.f32.mrb[0].mxu0
    %v1706 = vadd.f32 0.0, %v1705
    %v1707 = vpop.f32.mrb[0].mxu0
    %1708 = vdwg.mxu0
    %v1709 = vmul.f32 %v1434, 0.5
    %v1710 = vmul.f32 %v1439, 0.5
    %v1711 = vmul.f32 %v1523, 0.5
    %v1712 = vmul.f32 %v1528, 0.5
    %v1713 = vmul.f32 %v1612, 0.5
    %v1714 = vmul.f32 %v1617, 0.5
    %v1715 = vmul.f32 %v1701, 0.5
    %v1716 = vmul.f32 %v1706, 0.5
    %v1717 = vsel %vm188, %v1709, -inf
    %1718 = vmax.xlane.f32.xlu0 %v1717
    %v1719 = vpop.xlane.xlu0 %1718
    %v1720 = vsel %vm188, %v1710, -inf
    %1721 = vmax.xlane.f32.xlu0 %v1720
    %v1722 = vpop.xlane.xlu0 %1721
    %v1723 = vsel %vm188, %v1711, -inf
    %1724 = vmax.xlane.f32.xlu0 %v1723
    %v1725 = vpop.xlane.xlu0 %1724
    %v1726 = vsel %vm188, %v1712, -inf
    %1727 = vmax.xlane.f32.xlu0 %v1726
    %v1728 = vpop.xlane.xlu0 %1727
    %v1729 = vsel %vm188, %v1713, -inf
    %1730 = vmax.xlane.f32.xlu0 %v1729
    %v1731 = vpop.xlane.xlu0 %1730
    %v1732 = vsel %vm188, %v1714, -inf
    %1733 = vmax.xlane.f32.xlu0 %v1732
    %v1734 = vpop.xlane.xlu0 %1733
    %v1735 = vsel %vm188, %v1715, -inf
    %1736 = vmax.xlane.f32.xlu0 %v1735
    %v1737 = vpop.xlane.xlu0 %1736
    %v1738 = vsel %vm188, %v1716, -inf
    %1739 = vmax.xlane.f32.xlu0 %v1738
    %v1740 = vpop.xlane.xlu0 %1739
    %v1741 = vsub.f32 %v1709, %v1719
    %v1742 = vsub.f32 %v1710, %v1722
    %v1743 = vsub.f32 %v1711, %v1725
    %v1744 = vsub.f32 %v1712, %v1728
    %v1745 = vsub.f32 %v1713, %v1731
    %v1746 = vsub.f32 %v1714, %v1734
    %v1747 = vsub.f32 %v1715, %v1737
    %v1748 = vsub.f32 %v1716, %v1740
    %v1749 = vmul.f32 %v1741, 1.442695
    %v1750 = vpow.pop %v1749
    %v1751 = vmul.f32 %v1742, 1.442695
    %v1752 = vpow.pop %v1751
    %v1753 = vmul.f32 %v1743, 1.442695
    %v1754 = vpow.pop %v1753
    %v1755 = vmul.f32 %v1744, 1.442695
    %v1756 = vpow.pop %v1755
    %v1757 = vmul.f32 %v1745, 1.442695
    %v1758 = vpow.pop %v1757
    %v1759 = vmul.f32 %v1746, 1.442695
    %v1760 = vpow.pop %v1759
    %v1761 = vmul.f32 %v1747, 1.442695
    %v1762 = vpow.pop %v1761
    %v1763 = vmul.f32 %v1748, 1.442695
    %v1764 = vpow.pop %v1763
    %v1765 = vsel %vm188, %v1750, 0.0
    %1766 = vadd.xlane.f32.xlu0 %v1765
    %v1767 = vpop.xlane.xlu0 %1766
    %v1768 = vsel %vm188, %v1752, 0.0
    %1769 = vadd.xlane.f32.xlu0 %v1768
    %v1770 = vpop.xlane.xlu0 %1769
    %v1771 = vsel %vm188, %v1754, 0.0
    %1772 = vadd.xlane.f32.xlu0 %v1771
    %v1773 = vpop.xlane.xlu0 %1772
    %v1774 = vsel %vm188, %v1756, 0.0
    %1775 = vadd.xlane.f32.xlu0 %v1774
    %v1776 = vpop.xlane.xlu0 %1775
    %v1777 = vsel %vm188, %v1758, 0.0
    %1778 = vadd.xlane.f32.xlu0 %v1777
    %v1779 = vpop.xlane.xlu0 %1778
    %v1780 = vsel %vm188, %v1760, 0.0
    %1781 = vadd.xlane.f32.xlu0 %v1780
    %v1782 = vpop.xlane.xlu0 %1781
    %v1783 = vsel %vm188, %v1762, 0.0
    %1784 = vadd.xlane.f32.xlu0 %v1783
    %v1785 = vpop.xlane.xlu0 %1784
    %v1786 = vsel %vm188, %v1764, 0.0
    %1787 = vadd.xlane.f32.xlu0 %v1786
    %v1788 = vpop.xlane.xlu0 %1787
    %v1789 = vrcp.pop %v1767
    %v1790 = vrcp.pop %v1770
    %v1791 = vrcp.pop %v1773
    %v1792 = vrcp.pop %v1776
    %v1793 = vrcp.pop %v1779
    %v1794 = vrcp.pop %v1782
    %v1795 = vrcp.pop %v1785
    %v1796 = vrcp.pop %v1788
    %v1797 = vmul.f32 %v1750, %v1789
    %v1798 = vmul.f32 %v1752, %v1790
    %v1799 = vmul.f32 %v1754, %v1791
    %v1800 = vmul.f32 %v1756, %v1792
    %v1801 = vmul.f32 %v1758, %v1793
    %v1802 = vmul.f32 %v1760, %v1794
    %v1803 = vmul.f32 %v1762, %v1795
    %v1804 = vmul.f32 %v1764, %v1796
    %1805 = vrot.lane.b32.xlu0 %v1314, 112
    %v1806 = vpop.permute.xlu0 %1805
    %1807 = vrot.lane.b32.xlu0 %v1319, 112
    %v1808 = vpop.permute.xlu0 %1807
    %v1812 = vsel %vm188, %v1797, 0
    %v1815 = vsel %vm188, %v1798, 0
    %1817 = vmatprep.subr.mxu0 0.0
    %1818 = vmatpush1.msra.mxu0 %v1806
    %1819 = vmatprep.subr.mxu0 0.0
    %1820 = vmatpush1.msra.mxu0 %v1808
    %1821 = vmatprep.subr.mxu0 0.0
    %1822 = vmatpush1.msra.mxu0 0.0
    %1823 = vmatprep.subr.mxu0 0.0
    %1824 = vmatpush1.msra.mxu0 0.0
    %1825 = vmatprep.subr.mxu0 0.0
    %1826 = vmatpush1.msra.mxu0 0.0
    %1827 = vmatprep.subr.mxu0 0.0
    %1828 = vmatpush1.msra.mxu0 0.0
    %1829 = vmatprep.subr.mxu0 0.0
    %1830 = vmatpush1.msra.mxu0 0.0
    %1831 = vmatprep.subr.mxu0 0.0
    %1832 = vmatpush1.msra.mxu0 0.0
    %1833 = vmatprep.subr.mxu0 0.0
    %1834 = vmatpush1.msra.mxu0 0.0
    %1835 = vmatprep.subr.mxu0 0.0
    %1836 = vmatpush1.msra.mxu0 0.0
    %1837 = vmatprep.subr.mxu0 0.0
    %1838 = vmatpush1.msra.mxu0 0.0
    %1839 = vmatprep.subr.mxu0 0.0
    %1840 = vmatpush1.msra.mxu0 0.0
    %1841 = vmatprep.subr.mxu0 0.0
    %1842 = vmatpush1.msra.mxu0 0.0
    %1843 = vmatprep.subr.mxu0 0.0
    %1844 = vmatpush1.msra.mxu0 0.0
    %1845 = vmatprep.subr.mxu0 0.0
    %1846 = vmatpush1.msra.mxu0 0.0
    %1847 = vmatprep.subr.mxu0 0.0
    %1848 = vmatpush1.msra.mxu0 0.0
    %1849 = vmatprep.subr.mxu0 0.0
    %1850 = vmatpush1.msra.mxu0 0.0
    %1851 = vmatprep.subr.mxu0 0.0
    %1852 = vmatpush1.msra.mxu0 0.0
    %1853 = vmatprep.subr.mxu0 0.0
    %1854 = vmatpush1.msra.mxu0 0.0
    %1855 = vmatprep.subr.mxu0 0.0
    %1856 = vmatpush1.msra.mxu0 0.0
    %1857 = vmatprep.subr.mxu0 0.0
    %1858 = vmatpush1.msra.mxu0 0.0
    %1859 = vmatprep.subr.mxu0 0.0
    %1860 = vmatpush1.msra.mxu0 0.0
    %1861 = vmatprep.subr.mxu0 0.0
    %1862 = vmatpush1.msra.mxu0 0.0
    %1863 = vmatprep.subr.mxu0 0.0
    %1864 = vmatpush1.msra.mxu0 0.0
    %1865 = vmatprep.subr.mxu0 0.0
    %1866 = vmatpush1.msra.mxu0 0.0
    %1867 = vmatprep.subr.mxu0 0.0
    %1868 = vmatpush1.msra.mxu0 0.0
    %1869 = vmatprep.subr.mxu0 0.0
    %1870 = vmatpush1.msra.mxu0 0.0
    %1871 = vmatprep.subr.mxu0 0.0
    %1872 = vmatpush1.msra.mxu0 0.0
    %1873 = vmatprep.subr.mxu0 0.0
    %1874 = vmatpush1.msra.mxu0 0.0
    %1875 = vmatprep.subr.mxu0 0.0
    %1876 = vmatpush1.msra.mxu0 0.0
    %1877 = vmatprep.subr.mxu0 0.0
    %1878 = vmatpush1.msra.mxu0 0.0
    %1879 = vmatprep.subr.mxu0 0.0
    %1880 = vmatpush1.msra.mxu0 0.0
    %1881 = vmatprep.mubr.f32.mxu0 0.0
    %1882 = vmatmul.mubr.f32.gmra.mrb[0].mxu0 %v1812
    %v1883 = vpop.f32.mrb[0].mxu0
    %v1884 = vadd.f32 0.0, %v1883
    %v1885 = vpop.f32.mrb[0].mxu0
    %1886 = vmatprep.mubr.f32.mxu0 0.0
    %1887 = vmatmul.mubr.f32.gmra.mrb[0].mxu0 %v1815
    %v1888 = vpop.f32.mrb[0].mxu0
    %v1889 = vadd.f32 0.0, %v1888
    %v1890 = vpop.f32.mrb[0].mxu0
    %1891 = vdwg.mxu0
    %1892 = vrot.lane.b32.xlu0 %v1324, 112
    %v1893 = vpop.permute.xlu0 %1892
    %1894 = vrot.lane.b32.xlu0 %v1329, 112
    %v1895 = vpop.permute.xlu0 %1894
    %v1899 = vsel %vm188, %v1799, 0
    %v1902 = vsel %vm188, %v1800, 0
    %1904 = vmatprep.subr.mxu0 0.0
    %1905 = vmatpush1.msra.mxu0 %v1893
    %1906 = vmatprep.subr.mxu0 0.0
    %1907 = vmatpush1.msra.mxu0 %v1895
    %1908 = vmatprep.subr.mxu0 0.0
    %1909 = vmatpush1.msra.mxu0 0.0
    %1910 = vmatprep.subr.mxu0 0.0
    %1911 = vmatpush1.msra.mxu0 0.0
    %1912 = vmatprep.subr.mxu0 0.0
    %1913 = vmatpush1.msra.mxu0 0.0
    %1914 = vmatprep.subr.mxu0 0.0
    %1915 = vmatpush1.msra.mxu0 0.0
    %1916 = vmatprep.subr.mxu0 0.0
    %1917 = vmatpush1.msra.mxu0 0.0
    %1918 = vmatprep.subr.mxu0 0.0
    %1919 = vmatpush1.msra.mxu0 0.0
    %1920 = vmatprep.subr.mxu0 0.0
    %1921 = vmatpush1.msra.mxu0 0.0
    %1922 = vmatprep.subr.mxu0 0.0
    %1923 = vmatpush1.msra.mxu0 0.0
    %1924 = vmatprep.subr.mxu0 0.0
    %1925 = vmatpush1.msra.mxu0 0.0
    %1926 = vmatprep.subr.mxu0 0.0
    %1927 = vmatpush1.msra.mxu0 0.0
    %1928 = vmatprep.subr.mxu0 0.0
    %1929 = vmatpush1.msra.mxu0 0.0
    %1930 = vmatprep.subr.mxu0 0.0
    %1931 = vmatpush1.msra.mxu0 0.0
    %1932 = vmatprep.subr.mxu0 0.0
    %1933 = vmatpush1.msra.mxu0 0.0
    %1934 = vmatprep.subr.mxu0 0.0
    %1935 = vmatpush1.msra.mxu0 0.0
    %1936 = vmatprep.subr.mxu0 0.0
    %1937 = vmatpush1.msra.mxu0 0.0
    %1938 = vmatprep.subr.mxu0 0.0
    %1939 = vmatpush1.msra.mxu0 0.0
    %1940 = vmatprep.subr.mxu0 0.0
    %1941 = vmatpush1.msra.mxu0 0.0
    %1942 = vmatprep.subr.mxu0 0.0
    %1943 = vmatpush1.msra.mxu0 0.0
    %1944 = vmatprep.subr.mxu0 0.0
    %1945 = vmatpush1.msra.mxu0 0.0
    %1946 = vmatprep.subr.mxu0 0.0
    %1947 = vmatpush1.msra.mxu0 0.0
    %1948 = vmatprep.subr.mxu0 0.0
    %1949 = vmatpush1.msra.mxu0 0.0
    %1950 = vmatprep.subr.mxu0 0.0
    %1951 = vmatpush1.msra.mxu0 0.0
    %1952 = vmatprep.subr.mxu0 0.0
    %1953 = vmatpush1.msra.mxu0 0.0
    %1954 = vmatprep.subr.mxu0 0.0
    %1955 = vmatpush1.msra.mxu0 0.0
    %1956 = vmatprep.subr.mxu0 0.0
    %1957 = vmatpush1.msra.mxu0 0.0
    %1958 = vmatprep.subr.mxu0 0.0
    %1959 = vmatpush1.msra.mxu0 0.0
    %1960 = vmatprep.subr.mxu0 0.0
    %1961 = vmatpush1.msra.mxu0 0.0
    %1962 = vmatprep.subr.mxu0 0.0
    %1963 = vmatpush1.msra.mxu0 0.0
    %1964 = vmatprep.subr.mxu0 0.0
    %1965 = vmatpush1.msra.mxu0 0.0
    %1966 = vmatprep.subr.mxu0 0.0
    %1967 = vmatpush1.msra.mxu0 0.0
    %1968 = vmatprep.mubr.f32.mxu0 0.0
    %1969 = vmatmul.mubr.f32.gmra.mrb[0].mxu0 %v1899
    %v1970 = vpop.f32.mrb[0].mxu0
    %v1971 = vadd.f32 0.0, %v1970
    %v1972 = vpop.f32.mrb[0].mxu0
    %1973 = vmatprep.mubr.f32.mxu0 0.0
    %1974 = vmatmul.mubr.f32.gmra.mrb[0].mxu0 %v1902
    %v1975 = vpop.f32.mrb[0].mxu0
    %v1976 = vadd.f32 0.0, %v1975
    %v1977 = vpop.f32.mrb[0].mxu0
    %1978 = vdwg.mxu0
    %1979 = vrot.lane.b32.xlu0 %v1334, 112
    %v1980 = vpop.permute.xlu0 %1979
    %1981 = vrot.lane.b32.xlu0 %v1339, 112
    %v1982 = vpop.permute.xlu0 %1981
    %v1986 = vsel %vm188, %v1801, 0
    %v1989 = vsel %vm188, %v1802, 0
    %1991 = vmatprep.subr.mxu0 0.0
    %1992 = vmatpush1.msra.mxu0 %v1980
    %1993 = vmatprep.subr.mxu0 0.0
    %1994 = vmatpush1.msra.mxu0 %v1982
    %1995 = vmatprep.subr.mxu0 0.0
    %1996 = vmatpush1.msra.mxu0 0.0
    %1997 = vmatprep.subr.mxu0 0.0
    %1998 = vmatpush1.msra.mxu0 0.0
    %1999 = vmatprep.subr.mxu0 0.0
    %2000 = vmatpush1.msra.mxu0 0.0
    %2001 = vmatprep.subr.mxu0 0.0
    %2002 = vmatpush1.msra.mxu0 0.0
    %2003 = vmatprep.subr.mxu0 0.0
    %2004 = vmatpush1.msra.mxu0 0.0
    %2005 = vmatprep.subr.mxu0 0.0
    %2006 = vmatpush1.msra.mxu0 0.0
    %2007 = vmatprep.subr.mxu0 0.0
    %2008 = vmatpush1.msra.mxu0 0.0
    %2009 = vmatprep.subr.mxu0 0.0
    %2010 = vmatpush1.msra.mxu0 0.0
    %2011 = vmatprep.subr.mxu0 0.0
    %2012 = vmatpush1.msra.mxu0 0.0
    %2013 = vmatprep.subr.mxu0 0.0
    %2014 = vmatpush1.msra.mxu0 0.0
    %2015 = vmatprep.subr.mxu0 0.0
    %2016 = vmatpush1.msra.mxu0 0.0
    %2017 = vmatprep.subr.mxu0 0.0
    %2018 = vmatpush1.msra.mxu0 0.0
    %2019 = vmatprep.subr.mxu0 0.0
    %2020 = vmatpush1.msra.mxu0 0.0
    %2021 = vmatprep.subr.mxu0 0.0
    %2022 = vmatpush1.msra.mxu0 0.0
    %2023 = vmatprep.subr.mxu0 0.0
    %2024 = vmatpush1.msra.mxu0 0.0
    %2025 = vmatprep.subr.mxu0 0.0
    %2026 = vmatpush1.msra.mxu0 0.0
    %2027 = vmatprep.subr.mxu0 0.0
    %2028 = vmatpush1.msra.mxu0 0.0
    %2029 = vmatprep.subr.mxu0 0.0
    %2030 = vmatpush1.msra.mxu0 0.0
    %2031 = vmatprep.subr.mxu0 0.0
    %2032 = vmatpush1.msra.mxu0 0.0
    %2033 = vmatprep.subr.mxu0 0.0
    %2034 = vmatpush1.msra.mxu0 0.0
    %2035 = vmatprep.subr.mxu0 0.0
    %2036 = vmatpush1.msra.mxu0 0.0
    %2037 = vmatprep.subr.mxu0 0.0
    %2038 = vmatpush1.msra.mxu0 0.0
    %2039 = vmatprep.subr.mxu0 0.0
    %2040 = vmatpush1.msra.mxu0 0.0
    %2041 = vmatprep.subr.mxu0 0.0
    %2042 = vmatpush1.msra.mxu0 0.0
    %2043 = vmatprep.subr.mxu0 0.0
    %2044 = vmatpush1.msra.mxu0 0.0
    %2045 = vmatprep.subr.mxu0 0.0
    %2046 = vmatpush1.msra.mxu0 0.0
    %2047 = vmatprep.subr.mxu0 0.0
    %2048 = vmatpush1.msra.mxu0 0.0
    %2049 = vmatprep.subr.mxu0 0.0
    %2050 = vmatpush1.msra.mxu0 0.0
    %2051 = vmatprep.subr.mxu0 0.0
    %2052 = vmatpush1.msra.mxu0 0.0
    %2053 = vmatprep.subr.mxu0 0.0
    %2054 = vmatpush1.msra.mxu0 0.0
    %2055 = vmatprep.mubr.f32.mxu0 0.0
    %2056 = vmatmul.mubr.f32.gmra.mrb[0].mxu0 %v1986
    %v2057 = vpop.f32.mrb[0].mxu0
    %v2058 = vadd.f32 0.0, %v2057
    %v2059 = vpop.f32.mrb[0].mxu0
    %2060 = vmatprep.mubr.f32.mxu0 0.0
    %2061 = vmatmul.mubr.f32.gmra.mrb[0].mxu0 %v1989
    %v2062 = vpop.f32.mrb[0].mxu0
    %v2063 = vadd.f32 0.0, %v2062
    %v2064 = vpop.f32.mrb[0].mxu0
    %2065 = vdwg.mxu0
    %2066 = vrot.lane.b32.xlu0 %v1344, 112
    %v2067 = vpop.permute.xlu0 %2066
    %2068 = vrot.lane.b32.xlu0 %v1349, 112
    %v2069 = vpop.permute.xlu0 %2068
    %v2073 = vsel %vm188, %v1803, 0
    %v2076 = vsel %vm188, %v1804, 0
    %2078 = vmatprep.subr.mxu0 0.0
    %2079 = vmatpush1.msra.mxu0 %v2067
    %2080 = vmatprep.subr.mxu0 0.0
    %2081 = vmatpush1.msra.mxu0 %v2069
    %2082 = vmatprep.subr.mxu0 0.0
    %2083 = vmatpush1.msra.mxu0 0.0
    %2084 = vmatprep.subr.mxu0 0.0
    %2085 = vmatpush1.msra.mxu0 0.0
    %2086 = vmatprep.subr.mxu0 0.0
    %2087 = vmatpush1.msra.mxu0 0.0
    %2088 = vmatprep.subr.mxu0 0.0
    %2089 = vmatpush1.msra.mxu0 0.0
    %2090 = vmatprep.subr.mxu0 0.0
    %2091 = vmatpush1.msra.mxu0 0.0
    %2092 = vmatprep.subr.mxu0 0.0
    %2093 = vmatpush1.msra.mxu0 0.0
    %2094 = vmatprep.subr.mxu0 0.0
    %2095 = vmatpush1.msra.mxu0 0.0
    %2096 = vmatprep.subr.mxu0 0.0
    %2097 = vmatpush1.msra.mxu0 0.0
    %2098 = vmatprep.subr.mxu0 0.0
    %2099 = vmatpush1.msra.mxu0 0.0
    %2100 = vmatprep.subr.mxu0 0.0
    %2101 = vmatpush1.msra.mxu0 0.0
    %2102 = vmatprep.subr.mxu0 0.0
    %2103 = vmatpush1.msra.mxu0 0.0
    %2104 = vmatprep.subr.mxu0 0.0
    %2105 = vmatpush1.msra.mxu0 0.0
    %2106 = vmatprep.subr.mxu0 0.0
    %2107 = vmatpush1.msra.mxu0 0.0
    %2108 = vmatprep.subr.mxu0 0.0
    %2109 = vmatpush1.msra.mxu0 0.0
    %2110 = vmatprep.subr.mxu0 0.0
    %2111 = vmatpush1.msra.mxu0 0.0
    %2112 = vmatprep.subr.mxu0 0.0
    %2113 = vmatpush1.msra.mxu0 0.0
    %2114 = vmatprep.subr.mxu0 0.0
    %2115 = vmatpush1.msra.mxu0 0.0
    %2116 = vmatprep.subr.mxu0 0.0
    %2117 = vmatpush1.msra.mxu0 0.0
    %2118 = vmatprep.subr.mxu0 0.0
    %2119 = vmatpush1.msra.mxu0 0.0
    %2120 = vmatprep.subr.mxu0 0.0
    %2121 = vmatpush1.msra.mxu0 0.0
    %2122 = vmatprep.subr.mxu0 0.0
    %2123 = vmatpush1.msra.mxu0 0.0
    %2124 = vmatprep.subr.mxu0 0.0
    %2125 = vmatpush1.msra.mxu0 0.0
    %2126 = vmatprep.subr.mxu0 0.0
    %2127 = vmatpush1.msra.mxu0 0.0
    %2128 = vmatprep.subr.mxu0 0.0
    %2129 = vmatpush1.msra.mxu0 0.0
    %2130 = vmatprep.subr.mxu0 0.0
    %2131 = vmatpush1.msra.mxu0 0.0
    %2132 = vmatprep.subr.mxu0 0.0
    %2133 = vmatpush1.msra.mxu0 0.0
    %2134 = vmatprep.subr.mxu0 0.0
    %2135 = vmatpush1.msra.mxu0 0.0
    %2136 = vmatprep.subr.mxu0 0.0
    %2137 = vmatpush1.msra.mxu0 0.0
    %2138 = vmatprep.subr.mxu0 0.0
    %2139 = vmatpush1.msra.mxu0 0.0
    %2140 = vmatprep.subr.mxu0 0.0
    %2141 = vmatpush1.msra.mxu0 0.0
    %2142 = vmatprep.mubr.f32.mxu0 0.0
    %2143 = vmatmul.mubr.f32.gmra.mrb[0].mxu0 %v2073
    %v2144 = vpop.f32.mrb[0].mxu0
    %v2145 = vadd.f32 0.0, %v2144
    %v2146 = vpop.f32.mrb[0].mxu0
    %2147 = vmatprep.mubr.f32.mxu0 0.0
    %2148 = vmatmul.mubr.f32.gmra.mrb[0].mxu0 %v2076
    %v2149 = vpop.f32.mrb[0].mxu0
    %v2150 = vadd.f32 0.0, %v2149
    %v2151 = vpop.f32.mrb[0].mxu0
    %2152 = vdwg.mxu0
    %2153 = vrot.lane.b32.xlu0 %v1314, 124
    %v2154 = vpop.permute.xlu0 %2153
    %2155 = vrot.lane.b32.xlu0 %v1319, 124
    %v2156 = vpop.permute.xlu0 %2155
    %2157 = vrot.lane.b32.xlu0 %v1314, 116
    %v2158 = vpop.permute.xlu0 %2157
    %2159 = vrot.lane.b32.xlu0 %v1319, 116
    %v2160 = vpop.permute.xlu0 %2159
    %v2161 = vsel %vm1358, %v2154, 0
    %v2163 = vsel %vm1358, %v2156, 0
    %v2165 = vsel %vm1358, %v2158, 0
    %v2167 = vsel %vm1358, %v2160, 0
    %2169 = vmatprep.subr.mxu0 0.0
    %2170 = vmatpush1.xpose.msra.mxu0 %v2165
    %2171 = vmatprep.subr.mxu0 0.0
    %2172 = vmatpush1.xpose.msra.mxu0 %v2167
    %2173 = vmatprep.subr.mxu0 0.0
    %2174 = vmatpush1.xpose.msra.mxu0 0.0
    %2175 = vmatprep.subr.mxu0 0.0
    %2176 = vmatpush1.xpose.msra.mxu0 0.0
    %2177 = vmatprep.subr.mxu0 0.0
    %2178 = vmatpush1.xpose.msra.mxu0 0.0
    %2179 = vmatprep.subr.mxu0 0.0
    %2180 = vmatpush1.xpose.msra.mxu0 0.0
    %2181 = vmatprep.subr.mxu0 0.0
    %2182 = vmatpush1.xpose.msra.mxu0 0.0
    %2183 = vmatprep.subr.mxu0 0.0
    %2184 = vmatpush1.xpose.msra.mxu0 0.0
    %2185 = vmatprep.subr.mxu0 0.0
    %2186 = vmatpush1.xpose.msra.mxu0 0.0
    %2187 = vmatprep.subr.mxu0 0.0
    %2188 = vmatpush1.xpose.msra.mxu0 0.0
    %2189 = vmatprep.subr.mxu0 0.0
    %2190 = vmatpush1.xpose.msra.mxu0 0.0
    %2191 = vmatprep.subr.mxu0 0.0
    %2192 = vmatpush1.xpose.msra.mxu0 0.0
    %2193 = vmatprep.subr.mxu0 0.0
    %2194 = vmatpush1.xpose.msra.mxu0 0.0
    %2195 = vmatprep.subr.mxu0 0.0
    %2196 = vmatpush1.xpose.msra.mxu0 0.0
    %2197 = vmatprep.subr.mxu0 0.0
    %2198 = vmatpush1.xpose.msra.mxu0 0.0
    %2199 = vmatprep.subr.mxu0 0.0
    %2200 = vmatpush1.xpose.msra.mxu0 0.0
    %2201 = vmatprep.subr.mxu0 0.0
    %2202 = vmatpush1.xpose.msra.mxu0 0.0
    %2203 = vmatprep.subr.mxu0 0.0
    %2204 = vmatpush1.xpose.msra.mxu0 0.0
    %2205 = vmatprep.subr.mxu0 0.0
    %2206 = vmatpush1.xpose.msra.mxu0 0.0
    %2207 = vmatprep.subr.mxu0 0.0
    %2208 = vmatpush1.xpose.msra.mxu0 0.0
    %2209 = vmatprep.subr.mxu0 0.0
    %2210 = vmatpush1.xpose.msra.mxu0 0.0
    %2211 = vmatprep.subr.mxu0 0.0
    %2212 = vmatpush1.xpose.msra.mxu0 0.0
    %2213 = vmatprep.subr.mxu0 0.0
    %2214 = vmatpush1.xpose.msra.mxu0 0.0
    %2215 = vmatprep.subr.mxu0 0.0
    %2216 = vmatpush1.xpose.msra.mxu0 0.0
    %2217 = vmatprep.subr.mxu0 0.0
    %2218 = vmatpush1.xpose.msra.mxu0 0.0
    %2219 = vmatprep.subr.mxu0 0.0
    %2220 = vmatpush1.xpose.msra.mxu0 0.0
    %2221 = vmatprep.subr.mxu0 0.0
    %2222 = vmatpush1.xpose.msra.mxu0 0.0
    %2223 = vmatprep.subr.mxu0 0.0
    %2224 = vmatpush1.xpose.msra.mxu0 0.0
    %2225 = vmatprep.subr.mxu0 0.0
    %2226 = vmatpush1.xpose.msra.mxu0 0.0
    %2227 = vmatprep.subr.mxu0 0.0
    %2228 = vmatpush1.xpose.msra.mxu0 0.0
    %2229 = vmatprep.subr.mxu0 0.0
    %2230 = vmatpush1.xpose.msra.mxu0 0.0
    %2231 = vmatprep.subr.mxu0 0.0
    %2232 = vmatpush1.xpose.msra.mxu0 0.0
    %2233 = vmatprep.mubr.f32.mxu0 0.0
    %2234 = vmatmul.mubr.f32.gmra.mrb[0].mxu0 %v2161
    %v2235 = vpop.f32.mrb[0].mxu0
    %v2236 = vadd.f32 0.0, %v2235
    %v2237 = vpop.f32.mrb[0].mxu0
    %2238 = vmatprep.mubr.f32.mxu0 0.0
    %2239 = vmatmul.mubr.f32.gmra.mrb[0].mxu0 %v2163
    %v2240 = vpop.f32.mrb[0].mxu0
    %v2241 = vadd.f32 0.0, %v2240
    %v2242 = vpop.f32.mrb[0].mxu0
    %2243 = vdwg.mxu0
    %2244 = vrot.lane.b32.xlu0 %v1324, 124
    %v2245 = vpop.permute.xlu0 %2244
    %2246 = vrot.lane.b32.xlu0 %v1329, 124
    %v2247 = vpop.permute.xlu0 %2246
    %2248 = vrot.lane.b32.xlu0 %v1324, 116
    %v2249 = vpop.permute.xlu0 %2248
    %2250 = vrot.lane.b32.xlu0 %v1329, 116
    %v2251 = vpop.permute.xlu0 %2250
    %v2252 = vsel %vm1358, %v2245, 0
    %v2254 = vsel %vm1358, %v2247, 0
    %v2256 = vsel %vm1358, %v2249, 0
    %v2258 = vsel %vm1358, %v2251, 0
    %2260 = vmatprep.subr.mxu0 0.0
    %2261 = vmatpush1.xpose.msra.mxu0 %v2256
    %2262 = vmatprep.subr.mxu0 0.0
    %2263 = vmatpush1.xpose.msra.mxu0 %v2258
    %2264 = vmatprep.subr.mxu0 0.0
    %2265 = vmatpush1.xpose.msra.mxu0 0.0
    %2266 = vmatprep.subr.mxu0 0.0
    %2267 = vmatpush1.xpose.msra.mxu0 0.0
    %2268 = vmatprep.subr.mxu0 0.0
    %2269 = vmatpush1.xpose.msra.mxu0 0.0
    %2270 = vmatprep.subr.mxu0 0.0
    %2271 = vmatpush1.xpose.msra.mxu0 0.0
    %2272 = vmatprep.subr.mxu0 0.0
    %2273 = vmatpush1.xpose.msra.mxu0 0.0
    %2274 = vmatprep.subr.mxu0 0.0
    %2275 = vmatpush1.xpose.msra.mxu0 0.0
    %2276 = vmatprep.subr.mxu0 0.0
    %2277 = vmatpush1.xpose.msra.mxu0 0.0
    %2278 = vmatprep.subr.mxu0 0.0
    %2279 = vmatpush1.xpose.msra.mxu0 0.0
    %2280 = vmatprep.subr.mxu0 0.0
    %2281 = vmatpush1.xpose.msra.mxu0 0.0
    %2282 = vmatprep.subr.mxu0 0.0
    %2283 = vmatpush1.xpose.msra.mxu0 0.0
    %2284 = vmatprep.subr.mxu0 0.0
    %2285 = vmatpush1.xpose.msra.mxu0 0.0
    %2286 = vmatprep.subr.mxu0 0.0
    %2287 = vmatpush1.xpose.msra.mxu0 0.0
    %2288 = vmatprep.subr.mxu0 0.0
    %2289 = vmatpush1.xpose.msra.mxu0 0.0
    %2290 = vmatprep.subr.mxu0 0.0
    %2291 = vmatpush1.xpose.msra.mxu0 0.0
    %2292 = vmatprep.subr.mxu0 0.0
    %2293 = vmatpush1.xpose.msra.mxu0 0.0
    %2294 = vmatprep.subr.mxu0 0.0
    %2295 = vmatpush1.xpose.msra.mxu0 0.0
    %2296 = vmatprep.subr.mxu0 0.0
    %2297 = vmatpush1.xpose.msra.mxu0 0.0
    %2298 = vmatprep.subr.mxu0 0.0
    %2299 = vmatpush1.xpose.msra.mxu0 0.0
    %2300 = vmatprep.subr.mxu0 0.0
    %2301 = vmatpush1.xpose.msra.mxu0 0.0
    %2302 = vmatprep.subr.mxu0 0.0
    %2303 = vmatpush1.xpose.msra.mxu0 0.0
    %2304 = vmatprep.subr.mxu0 0.0
    %2305 = vmatpush1.xpose.msra.mxu0 0.0
    %2306 = vmatprep.subr.mxu0 0.0
    %2307 = vmatpush1.xpose.msra.mxu0 0.0
    %2308 = vmatprep.subr.mxu0 0.0
    %2309 = vmatpush1.xpose.msra.mxu0 0.0
    %2310 = vmatprep.subr.mxu0 0.0
    %2311 = vmatpush1.xpose.msra.mxu0 0.0
    %2312 = vmatprep.subr.mxu0 0.0
    %2313 = vmatpush1.xpose.msra.mxu0 0.0
    %2314 = vmatprep.subr.mxu0 0.0
    %2315 = vmatpush1.xpose.msra.mxu0 0.0
    %2316 = vmatprep.subr.mxu0 0.0
    %2317 = vmatpush1.xpose.msra.mxu0 0.0
    %2318 = vmatprep.subr.mxu0 0.0
    %2319 = vmatpush1.xpose.msra.mxu0 0.0
    %2320 = vmatprep.subr.mxu0 0.0
    %2321 = vmatpush1.xpose.msra.mxu0 0.0
    %2322 = vmatprep.subr.mxu0 0.0
    %2323 = vmatpush1.xpose.msra.mxu0 0.0
    %2324 = vmatprep.mubr.f32.mxu0 0.0
    %2325 = vmatmul.mubr.f32.gmra.mrb[0].mxu0 %v2252
    %v2326 = vpop.f32.mrb[0].mxu0
    %v2327 = vadd.f32 0.0, %v2326
    %v2328 = vpop.f32.mrb[0].mxu0
    %2329 = vmatprep.mubr.f32.mxu0 0.0
    %2330 = vmatmul.mubr.f32.gmra.mrb[0].mxu0 %v2254
    %v2331 = vpop.f32.mrb[0].mxu0
    %v2332 = vadd.f32 0.0, %v2331
    %v2333 = vpop.f32.mrb[0].mxu0
    %2334 = vdwg.mxu0
    %2335 = vrot.lane.b32.xlu0 %v1334, 124
    %v2336 = vpop.permute.xlu0 %2335
    %2337 = vrot.lane.b32.xlu0 %v1339, 124
    %v2338 = vpop.permute.xlu0 %2337
    %2339 = vrot.lane.b32.xlu0 %v1334, 116
    %v2340 = vpop.permute.xlu0 %2339
    %2341 = vrot.lane.b32.xlu0 %v1339, 116
    %v2342 = vpop.permute.xlu0 %2341
    %v2343 = vsel %vm1358, %v2336, 0
    %v2345 = vsel %vm1358, %v2338, 0
    %v2347 = vsel %vm1358, %v2340, 0
    %v2349 = vsel %vm1358, %v2342, 0
    %2351 = vmatprep.subr.mxu0 0.0
    %2352 = vmatpush1.xpose.msra.mxu0 %v2347
    %2353 = vmatprep.subr.mxu0 0.0
    %2354 = vmatpush1.xpose.msra.mxu0 %v2349
    %2355 = vmatprep.subr.mxu0 0.0
    %2356 = vmatpush1.xpose.msra.mxu0 0.0
    %2357 = vmatprep.subr.mxu0 0.0
    %2358 = vmatpush1.xpose.msra.mxu0 0.0
    %2359 = vmatprep.subr.mxu0 0.0
    %2360 = vmatpush1.xpose.msra.mxu0 0.0
    %2361 = vmatprep.subr.mxu0 0.0
    %2362 = vmatpush1.xpose.msra.mxu0 0.0
    %2363 = vmatprep.subr.mxu0 0.0
    %2364 = vmatpush1.xpose.msra.mxu0 0.0
    %2365 = vmatprep.subr.mxu0 0.0
    %2366 = vmatpush1.xpose.msra.mxu0 0.0
    %2367 = vmatprep.subr.mxu0 0.0
    %2368 = vmatpush1.xpose.msra.mxu0 0.0
    %2369 = vmatprep.subr.mxu0 0.0
    %2370 = vmatpush1.xpose.msra.mxu0 0.0
    %2371 = vmatprep.subr.mxu0 0.0
    %2372 = vmatpush1.xpose.msra.mxu0 0.0
    %2373 = vmatprep.subr.mxu0 0.0
    %2374 = vmatpush1.xpose.msra.mxu0 0.0
    %2375 = vmatprep.subr.mxu0 0.0
    %2376 = vmatpush1.xpose.msra.mxu0 0.0
    %2377 = vmatprep.subr.mxu0 0.0
    %2378 = vmatpush1.xpose.msra.mxu0 0.0
    %2379 = vmatprep.subr.mxu0 0.0
    %2380 = vmatpush1.xpose.msra.mxu0 0.0
    %2381 = vmatprep.subr.mxu0 0.0
    %2382 = vmatpush1.xpose.msra.mxu0 0.0
    %2383 = vmatprep.subr.mxu0 0.0
    %2384 = vmatpush1.xpose.msra.mxu0 0.0
    %2385 = vmatprep.subr.mxu0 0.0
    %2386 = vmatpush1.xpose.msra.mxu0 0.0
    %2387 = vmatprep.subr.mxu0 0.0
    %2388 = vmatpush1.xpose.msra.mxu0 0.0
    %2389 = vmatprep.subr.mxu0 0.0
    %2390 = vmatpush1.xpose.msra.mxu0 0.0
    %2391 = vmatprep.subr.mxu0 0.0
    %2392 = vmatpush1.xpose.msra.mxu0 0.0
    %2393 = vmatprep.subr.mxu0 0.0
    %2394 = vmatpush1.xpose.msra.mxu0 0.0
    %2395 = vmatprep.subr.mxu0 0.0
    %2396 = vmatpush1.xpose.msra.mxu0 0.0
    %2397 = vmatprep.subr.mxu0 0.0
    %2398 = vmatpush1.xpose.msra.mxu0 0.0
    %2399 = vmatprep.subr.mxu0 0.0
    %2400 = vmatpush1.xpose.msra.mxu0 0.0
    %2401 = vmatprep.subr.mxu0 0.0
    %2402 = vmatpush1.xpose.msra.mxu0 0.0
    %2403 = vmatprep.subr.mxu0 0.0
    %2404 = vmatpush1.xpose.msra.mxu0 0.0
    %2405 = vmatprep.subr.mxu0 0.0
    %2406 = vmatpush1.xpose.msra.mxu0 0.0
    %2407 = vmatprep.subr.mxu0 0.0
    %2408 = vmatpush1.xpose.msra.mxu0 0.0
    %2409 = vmatprep.subr.mxu0 0.0
    %2410 = vmatpush1.xpose.msra.mxu0 0.0
    %2411 = vmatprep.subr.mxu0 0.0
    %2412 = vmatpush1.xpose.msra.mxu0 0.0
    %2413 = vmatprep.subr.mxu0 0.0
    %2414 = vmatpush1.xpose.msra.mxu0 0.0
    %2415 = vmatprep.mubr.f32.mxu0 0.0
    %2416 = vmatmul.mubr.f32.gmra.mrb[0].mxu0 %v2343
    %v2417 = vpop.f32.mrb[0].mxu0
    %v2418 = vadd.f32 0.0, %v2417
    %v2419 = vpop.f32.mrb[0].mxu0
    %2420 = vmatprep.mubr.f32.mxu0 0.0
    %2421 = vmatmul.mubr.f32.gmra.mrb[0].mxu0 %v2345
    %v2422 = vpop.f32.mrb[0].mxu0
    %v2423 = vadd.f32 0.0, %v2422
    %v2424 = vpop.f32.mrb[0].mxu0
    %2425 = vdwg.mxu0
    %2426 = vrot.lane.b32.xlu0 %v1344, 124
    %v2427 = vpop.permute.xlu0 %2426
    %2428 = vrot.lane.b32.xlu0 %v1349, 124
    %v2429 = vpop.permute.xlu0 %2428
    %2430 = vrot.lane.b32.xlu0 %v1344, 116
    %v2431 = vpop.permute.xlu0 %2430
    %2432 = vrot.lane.b32.xlu0 %v1349, 116
    %v2433 = vpop.permute.xlu0 %2432
    %v2434 = vsel %vm1358, %v2427, 0
    %v2436 = vsel %vm1358, %v2429, 0
    %v2438 = vsel %vm1358, %v2431, 0
    %v2440 = vsel %vm1358, %v2433, 0
    %2442 = vmatprep.subr.mxu0 0.0
    %2443 = vmatpush1.xpose.msra.mxu0 %v2438
    %2444 = vmatprep.subr.mxu0 0.0
    %2445 = vmatpush1.xpose.msra.mxu0 %v2440
    %2446 = vmatprep.subr.mxu0 0.0
    %2447 = vmatpush1.xpose.msra.mxu0 0.0
    %2448 = vmatprep.subr.mxu0 0.0
    %2449 = vmatpush1.xpose.msra.mxu0 0.0
    %2450 = vmatprep.subr.mxu0 0.0
    %2451 = vmatpush1.xpose.msra.mxu0 0.0
    %2452 = vmatprep.subr.mxu0 0.0
    %2453 = vmatpush1.xpose.msra.mxu0 0.0
    %2454 = vmatprep.subr.mxu0 0.0
    %2455 = vmatpush1.xpose.msra.mxu0 0.0
    %2456 = vmatprep.subr.mxu0 0.0
    %2457 = vmatpush1.xpose.msra.mxu0 0.0
    %2458 = vmatprep.subr.mxu0 0.0
    %2459 = vmatpush1.xpose.msra.mxu0 0.0
    %2460 = vmatprep.subr.mxu0 0.0
    %2461 = vmatpush1.xpose.msra.mxu0 0.0
    %2462 = vmatprep.subr.mxu0 0.0
    %2463 = vmatpush1.xpose.msra.mxu0 0.0
    %2464 = vmatprep.subr.mxu0 0.0
    %2465 = vmatpush1.xpose.msra.mxu0 0.0
    %2466 = vmatprep.subr.mxu0 0.0
    %2467 = vmatpush1.xpose.msra.mxu0 0.0
    %2468 = vmatprep.subr.mxu0 0.0
    %2469 = vmatpush1.xpose.msra.mxu0 0.0
    %2470 = vmatprep.subr.mxu0 0.0
    %2471 = vmatpush1.xpose.msra.mxu0 0.0
    %2472 = vmatprep.subr.mxu0 0.0
    %2473 = vmatpush1.xpose.msra.mxu0 0.0
    %2474 = vmatprep.subr.mxu0 0.0
    %2475 = vmatpush1.xpose.msra.mxu0 0.0
    %2476 = vmatprep.subr.mxu0 0.0
    %2477 = vmatpush1.xpose.msra.mxu0 0.0
    %2478 = vmatprep.subr.mxu0 0.0
    %2479 = vmatpush1.xpose.msra.mxu0 0.0
    %2480 = vmatprep.subr.mxu0 0.0
    %2481 = vmatpush1.xpose.msra.mxu0 0.0
    %2482 = vmatprep.subr.mxu0 0.0
    %2483 = vmatpush1.xpose.msra.mxu0 0.0
    %2484 = vmatprep.subr.mxu0 0.0
    %2485 = vmatpush1.xpose.msra.mxu0 0.0
    %2486 = vmatprep.subr.mxu0 0.0
    %2487 = vmatpush1.xpose.msra.mxu0 0.0
    %2488 = vmatprep.subr.mxu0 0.0
    %2489 = vmatpush1.xpose.msra.mxu0 0.0
    %2490 = vmatprep.subr.mxu0 0.0
    %2491 = vmatpush1.xpose.msra.mxu0 0.0
    %2492 = vmatprep.subr.mxu0 0.0
    %2493 = vmatpush1.xpose.msra.mxu0 0.0
    %2494 = vmatprep.subr.mxu0 0.0
    %2495 = vmatpush1.xpose.msra.mxu0 0.0
    %2496 = vmatprep.subr.mxu0 0.0
    %2497 = vmatpush1.xpose.msra.mxu0 0.0
    %2498 = vmatprep.subr.mxu0 0.0
    %2499 = vmatpush1.xpose.msra.mxu0 0.0
    %2500 = vmatprep.subr.mxu0 0.0
    %2501 = vmatpush1.xpose.msra.mxu0 0.0
    %2502 = vmatprep.subr.mxu0 0.0
    %2503 = vmatpush1.xpose.msra.mxu0 0.0
    %2504 = vmatprep.subr.mxu0 0.0
    %2505 = vmatpush1.xpose.msra.mxu0 0.0
    %2506 = vmatprep.mubr.f32.mxu0 0.0
    %2507 = vmatmul.mubr.f32.gmra.mrb[0].mxu0 %v2434
    %v2508 = vpop.f32.mrb[0].mxu0
    %v2509 = vadd.f32 0.0, %v2508
    %v2510 = vpop.f32.mrb[0].mxu0
    %2511 = vmatprep.mubr.f32.mxu0 0.0
    %2512 = vmatmul.mubr.f32.gmra.mrb[0].mxu0 %v2436
    %v2513 = vpop.f32.mrb[0].mxu0
    %v2514 = vadd.f32 0.0, %v2513
    %v2515 = vpop.f32.mrb[0].mxu0
    %2516 = vdwg.mxu0
    %v2517 = vmul.f32 %v2236, 0.5
    %v2518 = vmul.f32 %v2241, 0.5
    %v2519 = vmul.f32 %v2327, 0.5
    %v2520 = vmul.f32 %v2332, 0.5
    %v2521 = vmul.f32 %v2418, 0.5
    %v2522 = vmul.f32 %v2423, 0.5
    %v2523 = vmul.f32 %v2509, 0.5
    %v2524 = vmul.f32 %v2514, 0.5
    %v2525 = vsel %vm188, %v2517, -inf
    %2526 = vmax.xlane.f32.xlu0 %v2525
    %v2527 = vpop.xlane.xlu0 %2526
    %v2528 = vsel %vm188, %v2518, -inf
    %2529 = vmax.xlane.f32.xlu0 %v2528
    %v2530 = vpop.xlane.xlu0 %2529
    %v2531 = vsel %vm188, %v2519, -inf
    %2532 = vmax.xlane.f32.xlu0 %v2531
    %v2533 = vpop.xlane.xlu0 %2532
    %v2534 = vsel %vm188, %v2520, -inf
    %2535 = vmax.xlane.f32.xlu0 %v2534
    %v2536 = vpop.xlane.xlu0 %2535
    %v2537 = vsel %vm188, %v2521, -inf
    %2538 = vmax.xlane.f32.xlu0 %v2537
    %v2539 = vpop.xlane.xlu0 %2538
    %v2540 = vsel %vm188, %v2522, -inf
    %2541 = vmax.xlane.f32.xlu0 %v2540
    %v2542 = vpop.xlane.xlu0 %2541
    %v2543 = vsel %vm188, %v2523, -inf
    %2544 = vmax.xlane.f32.xlu0 %v2543
    %v2545 = vpop.xlane.xlu0 %2544
    %v2546 = vsel %vm188, %v2524, -inf
    %2547 = vmax.xlane.f32.xlu0 %v2546
    %v2548 = vpop.xlane.xlu0 %2547
    %v2549 = vsub.f32 %v2517, %v2527
    %v2550 = vsub.f32 %v2518, %v2530
    %v2551 = vsub.f32 %v2519, %v2533
    %v2552 = vsub.f32 %v2520, %v2536
    %v2553 = vsub.f32 %v2521, %v2539
    %v2554 = vsub.f32 %v2522, %v2542
    %v2555 = vsub.f32 %v2523, %v2545
    %v2556 = vsub.f32 %v2524, %v2548
    %v2557 = vmul.f32 %v2549, 1.442695
    %v2558 = vpow.pop %v2557
    %v2559 = vmul.f32 %v2550, 1.442695
    %v2560 = vpow.pop %v2559
    %v2561 = vmul.f32 %v2551, 1.442695
    %v2562 = vpow.pop %v2561
    %v2563 = vmul.f32 %v2552, 1.442695
    %v2564 = vpow.pop %v2563
    %v2565 = vmul.f32 %v2553, 1.442695
    %v2566 = vpow.pop %v2565
    %v2567 = vmul.f32 %v2554, 1.442695
    %v2568 = vpow.pop %v2567
    %v2569 = vmul.f32 %v2555, 1.442695
    %v2570 = vpow.pop %v2569
    %v2571 = vmul.f32 %v2556, 1.442695
    %v2572 = vpow.pop %v2571
    %v2573 = vsel %vm188, %v2558, 0.0
    %2574 = vadd.xlane.f32.xlu0 %v2573
    %v2575 = vpop.xlane.xlu0 %2574
    %v2576 = vsel %vm188, %v2560, 0.0
    %2577 = vadd.xlane.f32.xlu0 %v2576
    %v2578 = vpop.xlane.xlu0 %2577
    %v2579 = vsel %vm188, %v2562, 0.0
    %2580 = vadd.xlane.f32.xlu0 %v2579
    %v2581 = vpop.xlane.xlu0 %2580
    %v2582 = vsel %vm188, %v2564, 0.0
    %2583 = vadd.xlane.f32.xlu0 %v2582
    %v2584 = vpop.xlane.xlu0 %2583
    %v2585 = vsel %vm188, %v2566, 0.0
    %2586 = vadd.xlane.f32.xlu0 %v2585
    %v2587 = vpop.xlane.xlu0 %2586
    %v2588 = vsel %vm188, %v2568, 0.0
    %2589 = vadd.xlane.f32.xlu0 %v2588
    %v2590 = vpop.xlane.xlu0 %2589
    %v2591 = vsel %vm188, %v2570, 0.0
    %2592 = vadd.xlane.f32.xlu0 %v2591
    %v2593 = vpop.xlane.xlu0 %2592
    %v2594 = vsel %vm188, %v2572, 0.0
    %2595 = vadd.xlane.f32.xlu0 %v2594
    %v2596 = vpop.xlane.xlu0 %2595
    %v2597 = vrcp.pop %v2575
    %v2598 = vrcp.pop %v2578
    %v2599 = vrcp.pop %v2581
    %v2600 = vrcp.pop %v2584
    %v2601 = vrcp.pop %v2587
    %v2602 = vrcp.pop %v2590
    %v2603 = vrcp.pop %v2593
    %v2604 = vrcp.pop %v2596
    %v2605 = vmul.f32 %v2558, %v2597
    %v2606 = vmul.f32 %v2560, %v2598
    %v2607 = vmul.f32 %v2562, %v2599
    %v2608 = vmul.f32 %v2564, %v2600
    %v2609 = vmul.f32 %v2566, %v2601
    %v2610 = vmul.f32 %v2568, %v2602
    %v2611 = vmul.f32 %v2570, %v2603
    %v2612 = vmul.f32 %v2572, %v2604
    %2613 = vrot.lane.b32.xlu0 %v1314, 108
    %v2614 = vpop.permute.xlu0 %2613
    %2615 = vrot.lane.b32.xlu0 %v1319, 108
    %v2616 = vpop.permute.xlu0 %2615
    %v2620 = vsel %vm188, %v2605, 0
    %v2623 = vsel %vm188, %v2606, 0
    %2625 = vmatprep.subr.mxu0 0.0
    %2626 = vmatpush1.msra.mxu0 %v2614
    %2627 = vmatprep.subr.mxu0 0.0
    %2628 = vmatpush1.msra.mxu0 %v2616
    %2629 = vmatprep.subr.mxu0 0.0
    %2630 = vmatpush1.msra.mxu0 0.0
    %2631 = vmatprep.subr.mxu0 0.0
    %2632 = vmatpush1.msra.mxu0 0.0
    %2633 = vmatprep.subr.mxu0 0.0
    %2634 = vmatpush1.msra.mxu0 0.0
    %2635 = vmatprep.subr.mxu0 0.0
    %2636 = vmatpush1.msra.mxu0 0.0
    %2637 = vmatprep.subr.mxu0 0.0
    %2638 = vmatpush1.msra.mxu0 0.0
    %2639 = vmatprep.subr.mxu0 0.0
    %2640 = vmatpush1.msra.mxu0 0.0
    %2641 = vmatprep.subr.mxu0 0.0
    %2642 = vmatpush1.msra.mxu0 0.0
    %2643 = vmatprep.subr.mxu0 0.0
    %2644 = vmatpush1.msra.mxu0 0.0
    %2645 = vmatprep.subr.mxu0 0.0
    %2646 = vmatpush1.msra.mxu0 0.0
    %2647 = vmatprep.subr.mxu0 0.0
    %2648 = vmatpush1.msra.mxu0 0.0
    %2649 = vmatprep.subr.mxu0 0.0
    %2650 = vmatpush1.msra.mxu0 0.0
    %2651 = vmatprep.subr.mxu0 0.0
    %2652 = vmatpush1.msra.mxu0 0.0
    %2653 = vmatprep.subr.mxu0 0.0
    %2654 = vmatpush1.msra.mxu0 0.0
    %2655 = vmatprep.subr.mxu0 0.0
    %2656 = vmatpush1.msra.mxu0 0.0
    %2657 = vmatprep.subr.mxu0 0.0
    %2658 = vmatpush1.msra.mxu0 0.0
    %2659 = vmatprep.subr.mxu0 0.0
    %2660 = vmatpush1.msra.mxu0 0.0
    %2661 = vmatprep.subr.mxu0 0.0
    %2662 = vmatpush1.msra.mxu0 0.0
    %2663 = vmatprep.subr.mxu0 0.0
    %2664 = vmatpush1.msra.mxu0 0.0
    %2665 = vmatprep.subr.mxu0 0.0
    %2666 = vmatpush1.msra.mxu0 0.0
    %2667 = vmatprep.subr.mxu0 0.0
    %2668 = vmatpush1.msra.mxu0 0.0
    %2669 = vmatprep.subr.mxu0 0.0
    %2670 = vmatpush1.msra.mxu0 0.0
    %2671 = vmatprep.subr.mxu0 0.0
    %2672 = vmatpush1.msra.mxu0 0.0
    %2673 = vmatprep.subr.mxu0 0.0
    %2674 = vmatpush1.msra.mxu0 0.0
    %2675 = vmatprep.subr.mxu0 0.0
    %2676 = vmatpush1.msra.mxu0 0.0
    %2677 = vmatprep.subr.mxu0 0.0
    %2678 = vmatpush1.msra.mxu0 0.0
    %2679 = vmatprep.subr.mxu0 0.0
    %2680 = vmatpush1.msra.mxu0 0.0
    %2681 = vmatprep.subr.mxu0 0.0
    %2682 = vmatpush1.msra.mxu0 0.0
    %2683 = vmatprep.subr.mxu0 0.0
    %2684 = vmatpush1.msra.mxu0 0.0
    %2685 = vmatprep.subr.mxu0 0.0
    %2686 = vmatpush1.msra.mxu0 0.0
    %2687 = vmatprep.subr.mxu0 0.0
    %2688 = vmatpush1.msra.mxu0 0.0
    %2689 = vmatprep.mubr.f32.mxu0 0.0
    %2690 = vmatmul.mubr.f32.gmra.mrb[0].mxu0 %v2620
    %v2691 = vpop.f32.mrb[0].mxu0
    %v2692 = vadd.f32 0.0, %v2691
    %v2693 = vpop.f32.mrb[0].mxu0
    %2694 = vmatprep.mubr.f32.mxu0 0.0
    %2695 = vmatmul.mubr.f32.gmra.mrb[0].mxu0 %v2623
    %v2696 = vpop.f32.mrb[0].mxu0
    %v2697 = vadd.f32 0.0, %v2696
    %v2698 = vpop.f32.mrb[0].mxu0
    %2699 = vdwg.mxu0
    %2700 = vrot.lane.b32.xlu0 %v1324, 108
    %v2701 = vpop.permute.xlu0 %2700
    %2702 = vrot.lane.b32.xlu0 %v1329, 108
    %v2703 = vpop.permute.xlu0 %2702
    %v2707 = vsel %vm188, %v2607, 0
    %v2710 = vsel %vm188, %v2608, 0
    %2712 = vmatprep.subr.mxu0 0.0
    %2713 = vmatpush1.msra.mxu0 %v2701
    %2714 = vmatprep.subr.mxu0 0.0
    %2715 = vmatpush1.msra.mxu0 %v2703
    %2716 = vmatprep.subr.mxu0 0.0
    %2717 = vmatpush1.msra.mxu0 0.0
    %2718 = vmatprep.subr.mxu0 0.0
    %2719 = vmatpush1.msra.mxu0 0.0
    %2720 = vmatprep.subr.mxu0 0.0
    %2721 = vmatpush1.msra.mxu0 0.0
    %2722 = vmatprep.subr.mxu0 0.0
    %2723 = vmatpush1.msra.mxu0 0.0
    %2724 = vmatprep.subr.mxu0 0.0
    %2725 = vmatpush1.msra.mxu0 0.0
    %2726 = vmatprep.subr.mxu0 0.0
    %2727 = vmatpush1.msra.mxu0 0.0
    %2728 = vmatprep.subr.mxu0 0.0
    %2729 = vmatpush1.msra.mxu0 0.0
    %2730 = vmatprep.subr.mxu0 0.0
    %2731 = vmatpush1.msra.mxu0 0.0
    %2732 = vmatprep.subr.mxu0 0.0
    %2733 = vmatpush1.msra.mxu0 0.0
    %2734 = vmatprep.subr.mxu0 0.0
    %2735 = vmatpush1.msra.mxu0 0.0
    %2736 = vmatprep.subr.mxu0 0.0
    %2737 = vmatpush1.msra.mxu0 0.0
    %2738 = vmatprep.subr.mxu0 0.0
    %2739 = vmatpush1.msra.mxu0 0.0
    %2740 = vmatprep.subr.mxu0 0.0
    %2741 = vmatpush1.msra.mxu0 0.0
    %2742 = vmatprep.subr.mxu0 0.0
    %2743 = vmatpush1.msra.mxu0 0.0
    %2744 = vmatprep.subr.mxu0 0.0
    %2745 = vmatpush1.msra.mxu0 0.0
    %2746 = vmatprep.subr.mxu0 0.0
    %2747 = vmatpush1.msra.mxu0 0.0
    %2748 = vmatprep.subr.mxu0 0.0
    %2749 = vmatpush1.msra.mxu0 0.0
    %2750 = vmatprep.subr.mxu0 0.0
    %2751 = vmatpush1.msra.mxu0 0.0
    %2752 = vmatprep.subr.mxu0 0.0
    %2753 = vmatpush1.msra.mxu0 0.0
    %2754 = vmatprep.subr.mxu0 0.0
    %2755 = vmatpush1.msra.mxu0 0.0
    %2756 = vmatprep.subr.mxu0 0.0
    %2757 = vmatpush1.msra.mxu0 0.0
    %2758 = vmatprep.subr.mxu0 0.0
    %2759 = vmatpush1.msra.mxu0 0.0
    %2760 = vmatprep.subr.mxu0 0.0
    %2761 = vmatpush1.msra.mxu0 0.0
    %2762 = vmatprep.subr.mxu0 0.0
    %2763 = vmatpush1.msra.mxu0 0.0
    %2764 = vmatprep.subr.mxu0 0.0
    %2765 = vmatpush1.msra.mxu0 0.0
    %2766 = vmatprep.subr.mxu0 0.0
    %2767 = vmatpush1.msra.mxu0 0.0
    %2768 = vmatprep.subr.mxu0 0.0
    %2769 = vmatpush1.msra.mxu0 0.0
    %2770 = vmatprep.subr.mxu0 0.0
    %2771 = vmatpush1.msra.mxu0 0.0
    %2772 = vmatprep.subr.mxu0 0.0
    %2773 = vmatpush1.msra.mxu0 0.0
    %2774 = vmatprep.subr.mxu0 0.0
    %2775 = vmatpush1.msra.mxu0 0.0
    %2776 = vmatprep.mubr.f32.mxu0 0.0
    %2777 = vmatmul.mubr.f32.gmra.mrb[0].mxu0 %v2707
    %v2778 = vpop.f32.mrb[0].mxu0
    %v2779 = vadd.f32 0.0, %v2778
    %v2780 = vpop.f32.mrb[0].mxu0
    %2781 = vmatprep.mubr.f32.mxu0 0.0
    %2782 = vmatmul.mubr.f32.gmra.mrb[0].mxu0 %v2710
    %v2783 = vpop.f32.mrb[0].mxu0
    %v2784 = vadd.f32 0.0, %v2783
    %v2785 = vpop.f32.mrb[0].mxu0
    %2786 = vdwg.mxu0
    %2787 = vrot.lane.b32.xlu0 %v1334, 108
    %v2788 = vpop.permute.xlu0 %2787
    %2789 = vrot.lane.b32.xlu0 %v1339, 108
    %v2790 = vpop.permute.xlu0 %2789
    %v2794 = vsel %vm188, %v2609, 0
    %v2797 = vsel %vm188, %v2610, 0
    %2799 = vmatprep.subr.mxu0 0.0
    %2800 = vmatpush1.msra.mxu0 %v2788
    %2801 = vmatprep.subr.mxu0 0.0
    %2802 = vmatpush1.msra.mxu0 %v2790
    %2803 = vmatprep.subr.mxu0 0.0
    %2804 = vmatpush1.msra.mxu0 0.0
    %2805 = vmatprep.subr.mxu0 0.0
    %2806 = vmatpush1.msra.mxu0 0.0
    %2807 = vmatprep.subr.mxu0 0.0
    %2808 = vmatpush1.msra.mxu0 0.0
    %2809 = vmatprep.subr.mxu0 0.0
    %2810 = vmatpush1.msra.mxu0 0.0
    %2811 = vmatprep.subr.mxu0 0.0
    %2812 = vmatpush1.msra.mxu0 0.0
    %2813 = vmatprep.subr.mxu0 0.0
    %2814 = vmatpush1.msra.mxu0 0.0
    %2815 = vmatprep.subr.mxu0 0.0
    %2816 = vmatpush1.msra.mxu0 0.0
    %2817 = vmatprep.subr.mxu0 0.0
    %2818 = vmatpush1.msra.mxu0 0.0
    %2819 = vmatprep.subr.mxu0 0.0
    %2820 = vmatpush1.msra.mxu0 0.0
    %2821 = vmatprep.subr.mxu0 0.0
    %2822 = vmatpush1.msra.mxu0 0.0
    %2823 = vmatprep.subr.mxu0 0.0
    %2824 = vmatpush1.msra.mxu0 0.0
    %2825 = vmatprep.subr.mxu0 0.0
    %2826 = vmatpush1.msra.mxu0 0.0
    %2827 = vmatprep.subr.mxu0 0.0
    %2828 = vmatpush1.msra.mxu0 0.0
    %2829 = vmatprep.subr.mxu0 0.0
    %2830 = vmatpush1.msra.mxu0 0.0
    %2831 = vmatprep.subr.mxu0 0.0
    %2832 = vmatpush1.msra.mxu0 0.0
    %2833 = vmatprep.subr.mxu0 0.0
    %2834 = vmatpush1.msra.mxu0 0.0
    %2835 = vmatprep.subr.mxu0 0.0
    %2836 = vmatpush1.msra.mxu0 0.0
    %2837 = vmatprep.subr.mxu0 0.0
    %2838 = vmatpush1.msra.mxu0 0.0
    %2839 = vmatprep.subr.mxu0 0.0
    %2840 = vmatpush1.msra.mxu0 0.0
    %2841 = vmatprep.subr.mxu0 0.0
    %2842 = vmatpush1.msra.mxu0 0.0
    %2843 = vmatprep.subr.mxu0 0.0
    %2844 = vmatpush1.msra.mxu0 0.0
    %2845 = vmatprep.subr.mxu0 0.0
    %2846 = vmatpush1.msra.mxu0 0.0
    %2847 = vmatprep.subr.mxu0 0.0
    %2848 = vmatpush1.msra.mxu0 0.0
    %2849 = vmatprep.subr.mxu0 0.0
    %2850 = vmatpush1.msra.mxu0 0.0
    %2851 = vmatprep.subr.mxu0 0.0
    %2852 = vmatpush1.msra.mxu0 0.0
    %2853 = vmatprep.subr.mxu0 0.0
    %2854 = vmatpush1.msra.mxu0 0.0
    %2855 = vmatprep.subr.mxu0 0.0
    %2856 = vmatpush1.msra.mxu0 0.0
    %2857 = vmatprep.subr.mxu0 0.0
    %2858 = vmatpush1.msra.mxu0 0.0
    %2859 = vmatprep.subr.mxu0 0.0
    %2860 = vmatpush1.msra.mxu0 0.0
    %2861 = vmatprep.subr.mxu0 0.0
    %2862 = vmatpush1.msra.mxu0 0.0
    %2863 = vmatprep.mubr.f32.mxu0 0.0
    %2864 = vmatmul.mubr.f32.gmra.mrb[0].mxu0 %v2794
    %v2865 = vpop.f32.mrb[0].mxu0
    %v2866 = vadd.f32 0.0, %v2865
    %v2867 = vpop.f32.mrb[0].mxu0
    %2868 = vmatprep.mubr.f32.mxu0 0.0
    %2869 = vmatmul.mubr.f32.gmra.mrb[0].mxu0 %v2797
    %v2870 = vpop.f32.mrb[0].mxu0
    %v2871 = vadd.f32 0.0, %v2870
    %v2872 = vpop.f32.mrb[0].mxu0
    %2873 = vdwg.mxu0
    %2874 = vrot.lane.b32.xlu0 %v1344, 108
    %v2875 = vpop.permute.xlu0 %2874
    %2876 = vrot.lane.b32.xlu0 %v1349, 108
    %v2877 = vpop.permute.xlu0 %2876
    %v2881 = vsel %vm188, %v2611, 0
    %v2884 = vsel %vm188, %v2612, 0
    %2886 = vmatprep.subr.mxu0 0.0
    %2887 = vmatpush1.msra.mxu0 %v2875
    %2888 = vmatprep.subr.mxu0 0.0
    %2889 = vmatpush1.msra.mxu0 %v2877
    %2890 = vmatprep.subr.mxu0 0.0
    %2891 = vmatpush1.msra.mxu0 0.0
    %2892 = vmatprep.subr.mxu0 0.0
    %2893 = vmatpush1.msra.mxu0 0.0
    %2894 = vmatprep.subr.mxu0 0.0
    %2895 = vmatpush1.msra.mxu0 0.0
    %2896 = vmatprep.subr.mxu0 0.0
    %2897 = vmatpush1.msra.mxu0 0.0
    %2898 = vmatprep.subr.mxu0 0.0
    %2899 = vmatpush1.msra.mxu0 0.0
    %2900 = vmatprep.subr.mxu0 0.0
    %2901 = vmatpush1.msra.mxu0 0.0
    %2902 = vmatprep.subr.mxu0 0.0
    %2903 = vmatpush1.msra.mxu0 0.0
    %2904 = vmatprep.subr.mxu0 0.0
    %2905 = vmatpush1.msra.mxu0 0.0
    %2906 = vmatprep.subr.mxu0 0.0
    %2907 = vmatpush1.msra.mxu0 0.0
    %2908 = vmatprep.subr.mxu0 0.0
    %2909 = vmatpush1.msra.mxu0 0.0
    %2910 = vmatprep.subr.mxu0 0.0
    %2911 = vmatpush1.msra.mxu0 0.0
    %2912 = vmatprep.subr.mxu0 0.0
    %2913 = vmatpush1.msra.mxu0 0.0
    %2914 = vmatprep.subr.mxu0 0.0
    %2915 = vmatpush1.msra.mxu0 0.0
    %2916 = vmatprep.subr.mxu0 0.0
    %2917 = vmatpush1.msra.mxu0 0.0
    %2918 = vmatprep.subr.mxu0 0.0
    %2919 = vmatpush1.msra.mxu0 0.0
    %2920 = vmatprep.subr.mxu0 0.0
    %2921 = vmatpush1.msra.mxu0 0.0
    %2922 = vmatprep.subr.mxu0 0.0
    %2923 = vmatpush1.msra.mxu0 0.0
    %2924 = vmatprep.subr.mxu0 0.0
    %2925 = vmatpush1.msra.mxu0 0.0
    %2926 = vmatprep.subr.mxu0 0.0
    %2927 = vmatpush1.msra.mxu0 0.0
    %2928 = vmatprep.subr.mxu0 0.0
    %2929 = vmatpush1.msra.mxu0 0.0
    %2930 = vmatprep.subr.mxu0 0.0
    %2931 = vmatpush1.msra.mxu0 0.0
    %2932 = vmatprep.subr.mxu0 0.0
    %2933 = vmatpush1.msra.mxu0 0.0
    %2934 = vmatprep.subr.mxu0 0.0
    %2935 = vmatpush1.msra.mxu0 0.0
    %2936 = vmatprep.subr.mxu0 0.0
    %2937 = vmatpush1.msra.mxu0 0.0
    %2938 = vmatprep.subr.mxu0 0.0
    %2939 = vmatpush1.msra.mxu0 0.0
    %2940 = vmatprep.subr.mxu0 0.0
    %2941 = vmatpush1.msra.mxu0 0.0
    %2942 = vmatprep.subr.mxu0 0.0
    %2943 = vmatpush1.msra.mxu0 0.0
    %2944 = vmatprep.subr.mxu0 0.0
    %2945 = vmatpush1.msra.mxu0 0.0
    %2946 = vmatprep.subr.mxu0 0.0
    %2947 = vmatpush1.msra.mxu0 0.0
    %2948 = vmatprep.subr.mxu0 0.0
    %2949 = vmatpush1.msra.mxu0 0.0
    %2950 = vmatprep.mubr.f32.mxu0 0.0
    %2951 = vmatmul.mubr.f32.gmra.mrb[0].mxu0 %v2881
    %v2952 = vpop.f32.mrb[0].mxu0
    %v2953 = vadd.f32 0.0, %v2952
    %v2954 = vpop.f32.mrb[0].mxu0
    %2955 = vmatprep.mubr.f32.mxu0 0.0
    %2956 = vmatmul.mubr.f32.gmra.mrb[0].mxu0 %v2884
    %v2957 = vpop.f32.mrb[0].mxu0
    %v2958 = vadd.f32 0.0, %v2957
    %v2959 = vpop.f32.mrb[0].mxu0
    %2960 = vdwg.mxu0
    %2969 = vrot.lane.b32.xlu0 %v2692, 4
    %v2970 = vpop.permute.xlu0 %2969
    %2971 = vrot.lane.b32.xlu0 %v2697, 4
    %v2972 = vpop.permute.xlu0 %2971
    %2973 = vrot.lane.b32.xlu0 %v2779, 4
    %v2974 = vpop.permute.xlu0 %2973
    %2975 = vrot.lane.b32.xlu0 %v2784, 4
    %v2976 = vpop.permute.xlu0 %2975
    %2977 = vrot.lane.b32.xlu0 %v2866, 4
    %v2978 = vpop.permute.xlu0 %2977
    %2979 = vrot.lane.b32.xlu0 %v2871, 4
    %v2980 = vpop.permute.xlu0 %2979
    %2981 = vrot.lane.b32.xlu0 %v2953, 4
    %v2982 = vpop.permute.xlu0 %2981
    %2983 = vrot.lane.b32.xlu0 %v2958, 4
    %v2984 = vpop.permute.xlu0 %2983
    %v2993 = vsel %vm1358, %v1884, %v2970
    %v2994 = vsel %vm1358, %v1889, %v2972
    %v2995 = vsel %vm1358, %v1971, %v2974
    %v2996 = vsel %vm1358, %v1976, %v2976
    %v2997 = vsel %vm1358, %v2058, %v2978
    %v2998 = vsel %vm1358, %v2063, %v2980
    %v2999 = vsel %vm1358, %v2145, %v2982
    %v3000 = vsel %vm1358, %v2150, %v2984
    %v3001 = vld [vmem:[%s8 + $0x11] sm:$0x1]
    %v3003 = vlaneseq
    %v3004 = vshrl.u32 %v3003, 7
    %v3005 = vsub.s32 0, %v3004
    %v3006 = vrot.slane %v3001, %v3005
    %3008 = vrot.lane.b32.xlu0 %v1214, 104
    %v3009 = vpop.permute.xlu0 %3008
    %3011 = vrot.lane.b32.xlu0 %v3006, 104
    %v3012 = vpop.permute.xlu0 %3011
    %v3015 = vsel %vm1222, %v2993, 0
    %v3018 = vsel %vm1222, %v2994, 0
    %v3021 = vsel %vm1222, %v2995, 0
    %v3024 = vsel %vm1222, %v2996, 0
    %v3027 = vsel %vm1222, %v2997, 0
    %v3030 = vsel %vm1222, %v2998, 0
    %v3033 = vsel %vm1222, %v2999, 0
    %v3036 = vsel %vm1222, %v3000, 0
    %3038 = vmatprep.subr.mxu0 0.0
    %3039 = vmatpush1.msra.mxu0 %v3009
    %3040 = vmatprep.subr.mxu0 0.0
    %3041 = vmatpush1.msra.mxu0 0.0
    %3042 = vmatprep.subr.mxu0 0.0
    %3043 = vmatpush1.msra.mxu0 0.0
    %3044 = vmatprep.subr.mxu0 0.0
    %3045 = vmatpush1.msra.mxu0 0.0
    %3046 = vmatprep.subr.mxu0 0.0
    %3047 = vmatpush1.msra.mxu0 0.0
    %3048 = vmatprep.subr.mxu0 0.0
    %3049 = vmatpush1.msra.mxu0 0.0
    %3050 = vmatprep.subr.mxu0 0.0
    %3051 = vmatpush1.msra.mxu0 0.0
    %3052 = vmatprep.subr.mxu0 0.0
    %3053 = vmatpush1.msra.mxu0 0.0
    %3054 = vmatprep.subr.mxu0 0.0
    %3055 = vmatpush1.msra.mxu0 0.0
    %3056 = vmatprep.subr.mxu0 0.0
    %3057 = vmatpush1.msra.mxu0 0.0
    %3058 = vmatprep.subr.mxu0 0.0
    %3059 = vmatpush1.msra.mxu0 0.0
    %3060 = vmatprep.subr.mxu0 0.0
    %3061 = vmatpush1.msra.mxu0 0.0
    %3062 = vmatprep.subr.mxu0 0.0
    %3063 = vmatpush1.msra.mxu0 0.0
    %3064 = vmatprep.subr.mxu0 0.0
    %3065 = vmatpush1.msra.mxu0 0.0
    %3066 = vmatprep.subr.mxu0 0.0
    %3067 = vmatpush1.msra.mxu0 0.0
    %3068 = vmatprep.subr.mxu0 0.0
    %3069 = vmatpush1.msra.mxu0 0.0
    %3070 = vmatprep.subr.mxu0 0.0
    %3071 = vmatpush1.msra.mxu0 0.0
    %3072 = vmatprep.subr.mxu0 0.0
    %3073 = vmatpush1.msra.mxu0 0.0
    %3074 = vmatprep.subr.mxu0 0.0
    %3075 = vmatpush1.msra.mxu0 0.0
    %3076 = vmatprep.subr.mxu0 0.0
    %3077 = vmatpush1.msra.mxu0 0.0
    %3078 = vmatprep.subr.mxu0 0.0
    %3079 = vmatpush1.msra.mxu0 0.0
    %3080 = vmatprep.subr.mxu0 0.0
    %3081 = vmatpush1.msra.mxu0 0.0
    %3082 = vmatprep.subr.mxu0 0.0
    %3083 = vmatpush1.msra.mxu0 0.0
    %3084 = vmatprep.subr.mxu0 0.0
    %3085 = vmatpush1.msra.mxu0 0.0
    %3086 = vmatprep.subr.mxu0 0.0
    %3087 = vmatpush1.msra.mxu0 0.0
    %3088 = vmatprep.subr.mxu0 0.0
    %3089 = vmatpush1.msra.mxu0 0.0
    %3090 = vmatprep.subr.mxu0 0.0
    %3091 = vmatpush1.msra.mxu0 0.0
    %3092 = vmatprep.subr.mxu0 0.0
    %3093 = vmatpush1.msra.mxu0 0.0
    %3094 = vmatprep.subr.mxu0 0.0
    %3095 = vmatpush1.msra.mxu0 0.0
    %3096 = vmatprep.subr.mxu0 0.0
    %3097 = vmatpush1.msra.mxu0 0.0
    %3098 = vmatprep.subr.mxu0 0.0
    %3099 = vmatpush1.msra.mxu0 0.0
    %3100 = vmatprep.subr.mxu0 0.0
    %3101 = vmatpush1.msra.mxu0 0.0
    %3102 = vmatprep.mubr.f32.mxu0 0.0
    %3103 = vmatmul.mubr.f32.gmra.mrb[0].mxu0 %v3015
    %v3104 = vpop.f32.mrb[0].mxu0
    %v3105 = vadd.f32 %v3012, %v3104
    %v3106 = vpop.f32.mrb[0].mxu0
    %3107 = vmatprep.mubr.f32.mxu0 0.0
    %3108 = vmatmul.mubr.f32.gmra.mrb[0].mxu0 %v3018
    %v3109 = vpop.f32.mrb[0].mxu0
    %v3110 = vadd.f32 %v3012, %v3109
    %v3111 = vpop.f32.mrb[0].mxu0
    %3112 = vmatprep.mubr.f32.mxu0 0.0
    %3113 = vmatmul.mubr.f32.gmra.mrb[0].mxu0 %v3021
    %v3114 = vpop.f32.mrb[0].mxu0
    %v3115 = vadd.f32 %v3012, %v3114
    %v3116 = vpop.f32.mrb[0].mxu0
    %3117 = vmatprep.mubr.f32.mxu0 0.0
    %3118 = vmatmul.mubr.f32.gmra.mrb[0].mxu0 %v3024
    %v3119 = vpop.f32.mrb[0].mxu0
    %v3120 = vadd.f32 %v3012, %v3119
    %v3121 = vpop.f32.mrb[0].mxu0
    %3122 = vmatprep.mubr.f32.mxu0 0.0
    %3123 = vmatmul.mubr.f32.gmra.mrb[0].mxu0 %v3027
    %v3124 = vpop.f32.mrb[0].mxu0
    %v3125 = vadd.f32 %v3012, %v3124
    %v3126 = vpop.f32.mrb[0].mxu0
    %3127 = vmatprep.mubr.f32.mxu0 0.0
    %3128 = vmatmul.mubr.f32.gmra.mrb[0].mxu0 %v3030
    %v3129 = vpop.f32.mrb[0].mxu0
    %v3130 = vadd.f32 %v3012, %v3129
    %v3131 = vpop.f32.mrb[0].mxu0
    %3132 = vmatprep.mubr.f32.mxu0 0.0
    %3133 = vmatmul.mubr.f32.gmra.mrb[0].mxu0 %v3033
    %v3134 = vpop.f32.mrb[0].mxu0
    %v3135 = vadd.f32 %v3012, %v3134
    %v3136 = vpop.f32.mrb[0].mxu0
    %3137 = vmatprep.mubr.f32.mxu0 0.0
    %3138 = vmatmul.mubr.f32.gmra.mrb[0].mxu0 %v3036
    %v3139 = vpop.f32.mrb[0].mxu0
    %v3140 = vadd.f32 %v3012, %v3139
    %v3141 = vpop.f32.mrb[0].mxu0
    %3142 = vdwg.mxu0
    %v3143 = vadd.f32 %v1102, %v3105
    %v3144 = vadd.f32 %v1103, %v3110
    %v3145 = vadd.f32 %v1134, %v3115
    %v3146 = vadd.f32 %v1135, %v3120
    %v3147 = vadd.f32 %v1166, %v3125
    %v3148 = vadd.f32 %v1167, %v3130
    %v3149 = vadd.f32 %v1198, %v3135
    %v3150 = vadd.f32 %v1199, %v3140
    %v3151 = vsel %vm1222, %v3143, 0.0
    %3152 = vadd.xlane.f32.xlu0 %v3151
    %v3153 = vpop.xlane.xlu0 %3152
    %v3154 = vsel %vm1222, %v3144, 0.0
    %3155 = vadd.xlane.f32.xlu0 %v3154
    %v3156 = vpop.xlane.xlu0 %3155
    %v3157 = vsel %vm1222, %v3145, 0.0
    %3158 = vadd.xlane.f32.xlu0 %v3157
    %v3159 = vpop.xlane.xlu0 %3158
    %v3160 = vsel %vm1222, %v3146, 0.0
    %3161 = vadd.xlane.f32.xlu0 %v3160
    %v3162 = vpop.xlane.xlu0 %3161
    %v3163 = vsel %vm1222, %v3147, 0.0
    %3164 = vadd.xlane.f32.xlu0 %v3163
    %v3165 = vpop.xlane.xlu0 %3164
    %v3166 = vsel %vm1222, %v3148, 0.0
    %3167 = vadd.xlane.f32.xlu0 %v3166
    %v3168 = vpop.xlane.xlu0 %3167
    %v3169 = vsel %vm1222, %v3149, 0.0
    %3170 = vadd.xlane.f32.xlu0 %v3169
    %v3171 = vpop.xlane.xlu0 %3170
    %v3172 = vsel %vm1222, %v3150, 0.0
    %3173 = vadd.xlane.f32.xlu0 %v3172
    %v3174 = vpop.xlane.xlu0 %3173
    %v3175 = vrcp.pop 8.0
    %v3176 = vmul.f32 %v3153, %v3175
    %v3177 = vmul.f32 %v3156, %v3175
    %v3178 = vmul.f32 %v3159, %v3175
    %v3179 = vmul.f32 %v3162, %v3175
    %v3180 = vmul.f32 %v3165, %v3175
    %v3181 = vmul.f32 %v3168, %v3175
    %v3182 = vmul.f32 %v3171, %v3175
    %v3183 = vmul.f32 %v3174, %v3175
    %v3184 = vsub.f32 %v3143, %v3176
    %v3185 = vsub.f32 %v3144, %v3177
    %v3186 = vsub.f32 %v3145, %v3178
    %v3187 = vsub.f32 %v3146, %v3179
    %v3188 = vsub.f32 %v3147, %v3180
    %v3189 = vsub.f32 %v3148, %v3181
    %v3190 = vsub.f32 %v3149, %v3182
    %v3191 = vsub.f32 %v3150, %v3183
    %v3192 = vmul.f32 %v3184, %v3184
    %v3193 = vmul.f32 %v3185, %v3185
    %v3194 = vmul.f32 %v3186, %v3186
    %v3195 = vmul.f32 %v3187, %v3187
    %v3196 = vmul.f32 %v3188, %v3188
    %v3197 = vmul.f32 %v3189, %v3189
    %v3198 = vmul.f32 %v3190, %v3190
    %v3199 = vmul.f32 %v3191, %v3191
    %v3200 = vsel %vm1222, %v3192, 0.0
    %3201 = vadd.xlane.f32.xlu0 %v3200
    %v3202 = vpop.xlane.xlu0 %3201
    %v3203 = vsel %vm1222, %v3193, 0.0
    %3204 = vadd.xlane.f32.xlu0 %v3203
    %v3205 = vpop.xlane.xlu0 %3204
    %v3206 = vsel %vm1222, %v3194, 0.0
    %3207 = vadd.xlane.f32.xlu0 %v3206
    %v3208 = vpop.xlane.xlu0 %3207
    %v3209 = vsel %vm1222, %v3195, 0.0
    %3210 = vadd.xlane.f32.xlu0 %v3209
    %v3211 = vpop.xlane.xlu0 %3210
    %v3212 = vsel %vm1222, %v3196, 0.0
    %3213 = vadd.xlane.f32.xlu0 %v3212
    %v3214 = vpop.xlane.xlu0 %3213
    %v3215 = vsel %vm1222, %v3197, 0.0
    %3216 = vadd.xlane.f32.xlu0 %v3215
    %v3217 = vpop.xlane.xlu0 %3216
    %v3218 = vsel %vm1222, %v3198, 0.0
    %3219 = vadd.xlane.f32.xlu0 %v3218
    %v3220 = vpop.xlane.xlu0 %3219
    %v3221 = vsel %vm1222, %v3199, 0.0
    %3222 = vadd.xlane.f32.xlu0 %v3221
    %v3223 = vpop.xlane.xlu0 %3222
    %v3224 = vmul.f32 %v3202, %v3175
    %v3225 = vmul.f32 %v3205, %v3175
    %v3226 = vmul.f32 %v3208, %v3175
    %v3227 = vmul.f32 %v3211, %v3175
    %v3228 = vmul.f32 %v3214, %v3175
    %v3229 = vmul.f32 %v3217, %v3175
    %v3230 = vmul.f32 %v3220, %v3175
    %v3231 = vmul.f32 %v3223, %v3175
    %v3232 = vadd.f32 %v3224, 1e-05
    %v3233 = vadd.f32 %v3225, 1e-05
    %v3234 = vadd.f32 %v3226, 1e-05
    %v3235 = vadd.f32 %v3227, 1e-05
    %v3236 = vadd.f32 %v3228, 1e-05
    %v3237 = vadd.f32 %v3229, 1e-05
    %v3238 = vadd.f32 %v3230, 1e-05
    %v3239 = vadd.f32 %v3231, 1e-05
    %v3240 = vrsqrt.pop %v3232
    %v3241 = vrsqrt.pop %v3233
    %v3242 = vrsqrt.pop %v3234
    %v3243 = vrsqrt.pop %v3235
    %v3244 = vrsqrt.pop %v3236
    %v3245 = vrsqrt.pop %v3237
    %v3246 = vrsqrt.pop %v3238
    %v3247 = vrsqrt.pop %v3239
    %v3248 = vmul.f32 %v3184, %v3240
    %v3249 = vmul.f32 %v3185, %v3241
    %v3250 = vmul.f32 %v3186, %v3242
    %v3251 = vmul.f32 %v3187, %v3243
    %v3252 = vmul.f32 %v3188, %v3244
    %v3253 = vmul.f32 %v3189, %v3245
    %v3254 = vmul.f32 %v3190, %v3246
    %v3255 = vmul.f32 %v3191, %v3247
    %3256 = vrot.lane.b32.xlu0 %v3006, 96
    %v3257 = vpop.permute.xlu0 %3256
    %v3259 = vmul.f32 %v3248, %v3257
    %v3260 = vmul.f32 %v3249, %v3257
    %v3261 = vmul.f32 %v3250, %v3257
    %v3262 = vmul.f32 %v3251, %v3257
    %v3263 = vmul.f32 %v3252, %v3257
    %v3264 = vmul.f32 %v3253, %v3257
    %v3265 = vmul.f32 %v3254, %v3257
    %v3266 = vmul.f32 %v3255, %v3257
    %3267 = vrot.lane.b32.xlu0 %v3006, 88
    %v3268 = vpop.permute.xlu0 %3267
    %v3270 = vadd.f32 %v3259, %v3268
    %v3271 = vadd.f32 %v3260, %v3268
    %v3272 = vadd.f32 %v3261, %v3268
    %v3273 = vadd.f32 %v3262, %v3268
    %v3274 = vadd.f32 %v3263, %v3268
    %v3275 = vadd.f32 %v3264, %v3268
    %v3276 = vadd.f32 %v3265, %v3268
    %v3277 = vadd.f32 %v3266, %v3268
    %v3278 = vld [vmem:[#allocation4] sm:$0xff]
    %v3279 = vld [vmem:[#allocation4 + $0x8] sm:$0xff]
    %v3280 = vld [vmem:[#allocation4 + $0x10] sm:$0xff]
    %v3281 = vld [vmem:[#allocation4 + $0x18] sm:$0xff]
    %v3282 = vld [vmem:[#allocation4 + $0x20] sm:$0xff]
    %v3283 = vld [vmem:[#allocation4 + $0x28] sm:$0xff]
    %v3284 = vld [vmem:[#allocation4 + $0x30] sm:$0xff]
    %v3285 = vld [vmem:[#allocation4 + $0x38] sm:$0xff]
    %v3286 = vld [vmem:[#allocation4 + $0x40] sm:$0xff]
    %v3287 = vld [vmem:[#allocation4 + $0x48] sm:$0xff]
    %v3288 = vld [vmem:[#allocation4 + $0x50] sm:$0xff]
    %v3289 = vld [vmem:[#allocation4 + $0x58] sm:$0xff]
    %v3290 = vld [vmem:[#allocation4 + $0x60] sm:$0xff]
    %v3291 = vld [vmem:[#allocation4 + $0x68] sm:$0xff]
    %v3292 = vld [vmem:[#allocation4 + $0x70] sm:$0xff]
    %v3293 = vld [vmem:[#allocation4 + $0x78] sm:$0xff]
    %v3294 = vpack.c.bf16 %v3271, %v3270
    %v3295 = vpack.c.bf16 %v3273, %v3272
    %v3296 = vpack.c.bf16 %v3275, %v3274
    %v3297 = vpack.c.bf16 %v3277, %v3276
    %v3298 = vld [vmem:[%s8] sm:$0xff]
    %v3299 = vld [vmem:[%s8 + $0x8] sm:$0xff]
    %v3302 = vlaneseq
    %v3303 = vshrl.u32 %v3302, 7
    %v3304 = vsub.s32 0, %v3303
    %v3305 = vrot.slane %v3298, %v3304
    %v3306 = vlaneseq
    %v3307 = vshrl.u32 %v3306, 7
    %v3308 = vsub.s32 1, %v3307
    %v3309 = vrot.slane %v3298, %v3308
    %v3310 = vlaneseq
    %v3311 = vshrl.u32 %v3310, 7
    %v3312 = vsub.s32 2, %v3311
    %v3313 = vrot.slane %v3298, %v3312
    %v3314 = vlaneseq
    %v3315 = vshrl.u32 %v3314, 7
    %v3316 = vsub.s32 3, %v3315
    %v3317 = vrot.slane %v3298, %v3316
    %v3318 = vlaneseq
    %v3319 = vshrl.u32 %v3318, 7
    %v3320 = vsub.s32 4, %v3319
    %v3321 = vrot.slane %v3298, %v3320
    %v3322 = vlaneseq
    %v3323 = vshrl.u32 %v3322, 7
    %v3324 = vsub.s32 5, %v3323
    %v3325 = vrot.slane %v3298, %v3324
    %v3326 = vlaneseq
    %v3327 = vshrl.u32 %v3326, 7
    %v3328 = vsub.s32 6, %v3327
    %v3329 = vrot.slane %v3298, %v3328
    %v3330 = vlaneseq
    %v3331 = vshrl.u32 %v3330, 7
    %v3332 = vsub.s32 7, %v3331
    %v3333 = vrot.slane %v3298, %v3332
    %v3334 = vlaneseq
    %v3335 = vshrl.u32 %v3334, 7
    %v3336 = vsub.s32 0, %v3335
    %v3337 = vrot.slane %v3299, %v3336
    %v3338 = vlaneseq
    %v3339 = vshrl.u32 %v3338, 7
    %v3340 = vsub.s32 1, %v3339
    %v3341 = vrot.slane %v3299, %v3340
    %v3342 = vlaneseq
    %v3343 = vshrl.u32 %v3342, 7
    %v3344 = vsub.s32 2, %v3343
    %v3345 = vrot.slane %v3299, %v3344
    %v3346 = vlaneseq
    %v3347 = vshrl.u32 %v3346, 7
    %v3348 = vsub.s32 3, %v3347
    %v3349 = vrot.slane %v3299, %v3348
    %v3350 = vlaneseq
    %v3351 = vshrl.u32 %v3350, 7
    %v3352 = vsub.s32 4, %v3351
    %v3353 = vrot.slane %v3299, %v3352
    %v3354 = vlaneseq
    %v3355 = vshrl.u32 %v3354, 7
    %v3356 = vsub.s32 5, %v3355
    %v3357 = vrot.slane %v3299, %v3356
    %v3358 = vlaneseq
    %v3359 = vshrl.u32 %v3358, 7
    %v3360 = vsub.s32 6, %v3359
    %v3361 = vrot.slane %v3299, %v3360
    %v3362 = vlaneseq
    %v3363 = vshrl.u32 %v3362, 7
    %v3364 = vsub.s32 7, %v3363
    %v3365 = vrot.slane %v3299, %v3364
    %v3390 = vunpack.c.l.b16 %v3278
    %v3391 = vunpack.c.h.b16 %v3278
    %v3392 = vunpack.c.l.b16 %v3279
    %v3393 = vunpack.c.h.b16 %v3279
    %v3394 = vunpack.c.l.b16 %v3280
    %v3395 = vunpack.c.h.b16 %v3280
    %v3396 = vunpack.c.l.b16 %v3281
    %v3397 = vunpack.c.h.b16 %v3281
    %v3398 = vunpack.c.l.b16 %v3282
    %v3399 = vunpack.c.h.b16 %v3282
    %v3400 = vunpack.c.l.b16 %v3283
    %v3401 = vunpack.c.h.b16 %v3283
    %v3402 = vunpack.c.l.b16 %v3284
    %v3403 = vunpack.c.h.b16 %v3284
    %v3404 = vunpack.c.l.b16 %v3285
    %v3405 = vunpack.c.h.b16 %v3285
    %v3406 = vpack.c.b16 %v3390, %v3390
    %v3407 = vpack.c.b16 %v3391, %v3391
    %v3408 = vpack.c.b16 %v3392, %v3392
    %v3409 = vpack.c.b16 %v3393, %v3393
    %v3410 = vpack.c.b16 %v3394, %v3394
    %v3411 = vpack.c.b16 %v3395, %v3395
    %v3412 = vpack.c.b16 %v3396, %v3396
    %v3413 = vpack.c.b16 %v3397, %v3397
    %v3414 = vpack.c.b16 %v3398, %v3398
    %v3415 = vpack.c.b16 %v3399, %v3399
    %v3416 = vpack.c.b16 %v3400, %v3400
    %v3417 = vpack.c.b16 %v3401, %v3401
    %v3418 = vpack.c.b16 %v3402, %v3402
    %v3419 = vpack.c.b16 %v3403, %v3403
    %v3420 = vpack.c.b16 %v3404, %v3404
    %v3421 = vpack.c.b16 %v3405, %v3405
    %v3423 = vsel %vm1222, %v3294, 0
    %v3426 = vsel %vm1222, %v3295, 0
    %v3429 = vsel %vm1222, %v3296, 0
    %v3432 = vsel %vm1222, %v3297, 0
    %vm3434 = vcmask 1043456
    %v3436 = vsel %vm3434, %v3406, 0
    %v3439 = vsel %vm3434, %v3407, 0
    %v3442 = vsel %vm3434, %v3408, 0
    %v3445 = vsel %vm3434, %v3409, 0
    %v3448 = vsel %vm3434, %v3410, 0
    %v3451 = vsel %vm3434, %v3411, 0
    %v3454 = vsel %vm3434, %v3412, 0
    %v3457 = vsel %vm3434, %v3413, 0
    %v3460 = vsel %vm3434, %v3414, 0
    %v3463 = vsel %vm3434, %v3415, 0
    %v3466 = vsel %vm3434, %v3416, 0
    %v3469 = vsel %vm3434, %v3417, 0
    %v3472 = vsel %vm3434, %v3418, 0
    %v3475 = vsel %vm3434, %v3419, 0
    %v3478 = vsel %vm3434, %v3420, 0
    %v3481 = vsel %vm3434, %v3421, 0
    %3483 = vmatprep.subr.bf16.mxu0 %v3439
    %3484 = vmatpush1.bf16.msra.mxu0 %v3436
    %3485 = vmatprep.subr.bf16.mxu0 0
    %3486 = vmatpush1.bf16.msra.mxu0 0
    %3487 = vmatprep.subr.bf16.mxu0 0
    %3488 = vmatpush1.bf16.msra.mxu0 0
    %3489 = vmatprep.subr.bf16.mxu0 0
    %3490 = vmatpush1.bf16.msra.mxu0 0
    %3491 = vmatprep.subr.bf16.mxu0 0
    %3492 = vmatpush1.bf16.msra.mxu0 0
    %3493 = vmatprep.subr.bf16.mxu0 0
    %3494 = vmatpush1.bf16.msra.mxu0 0
    %3495 = vmatprep.subr.bf16.mxu0 0
    %3496 = vmatpush1.bf16.msra.mxu0 0
    %3497 = vmatprep.subr.bf16.mxu0 0
    %3498 = vmatpush1.bf16.msra.mxu0 0
    %3499 = vmatprep.subr.bf16.mxu0 0
    %3500 = vmatpush1.bf16.msra.mxu0 0
    %3501 = vmatprep.subr.bf16.mxu0 0
    %3502 = vmatpush1.bf16.msra.mxu0 0
    %3503 = vmatprep.subr.bf16.mxu0 0
    %3504 = vmatpush1.bf16.msra.mxu0 0
    %3505 = vmatprep.subr.bf16.mxu0 0
    %3506 = vmatpush1.bf16.msra.mxu0 0
    %3507 = vmatprep.subr.bf16.mxu0 0
    %3508 = vmatpush1.bf16.msra.mxu0 0
    %3509 = vmatprep.subr.bf16.mxu0 0
    %3510 = vmatpush1.bf16.msra.mxu0 0
    %3511 = vmatprep.subr.bf16.mxu0 0
    %3512 = vmatpush1.bf16.msra.mxu0 0
    %3513 = vmatprep.subr.bf16.mxu0 0
    %3514 = vmatpush1.bf16.msra.mxu0 0
    %3515 = vmatprep.mubr.bf16.mxu0 0
    %3516 = vmatmul.mubr.bf16.gmra.mrb[0].mxu0 %v3423
    %v3517 = vpop.f32.mrb[0].mxu0
    %v3518 = vadd.f32 %v3305, %v3517
    %v3519 = vpop.f32.mrb[0].mxu0
    %v3520 = vadd.f32 %v3309, %v3519
    %v3521 = vpop.f32.mrb[0].mxu0
    %v3522 = vadd.f32 %v3305, %v3521
    %v3523 = vpop.f32.mrb[0].mxu0
    %v3524 = vadd.f32 %v3309, %v3523
    %3525 = vmatprep.mubr.bf16.mxu0 0
    %3526 = vmatmul.mubr.bf16.gmra.mrb[0].mxu0 %v3426
    %v3527 = vpop.f32.mrb[0].mxu0
    %v3528 = vadd.f32 %v3305, %v3527
    %v3529 = vpop.f32.mrb[0].mxu0
    %v3530 = vadd.f32 %v3309, %v3529
    %v3531 = vpop.f32.mrb[0].mxu0
    %v3532 = vadd.f32 %v3305, %v3531
    %v3533 = vpop.f32.mrb[0].mxu0
    %v3534 = vadd.f32 %v3309, %v3533
    %3535 = vmatprep.mubr.bf16.mxu0 0
    %3536 = vmatmul.mubr.bf16.gmra.mrb[0].mxu0 %v3429
    %v3537 = vpop.f32.mrb[0].mxu0
    %v3538 = vadd.f32 %v3305, %v3537
    %v3539 = vpop.f32.mrb[0].mxu0
    %v3540 = vadd.f32 %v3309, %v3539
    %v3541 = vpop.f32.mrb[0].mxu0
    %v3542 = vadd.f32 %v3305, %v3541
    %v3543 = vpop.f32.mrb[0].mxu0
    %v3544 = vadd.f32 %v3309, %v3543
    %3545 = vmatprep.mubr.bf16.mxu0 0
    %3546 = vmatmul.mubr.bf16.gmra.mrb[0].mxu0 %v3432
    %v3547 = vpop.f32.mrb[0].mxu0
    %v3548 = vadd.f32 %v3305, %v3547
    %v3549 = vpop.f32.mrb[0].mxu0
    %v3550 = vadd.f32 %v3309, %v3549
    %v3551 = vpop.f32.mrb[0].mxu0
    %v3552 = vadd.f32 %v3305, %v3551
    %v3553 = vpop.f32.mrb[0].mxu0
    %v3554 = vadd.f32 %v3309, %v3553
    %3555 = vdwg.mxu0
    %3556 = vmatprep.subr.bf16.mxu0 %v3445
    %3557 = vmatpush1.bf16.msra.mxu0 %v3442
    %3558 = vmatprep.subr.bf16.mxu0 0
    %3559 = vmatpush1.bf16.msra.mxu0 0
    %3560 = vmatprep.subr.bf16.mxu0 0
    %3561 = vmatpush1.bf16.msra.mxu0 0
    %3562 = vmatprep.subr.bf16.mxu0 0
    %3563 = vmatpush1.bf16.msra.mxu0 0
    %3564 = vmatprep.subr.bf16.mxu0 0
    %3565 = vmatpush1.bf16.msra.mxu0 0
    %3566 = vmatprep.subr.bf16.mxu0 0
    %3567 = vmatpush1.bf16.msra.mxu0 0
    %3568 = vmatprep.subr.bf16.mxu0 0
    %3569 = vmatpush1.bf16.msra.mxu0 0
    %3570 = vmatprep.subr.bf16.mxu0 0
    %3571 = vmatpush1.bf16.msra.mxu0 0
    %3572 = vmatprep.subr.bf16.mxu0 0
    %3573 = vmatpush1.bf16.msra.mxu0 0
    %3574 = vmatprep.subr.bf16.mxu0 0
    %3575 = vmatpush1.bf16.msra.mxu0 0
    %3576 = vmatprep.subr.bf16.mxu0 0
    %3577 = vmatpush1.bf16.msra.mxu0 0
    %3578 = vmatprep.subr.bf16.mxu0 0
    %3579 = vmatpush1.bf16.msra.mxu0 0
    %3580 = vmatprep.subr.bf16.mxu0 0
    %3581 = vmatpush1.bf16.msra.mxu0 0
    %3582 = vmatprep.subr.bf16.mxu0 0
    %3583 = vmatpush1.bf16.msra.mxu0 0
    %3584 = vmatprep.subr.bf16.mxu0 0
    %3585 = vmatpush1.bf16.msra.mxu0 0
    %3586 = vmatprep.subr.bf16.mxu0 0
    %3587 = vmatpush1.bf16.msra.mxu0 0
    %3588 = vmatprep.mubr.bf16.mxu0 0
    %3589 = vmatmul.mubr.bf16.gmra.mrb[0].mxu0 %v3423
    %v3590 = vpop.f32.mrb[0].mxu0
    %v3591 = vadd.f32 %v3313, %v3590
    %v3592 = vpop.f32.mrb[0].mxu0
    %v3593 = vadd.f32 %v3317, %v3592
    %v3594 = vpop.f32.mrb[0].mxu0
    %v3595 = vadd.f32 %v3313, %v3594
    %v3596 = vpop.f32.mrb[0].mxu0
    %v3597 = vadd.f32 %v3317, %v3596
    %3598 = vmatprep.mubr.bf16.mxu0 0
    %3599 = vmatmul.mubr.bf16.gmra.mrb[0].mxu0 %v3426
    %v3600 = vpop.f32.mrb[0].mxu0
    %v3601 = vadd.f32 %v3313, %v3600
    %v3602 = vpop.f32.mrb[0].mxu0
    %v3603 = vadd.f32 %v3317, %v3602
    %v3604 = vpop.f32.mrb[0].mxu0
    %v3605 = vadd.f32 %v3313, %v3604
    %v3606 = vpop.f32.mrb[0].mxu0
    %v3607 = vadd.f32 %v3317, %v3606
    %3608 = vmatprep.mubr.bf16.mxu0 0
    %3609 = vmatmul.mubr.bf16.gmra.mrb[0].mxu0 %v3429
    %v3610 = vpop.f32.mrb[0].mxu0
    %v3611 = vadd.f32 %v3313, %v3610
    %v3612 = vpop.f32.mrb[0].mxu0
    %v3613 = vadd.f32 %v3317, %v3612
    %v3614 = vpop.f32.mrb[0].mxu0
    %v3615 = vadd.f32 %v3313, %v3614
    %v3616 = vpop.f32.mrb[0].mxu0
    %v3617 = vadd.f32 %v3317, %v3616
    %3618 = vmatprep.mubr.bf16.mxu0 0
    %3619 = vmatmul.mubr.bf16.gmra.mrb[0].mxu0 %v3432
    %v3620 = vpop.f32.mrb[0].mxu0
    %v3621 = vadd.f32 %v3313, %v3620
    %v3622 = vpop.f32.mrb[0].mxu0
    %v3623 = vadd.f32 %v3317, %v3622
    %v3624 = vpop.f32.mrb[0].mxu0
    %v3625 = vadd.f32 %v3313, %v3624
    %v3626 = vpop.f32.mrb[0].mxu0
    %v3627 = vadd.f32 %v3317, %v3626
    %3628 = vdwg.mxu0
    %3629 = vmatprep.subr.bf16.mxu0 %v3451
    %3630 = vmatpush1.bf16.msra.mxu0 %v3448
    %3631 = vmatprep.subr.bf16.mxu0 0
    %3632 = vmatpush1.bf16.msra.mxu0 0
    %3633 = vmatprep.subr.bf16.mxu0 0
    %3634 = vmatpush1.bf16.msra.mxu0 0
    %3635 = vmatprep.subr.bf16.mxu0 0
    %3636 = vmatpush1.bf16.msra.mxu0 0
    %3637 = vmatprep.subr.bf16.mxu0 0
    %3638 = vmatpush1.bf16.msra.mxu0 0
    %3639 = vmatprep.subr.bf16.mxu0 0
    %3640 = vmatpush1.bf16.msra.mxu0 0
    %3641 = vmatprep.subr.bf16.mxu0 0
    %3642 = vmatpush1.bf16.msra.mxu0 0
    %3643 = vmatprep.subr.bf16.mxu0 0
    %3644 = vmatpush1.bf16.msra.mxu0 0
    %3645 = vmatprep.subr.bf16.mxu0 0
    %3646 = vmatpush1.bf16.msra.mxu0 0
    %3647 = vmatprep.subr.bf16.mxu0 0
    %3648 = vmatpush1.bf16.msra.mxu0 0
    %3649 = vmatprep.subr.bf16.mxu0 0
    %3650 = vmatpush1.bf16.msra.mxu0 0
    %3651 = vmatprep.subr.bf16.mxu0 0
    %3652 = vmatpush1.bf16.msra.mxu0 0
    %3653 = vmatprep.subr.bf16.mxu0 0
    %3654 = vmatpush1.bf16.msra.mxu0 0
    %3655 = vmatprep.subr.bf16.mxu0 0
    %3656 = vmatpush1.bf16.msra.mxu0 0
    %3657 = vmatprep.subr.bf16.mxu0 0
    %3658 = vmatpush1.bf16.msra.mxu0 0
    %3659 = vmatprep.subr.bf16.mxu0 0
    %3660 = vmatpush1.bf16.msra.mxu0 0
    %3661 = vmatprep.mubr.bf16.mxu0 0
    %3662 = vmatmul.mubr.bf16.gmra.mrb[0].mxu0 %v3423
    %v3663 = vpop.f32.mrb[0].mxu0
    %v3664 = vadd.f32 %v3321, %v3663
    %v3665 = vpop.f32.mrb[0].mxu0
    %v3666 = vadd.f32 %v3325, %v3665
    %v3667 = vpop.f32.mrb[0].mxu0
    %v3668 = vadd.f32 %v3321, %v3667
    %v3669 = vpop.f32.mrb[0].mxu0
    %v3670 = vadd.f32 %v3325, %v3669
    %3671 = vmatprep.mubr.bf16.mxu0 0
    %3672 = vmatmul.mubr.bf16.gmra.mrb[0].mxu0 %v3426
    %v3673 = vpop.f32.mrb[0].mxu0
    %v3674 = vadd.f32 %v3321, %v3673
    %v3675 = vpop.f32.mrb[0].mxu0
    %v3676 = vadd.f32 %v3325, %v3675
    %v3677 = vpop.f32.mrb[0].mxu0
    %v3678 = vadd.f32 %v3321, %v3677
    %v3679 = vpop.f32.mrb[0].mxu0
    %v3680 = vadd.f32 %v3325, %v3679
    %3681 = vmatprep.mubr.bf16.mxu0 0
    %3682 = vmatmul.mubr.bf16.gmra.mrb[0].mxu0 %v3429
    %v3683 = vpop.f32.mrb[0].mxu0
    %v3684 = vadd.f32 %v3321, %v3683
    %v3685 = vpop.f32.mrb[0].mxu0
    %v3686 = vadd.f32 %v3325, %v3685
    %v3687 = vpop.f32.mrb[0].mxu0
    %v3688 = vadd.f32 %v3321, %v3687
    %v3689 = vpop.f32.mrb[0].mxu0
    %v3690 = vadd.f32 %v3325, %v3689
    %3691 = vmatprep.mubr.bf16.mxu0 0
    %3692 = vmatmul.mubr.bf16.gmra.mrb[0].mxu0 %v3432
    %v3693 = vpop.f32.mrb[0].mxu0
    %v3694 = vadd.f32 %v3321, %v3693
    %v3695 = vpop.f32.mrb[0].mxu0
    %v3696 = vadd.f32 %v3325, %v3695
    %v3697 = vpop.f32.mrb[0].mxu0
    %v3698 = vadd.f32 %v3321, %v3697
    %v3699 = vpop.f32.mrb[0].mxu0
    %v3700 = vadd.f32 %v3325, %v3699
    %3701 = vdwg.mxu0
    %3702 = vmatprep.subr.bf16.mxu0 %v3457
    %3703 = vmatpush1.bf16.msra.mxu0 %v3454
    %3704 = vmatprep.subr.bf16.mxu0 0
    %3705 = vmatpush1.bf16.msra.mxu0 0
    %3706 = vmatprep.subr.bf16.mxu0 0
    %3707 = vmatpush1.bf16.msra.mxu0 0
    %3708 = vmatprep.subr.bf16.mxu0 0
    %3709 = vmatpush1.bf16.msra.mxu0 0
    %3710 = vmatprep.subr.bf16.mxu0 0
    %3711 = vmatpush1.bf16.msra.mxu0 0
    %3712 = vmatprep.subr.bf16.mxu0 0
    %3713 = vmatpush1.bf16.msra.mxu0 0
    %3714 = vmatprep.subr.bf16.mxu0 0
    %3715 = vmatpush1.bf16.msra.mxu0 0
    %3716 = vmatprep.subr.bf16.mxu0 0
    %3717 = vmatpush1.bf16.msra.mxu0 0
    %3718 = vmatprep.subr.bf16.mxu0 0
    %3719 = vmatpush1.bf16.msra.mxu0 0
    %3720 = vmatprep.subr.bf16.mxu0 0
    %3721 = vmatpush1.bf16.msra.mxu0 0
    %3722 = vmatprep.subr.bf16.mxu0 0
    %3723 = vmatpush1.bf16.msra.mxu0 0
    %3724 = vmatprep.subr.bf16.mxu0 0
    %3725 = vmatpush1.bf16.msra.mxu0 0
    %3726 = vmatprep.subr.bf16.mxu0 0
    %3727 = vmatpush1.bf16.msra.mxu0 0
    %3728 = vmatprep.subr.bf16.mxu0 0
    %3729 = vmatpush1.bf16.msra.mxu0 0
    %3730 = vmatprep.subr.bf16.mxu0 0
    %3731 = vmatpush1.bf16.msra.mxu0 0
    %3732 = vmatprep.subr.bf16.mxu0 0
    %3733 = vmatpush1.bf16.msra.mxu0 0
    %3734 = vmatprep.mubr.bf16.mxu0 0
    %3735 = vmatmul.mubr.bf16.gmra.mrb[0].mxu0 %v3423
    %v3736 = vpop.f32.mrb[0].mxu0
    %v3737 = vadd.f32 %v3329, %v3736
    %v3738 = vpop.f32.mrb[0].mxu0
    %v3739 = vadd.f32 %v3333, %v3738
    %v3740 = vpop.f32.mrb[0].mxu0
    %v3741 = vadd.f32 %v3329, %v3740
    %v3742 = vpop.f32.mrb[0].mxu0
    %v3743 = vadd.f32 %v3333, %v3742
    %3744 = vmatprep.mubr.bf16.mxu0 0
    %3745 = vmatmul.mubr.bf16.gmra.mrb[0].mxu0 %v3426
    %v3746 = vpop.f32.mrb[0].mxu0
    %v3747 = vadd.f32 %v3329, %v3746
    %v3748 = vpop.f32.mrb[0].mxu0
    %v3749 = vadd.f32 %v3333, %v3748
    %v3750 = vpop.f32.mrb[0].mxu0
    %v3751 = vadd.f32 %v3329, %v3750
    %v3752 = vpop.f32.mrb[0].mxu0
    %v3753 = vadd.f32 %v3333, %v3752
    %3754 = vmatprep.mubr.bf16.mxu0 0
    %3755 = vmatmul.mubr.bf16.gmra.mrb[0].mxu0 %v3429
    %v3756 = vpop.f32.mrb[0].mxu0
    %v3757 = vadd.f32 %v3329, %v3756
    %v3758 = vpop.f32.mrb[0].mxu0
    %v3759 = vadd.f32 %v3333, %v3758
    %v3760 = vpop.f32.mrb[0].mxu0
    %v3761 = vadd.f32 %v3329, %v3760
    %v3762 = vpop.f32.mrb[0].mxu0
    %v3763 = vadd.f32 %v3333, %v3762
    %3764 = vmatprep.mubr.bf16.mxu0 0
    %3765 = vmatmul.mubr.bf16.gmra.mrb[0].mxu0 %v3432
    %v3766 = vpop.f32.mrb[0].mxu0
    %v3767 = vadd.f32 %v3329, %v3766
    %v3768 = vpop.f32.mrb[0].mxu0
    %v3769 = vadd.f32 %v3333, %v3768
    %v3770 = vpop.f32.mrb[0].mxu0
    %v3771 = vadd.f32 %v3329, %v3770
    %v3772 = vpop.f32.mrb[0].mxu0
    %v3773 = vadd.f32 %v3333, %v3772
    %3774 = vdwg.mxu0
    %3775 = vmatprep.subr.bf16.mxu0 %v3463
    %3776 = vmatpush1.bf16.msra.mxu0 %v3460
    %3777 = vmatprep.subr.bf16.mxu0 0
    %3778 = vmatpush1.bf16.msra.mxu0 0
    %3779 = vmatprep.subr.bf16.mxu0 0
    %3780 = vmatpush1.bf16.msra.mxu0 0
    %3781 = vmatprep.subr.bf16.mxu0 0
    %3782 = vmatpush1.bf16.msra.mxu0 0
    %3783 = vmatprep.subr.bf16.mxu0 0
    %3784 = vmatpush1.bf16.msra.mxu0 0
    %3785 = vmatprep.subr.bf16.mxu0 0
    %3786 = vmatpush1.bf16.msra.mxu0 0
    %3787 = vmatprep.subr.bf16.mxu0 0
    %3788 = vmatpush1.bf16.msra.mxu0 0
    %3789 = vmatprep.subr.bf16.mxu0 0
    %3790 = vmatpush1.bf16.msra.mxu0 0
    %3791 = vmatprep.subr.bf16.mxu0 0
    %3792 = vmatpush1.bf16.msra.mxu0 0
    %3793 = vmatprep.subr.bf16.mxu0 0
    %3794 = vmatpush1.bf16.msra.mxu0 0
    %3795 = vmatprep.subr.bf16.mxu0 0
    %3796 = vmatpush1.bf16.msra.mxu0 0
    %3797 = vmatprep.subr.bf16.mxu0 0
    %3798 = vmatpush1.bf16.msra.mxu0 0
    %3799 = vmatprep.subr.bf16.mxu0 0
    %3800 = vmatpush1.bf16.msra.mxu0 0
    %3801 = vmatprep.subr.bf16.mxu0 0
    %3802 = vmatpush1.bf16.msra.mxu0 0
    %3803 = vmatprep.subr.bf16.mxu0 0
    %3804 = vmatpush1.bf16.msra.mxu0 0
    %3805 = vmatprep.subr.bf16.mxu0 0
    %3806 = vmatpush1.bf16.msra.mxu0 0
    %3807 = vmatprep.mubr.bf16.mxu0 0
    %3808 = vmatmul.mubr.bf16.gmra.mrb[0].mxu0 %v3423
    %v3809 = vpop.f32.mrb[0].mxu0
    %v3810 = vadd.f32 %v3337, %v3809
    %v3811 = vpop.f32.mrb[0].mxu0
    %v3812 = vadd.f32 %v3341, %v3811
    %v3813 = vpop.f32.mrb[0].mxu0
    %v3814 = vadd.f32 %v3337, %v3813
    %v3815 = vpop.f32.mrb[0].mxu0
    %v3816 = vadd.f32 %v3341, %v3815
    %3817 = vmatprep.mubr.bf16.mxu0 0
    %3818 = vmatmul.mubr.bf16.gmra.mrb[0].mxu0 %v3426
    %v3819 = vpop.f32.mrb[0].mxu0
    %v3820 = vadd.f32 %v3337, %v3819
    %v3821 = vpop.f32.mrb[0].mxu0
    %v3822 = vadd.f32 %v3341, %v3821
    %v3823 = vpop.f32.mrb[0].mxu0
    %v3824 = vadd.f32 %v3337, %v3823
    %v3825 = vpop.f32.mrb[0].mxu0
    %v3826 = vadd.f32 %v3341, %v3825
    %3827 = vmatprep.mubr.bf16.mxu0 0
    %3828 = vmatmul.mubr.bf16.gmra.mrb[0].mxu0 %v3429
    %v3829 = vpop.f32.mrb[0].mxu0
    %v3830 = vadd.f32 %v3337, %v3829
    %v3831 = vpop.f32.mrb[0].mxu0
    %v3832 = vadd.f32 %v3341, %v3831
    %v3833 = vpop.f32.mrb[0].mxu0
    %v3834 = vadd.f32 %v3337, %v3833
    %v3835 = vpop.f32.mrb[0].mxu0
    %v3836 = vadd.f32 %v3341, %v3835
    %3837 = vmatprep.mubr.bf16.mxu0 0
    %3838 = vmatmul.mubr.bf16.gmra.mrb[0].mxu0 %v3432
    %v3839 = vpop.f32.mrb[0].mxu0
    %v3840 = vadd.f32 %v3337, %v3839
    %v3841 = vpop.f32.mrb[0].mxu0
    %v3842 = vadd.f32 %v3341, %v3841
    %v3843 = vpop.f32.mrb[0].mxu0
    %v3844 = vadd.f32 %v3337, %v3843
    %v3845 = vpop.f32.mrb[0].mxu0
    %v3846 = vadd.f32 %v3341, %v3845
    %3847 = vdwg.mxu0
    %3848 = vmatprep.subr.bf16.mxu0 %v3469
    %3849 = vmatpush1.bf16.msra.mxu0 %v3466
    %3850 = vmatprep.subr.bf16.mxu0 0
    %3851 = vmatpush1.bf16.msra.mxu0 0
    %3852 = vmatprep.subr.bf16.mxu0 0
    %3853 = vmatpush1.bf16.msra.mxu0 0
    %3854 = vmatprep.subr.bf16.mxu0 0
    %3855 = vmatpush1.bf16.msra.mxu0 0
    %3856 = vmatprep.subr.bf16.mxu0 0
    %3857 = vmatpush1.bf16.msra.mxu0 0
    %3858 = vmatprep.subr.bf16.mxu0 0
    %3859 = vmatpush1.bf16.msra.mxu0 0
    %3860 = vmatprep.subr.bf16.mxu0 0
    %3861 = vmatpush1.bf16.msra.mxu0 0
    %3862 = vmatprep.subr.bf16.mxu0 0
    %3863 = vmatpush1.bf16.msra.mxu0 0
    %3864 = vmatprep.subr.bf16.mxu0 0
    %3865 = vmatpush1.bf16.msra.mxu0 0
    %3866 = vmatprep.subr.bf16.mxu0 0
    %3867 = vmatpush1.bf16.msra.mxu0 0
    %3868 = vmatprep.subr.bf16.mxu0 0
    %3869 = vmatpush1.bf16.msra.mxu0 0
    %3870 = vmatprep.subr.bf16.mxu0 0
    %3871 = vmatpush1.bf16.msra.mxu0 0
    %3872 = vmatprep.subr.bf16.mxu0 0
    %3873 = vmatpush1.bf16.msra.mxu0 0
    %3874 = vmatprep.subr.bf16.mxu0 0
    %3875 = vmatpush1.bf16.msra.mxu0 0
    %3876 = vmatprep.subr.bf16.mxu0 0
    %3877 = vmatpush1.bf16.msra.mxu0 0
    %3878 = vmatprep.subr.bf16.mxu0 0
    %3879 = vmatpush1.bf16.msra.mxu0 0
    %3880 = vmatprep.mubr.bf16.mxu0 0
    %3881 = vmatmul.mubr.bf16.gmra.mrb[0].mxu0 %v3423
    %v3882 = vpop.f32.mrb[0].mxu0
    %v3883 = vadd.f32 %v3345, %v3882
    %v3884 = vpop.f32.mrb[0].mxu0
    %v3885 = vadd.f32 %v3349, %v3884
    %v3886 = vpop.f32.mrb[0].mxu0
    %v3887 = vadd.f32 %v3345, %v3886
    %v3888 = vpop.f32.mrb[0].mxu0
    %v3889 = vadd.f32 %v3349, %v3888
    %3890 = vmatprep.mubr.bf16.mxu0 0
    %3891 = vmatmul.mubr.bf16.gmra.mrb[0].mxu0 %v3426
    %v3892 = vpop.f32.mrb[0].mxu0
    %v3893 = vadd.f32 %v3345, %v3892
    %v3894 = vpop.f32.mrb[0].mxu0
    %v3895 = vadd.f32 %v3349, %v3894
    %v3896 = vpop.f32.mrb[0].mxu0
    %v3897 = vadd.f32 %v3345, %v3896
    %v3898 = vpop.f32.mrb[0].mxu0
    %v3899 = vadd.f32 %v3349, %v3898
    %3900 = vmatprep.mubr.bf16.mxu0 0
    %3901 = vmatmul.mubr.bf16.gmra.mrb[0].mxu0 %v3429
    %v3902 = vpop.f32.mrb[0].mxu0
    %v3903 = vadd.f32 %v3345, %v3902
    %v3904 = vpop.f32.mrb[0].mxu0
    %v3905 = vadd.f32 %v3349, %v3904
    %v3906 = vpop.f32.mrb[0].mxu0
    %v3907 = vadd.f32 %v3345, %v3906
    %v3908 = vpop.f32.mrb[0].mxu0
    %v3909 = vadd.f32 %v3349, %v3908
    %3910 = vmatprep.mubr.bf16.mxu0 0
    %3911 = vmatmul.mubr.bf16.gmra.mrb[0].mxu0 %v3432
    %v3912 = vpop.f32.mrb[0].mxu0
    %v3913 = vadd.f32 %v3345, %v3912
    %v3914 = vpop.f32.mrb[0].mxu0
    %v3915 = vadd.f32 %v3349, %v3914
    %v3916 = vpop.f32.mrb[0].mxu0
    %v3917 = vadd.f32 %v3345, %v3916
    %v3918 = vpop.f32.mrb[0].mxu0
    %v3919 = vadd.f32 %v3349, %v3918
    %3920 = vdwg.mxu0
    %3921 = vmatprep.subr.bf16.mxu0 %v3475
    %3922 = vmatpush1.bf16.msra.mxu0 %v3472
    %3923 = vmatprep.subr.bf16.mxu0 0
    %3924 = vmatpush1.bf16.msra.mxu0 0
    %3925 = vmatprep.subr.bf16.mxu0 0
    %3926 = vmatpush1.bf16.msra.mxu0 0
    %3927 = vmatprep.subr.bf16.mxu0 0
    %3928 = vmatpush1.bf16.msra.mxu0 0
    %3929 = vmatprep.subr.bf16.mxu0 0
    %3930 = vmatpush1.bf16.msra.mxu0 0
    %3931 = vmatprep.subr.bf16.mxu0 0
    %3932 = vmatpush1.bf16.msra.mxu0 0
    %3933 = vmatprep.subr.bf16.mxu0 0
    %3934 = vmatpush1.bf16.msra.mxu0 0
    %3935 = vmatprep.subr.bf16.mxu0 0
    %3936 = vmatpush1.bf16.msra.mxu0 0
    %3937 = vmatprep.subr.bf16.mxu0 0
    %3938 = vmatpush1.bf16.msra.mxu0 0
    %3939 = vmatprep.subr.bf16.mxu0 0
    %3940 = vmatpush1.bf16.msra.mxu0 0
    %3941 = vmatprep.subr.bf16.mxu0 0
    %3942 = vmatpush1.bf16.msra.mxu0 0
    %3943 = vmatprep.subr.bf16.mxu0 0
    %3944 = vmatpush1.bf16.msra.mxu0 0
    %3945 = vmatprep.subr.bf16.mxu0 0
    %3946 = vmatpush1.bf16.msra.mxu0 0
    %3947 = vmatprep.subr.bf16.mxu0 0
    %3948 = vmatpush1.bf16.msra.mxu0 0
    %3949 = vmatprep.subr.bf16.mxu0 0
    %3950 = vmatpush1.bf16.msra.mxu0 0
    %3951 = vmatprep.subr.bf16.mxu0 0
    %3952 = vmatpush1.bf16.msra.mxu0 0
    %3953 = vmatprep.mubr.bf16.mxu0 0
    %3954 = vmatmul.mubr.bf16.gmra.mrb[0].mxu0 %v3423
    %v3955 = vpop.f32.mrb[0].mxu0
    %v3956 = vadd.f32 %v3353, %v3955
    %v3957 = vpop.f32.mrb[0].mxu0
    %v3958 = vadd.f32 %v3357, %v3957
    %v3959 = vpop.f32.mrb[0].mxu0
    %v3960 = vadd.f32 %v3353, %v3959
    %v3961 = vpop.f32.mrb[0].mxu0
    %v3962 = vadd.f32 %v3357, %v3961
    %3963 = vmatprep.mubr.bf16.mxu0 0
    %3964 = vmatmul.mubr.bf16.gmra.mrb[0].mxu0 %v3426
    %v3965 = vpop.f32.mrb[0].mxu0
    %v3966 = vadd.f32 %v3353, %v3965
    %v3967 = vpop.f32.mrb[0].mxu0
    %v3968 = vadd.f32 %v3357, %v3967
    %v3969 = vpop.f32.mrb[0].mxu0
    %v3970 = vadd.f32 %v3353, %v3969
    %v3971 = vpop.f32.mrb[0].mxu0
    %v3972 = vadd.f32 %v3357, %v3971
    %3973 = vmatprep.mubr.bf16.mxu0 0
    %3974 = vmatmul.mubr.bf16.gmra.mrb[0].mxu0 %v3429
    %v3975 = vpop.f32.mrb[0].mxu0
    %v3976 = vadd.f32 %v3353, %v3975
    %v3977 = vpop.f32.mrb[0].mxu0
    %v3978 = vadd.f32 %v3357, %v3977
    %v3979 = vpop.f32.mrb[0].mxu0
    %v3980 = vadd.f32 %v3353, %v3979
    %v3981 = vpop.f32.mrb[0].mxu0
    %v3982 = vadd.f32 %v3357, %v3981
    %3983 = vmatprep.mubr.bf16.mxu0 0
    %3984 = vmatmul.mubr.bf16.gmra.mrb[0].mxu0 %v3432
    %v3985 = vpop.f32.mrb[0].mxu0
    %v3986 = vadd.f32 %v3353, %v3985
    %v3987 = vpop.f32.mrb[0].mxu0
    %v3988 = vadd.f32 %v3357, %v3987
    %v3989 = vpop.f32.mrb[0].mxu0
    %v3990 = vadd.f32 %v3353, %v3989
    %v3991 = vpop.f32.mrb[0].mxu0
    %v3992 = vadd.f32 %v3357, %v3991
    %3993 = vdwg.mxu0
    %3994 = vmatprep.subr.bf16.mxu0 %v3481
    %3995 = vmatpush1.bf16.msra.mxu0 %v3478
    %3996 = vmatprep.subr.bf16.mxu0 0
    %3997 = vmatpush1.bf16.msra.mxu0 0
    %3998 = vmatprep.subr.bf16.mxu0 0
    %3999 = vmatpush1.bf16.msra.mxu0 0
    %4000 = vmatprep.subr.bf16.mxu0 0
    %4001 = vmatpush1.bf16.msra.mxu0 0
    %4002 = vmatprep.subr.bf16.mxu0 0
    %4003 = vmatpush1.bf16.msra.mxu0 0
    %4004 = vmatprep.subr.bf16.mxu0 0
    %4005 = vmatpush1.bf16.msra.mxu0 0
    %4006 = vmatprep.subr.bf16.mxu0 0
    %4007 = vmatpush1.bf16.msra.mxu0 0
    %4008 = vmatprep.subr.bf16.mxu0 0
    %4009 = vmatpush1.bf16.msra.mxu0 0
    %4010 = vmatprep.subr.bf16.mxu0 0
    %4011 = vmatpush1.bf16.msra.mxu0 0
    %4012 = vmatprep.subr.bf16.mxu0 0
    %4013 = vmatpush1.bf16.msra.mxu0 0
    %4014 = vmatprep.subr.bf16.mxu0 0
    %4015 = vmatpush1.bf16.msra.mxu0 0
    %4016 = vmatprep.subr.bf16.mxu0 0
    %4017 = vmatpush1.bf16.msra.mxu0 0
    %4018 = vmatprep.subr.bf16.mxu0 0
    %4019 = vmatpush1.bf16.msra.mxu0 0
    %4020 = vmatprep.subr.bf16.mxu0 0
    %4021 = vmatpush1.bf16.msra.mxu0 0
    %4022 = vmatprep.subr.bf16.mxu0 0
    %4023 = vmatpush1.bf16.msra.mxu0 0
    %4024 = vmatprep.subr.bf16.mxu0 0
    %4025 = vmatpush1.bf16.msra.mxu0 0
    %4026 = vmatprep.mubr.bf16.mxu0 0
    %4027 = vmatmul.mubr.bf16.gmra.mrb[0].mxu0 %v3423
    %v4028 = vpop.f32.mrb[0].mxu0
    %v4029 = vadd.f32 %v3361, %v4028
    %v4030 = vpop.f32.mrb[0].mxu0
    %v4031 = vadd.f32 %v3365, %v4030
    %v4032 = vpop.f32.mrb[0].mxu0
    %v4033 = vadd.f32 %v3361, %v4032
    %v4034 = vpop.f32.mrb[0].mxu0
    %v4035 = vadd.f32 %v3365, %v4034
    %4036 = vmatprep.mubr.bf16.mxu0 0
    %4037 = vmatmul.mubr.bf16.gmra.mrb[0].mxu0 %v3426
    %v4038 = vpop.f32.mrb[0].mxu0
    %v4039 = vadd.f32 %v3361, %v4038
    %v4040 = vpop.f32.mrb[0].mxu0
    %v4041 = vadd.f32 %v3365, %v4040
    %v4042 = vpop.f32.mrb[0].mxu0
    %v4043 = vadd.f32 %v3361, %v4042
    %v4044 = vpop.f32.mrb[0].mxu0
    %v4045 = vadd.f32 %v3365, %v4044
    %4046 = vmatprep.mubr.bf16.mxu0 0
    %4047 = vmatmul.mubr.bf16.gmra.mrb[0].mxu0 %v3429
    %v4048 = vpop.f32.mrb[0].mxu0
    %v4049 = vadd.f32 %v3361, %v4048
    %v4050 = vpop.f32.mrb[0].mxu0
    %v4051 = vadd.f32 %v3365, %v4050
    %v4052 = vpop.f32.mrb[0].mxu0
    %v4053 = vadd.f32 %v3361, %v4052
    %v4054 = vpop.f32.mrb[0].mxu0
    %v4055 = vadd.f32 %v3365, %v4054
    %4056 = vmatprep.mubr.bf16.mxu0 0
    %4057 = vmatmul.mubr.bf16.gmra.mrb[0].mxu0 %v3432
    %v4058 = vpop.f32.mrb[0].mxu0
    %v4059 = vadd.f32 %v3361, %v4058
    %v4060 = vpop.f32.mrb[0].mxu0
    %v4061 = vadd.f32 %v3365, %v4060
    %v4062 = vpop.f32.mrb[0].mxu0
    %v4063 = vadd.f32 %v3361, %v4062
    %v4064 = vpop.f32.mrb[0].mxu0
    %v4065 = vadd.f32 %v3365, %v4064
    %4066 = vdwg.mxu0
    %v4067 = vmax.f32 %v3518, 0.0
    %v4068 = vmax.f32 %v3520, 0.0
    %v4069 = vmax.f32 %v3591, 0.0
    %v4070 = vmax.f32 %v3593, 0.0
    %v4071 = vmax.f32 %v3664, 0.0
    %v4072 = vmax.f32 %v3666, 0.0
    %v4073 = vmax.f32 %v3737, 0.0
    %v4074 = vmax.f32 %v3739, 0.0
    %v4075 = vmax.f32 %v3810, 0.0
    %v4076 = vmax.f32 %v3812, 0.0
    %v4077 = vmax.f32 %v3883, 0.0
    %v4078 = vmax.f32 %v3885, 0.0
    %v4079 = vmax.f32 %v3956, 0.0
    %v4080 = vmax.f32 %v3958, 0.0
    %v4081 = vmax.f32 %v4029, 0.0
    %v4082 = vmax.f32 %v4031, 0.0
    %v4083 = vmax.f32 %v3522, 0.0
    %v4084 = vmax.f32 %v3524, 0.0
    %v4085 = vmax.f32 %v3595, 0.0
    %v4086 = vmax.f32 %v3597, 0.0
    %v4087 = vmax.f32 %v3668, 0.0
    %v4088 = vmax.f32 %v3670, 0.0
    %v4089 = vmax.f32 %v3741, 0.0
    %v4090 = vmax.f32 %v3743, 0.0
    %v4091 = vmax.f32 %v3814, 0.0
    %v4092 = vmax.f32 %v3816, 0.0
    %v4093 = vmax.f32 %v3887, 0.0
    %v4094 = vmax.f32 %v3889, 0.0
    %v4095 = vmax.f32 %v3960, 0.0
    %v4096 = vmax.f32 %v3962, 0.0
    %v4097 = vmax.f32 %v4033, 0.0
    %v4098 = vmax.f32 %v4035, 0.0
    %v4099 = vmax.f32 %v3528, 0.0
    %v4100 = vmax.f32 %v3530, 0.0
    %v4101 = vmax.f32 %v3601, 0.0
    %v4102 = vmax.f32 %v3603, 0.0
    %v4103 = vmax.f32 %v3674, 0.0
    %v4104 = vmax.f32 %v3676, 0.0
    %v4105 = vmax.f32 %v3747, 0.0
    %v4106 = vmax.f32 %v3749, 0.0
    %v4107 = vmax.f32 %v3820, 0.0
    %v4108 = vmax.f32 %v3822, 0.0
    %v4109 = vmax.f32 %v3893, 0.0
    %v4110 = vmax.f32 %v3895, 0.0
    %v4111 = vmax.f32 %v3966, 0.0
    %v4112 = vmax.f32 %v3968, 0.0
    %v4113 = vmax.f32 %v4039, 0.0
    %v4114 = vmax.f32 %v4041, 0.0
    %v4115 = vmax.f32 %v3532, 0.0
    %v4116 = vmax.f32 %v3534, 0.0
    %v4117 = vmax.f32 %v3605, 0.0
    %v4118 = vmax.f32 %v3607, 0.0
    %v4119 = vmax.f32 %v3678, 0.0
    %v4120 = vmax.f32 %v3680, 0.0
    %v4121 = vmax.f32 %v3751, 0.0
    %v4122 = vmax.f32 %v3753, 0.0
    %v4123 = vmax.f32 %v3824, 0.0
    %v4124 = vmax.f32 %v3826, 0.0
    %v4125 = vmax.f32 %v3897, 0.0
    %v4126 = vmax.f32 %v3899, 0.0
    %v4127 = vmax.f32 %v3970, 0.0
    %v4128 = vmax.f32 %v3972, 0.0
    %v4129 = vmax.f32 %v4043, 0.0
    %v4130 = vmax.f32 %v4045, 0.0
    %v4131 = vmax.f32 %v3538, 0.0
    %v4132 = vmax.f32 %v3540, 0.0
    %v4133 = vmax.f32 %v3611, 0.0
    %v4134 = vmax.f32 %v3613, 0.0
    %v4135 = vmax.f32 %v3684, 0.0
    %v4136 = vmax.f32 %v3686, 0.0
    %v4137 = vmax.f32 %v3757, 0.0
    %v4138 = vmax.f32 %v3759, 0.0
    %v4139 = vmax.f32 %v3830, 0.0
    %v4140 = vmax.f32 %v3832, 0.0
    %v4141 = vmax.f32 %v3903, 0.0
    %v4142 = vmax.f32 %v3905, 0.0
    %v4143 = vmax.f32 %v3976, 0.0
    %v4144 = vmax.f32 %v3978, 0.0
    %v4145 = vmax.f32 %v4049, 0.0
    %v4146 = vmax.f32 %v4051, 0.0
    %v4147 = vmax.f32 %v3542, 0.0
    %v4148 = vmax.f32 %v3544, 0.0
    %v4149 = vmax.f32 %v3615, 0.0
    %v4150 = vmax.f32 %v3617, 0.0
    %v4151 = vmax.f32 %v3688, 0.0
    %v4152 = vmax.f32 %v3690, 0.0
    %v4153 = vmax.f32 %v3761, 0.0
    %v4154 = vmax.f32 %v3763, 0.0
    %v4155 = vmax.f32 %v3834, 0.0
    %v4156 = vmax.f32 %v3836, 0.0
    %v4157 = vmax.f32 %v3907, 0.0
    %v4158 = vmax.f32 %v3909, 0.0
    %v4159 = vmax.f32 %v3980, 0.0
    %v4160 = vmax.f32 %v3982, 0.0
    %v4161 = vmax.f32 %v4053, 0.0
    %v4162 = vmax.f32 %v4055, 0.0
    %v4163 = vmax.f32 %v3548, 0.0
    %v4164 = vmax.f32 %v3550, 0.0
    %v4165 = vmax.f32 %v3621, 0.0
    %v4166 = vmax.f32 %v3623, 0.0
    %v4167 = vmax.f32 %v3694, 0.0
    %v4168 = vmax.f32 %v3696, 0.0
    %v4169 = vmax.f32 %v3767, 0.0
    %v4170 = vmax.f32 %v3769, 0.0
    %v4171 = vmax.f32 %v3840, 0.0
    %v4172 = vmax.f32 %v3842, 0.0
    %v4173 = vmax.f32 %v3913, 0.0
    %v4174 = vmax.f32 %v3915, 0.0
    %v4175 = vmax.f32 %v3986, 0.0
    %v4176 = vmax.f32 %v3988, 0.0
    %v4177 = vmax.f32 %v4059, 0.0
    %v4178 = vmax.f32 %v4061, 0.0
    %v4179 = vmax.f32 %v3552, 0.0
    %v4180 = vmax.f32 %v3554, 0.0
    %v4181 = vmax.f32 %v3625, 0.0
    %v4182 = vmax.f32 %v3627, 0.0
    %v4183 = vmax.f32 %v3698, 0.0
    %v4184 = vmax.f32 %v3700, 0.0
    %v4185 = vmax.f32 %v3771, 0.0
    %v4186 = vmax.f32 %v3773, 0.0
    %v4187 = vmax.f32 %v3844, 0.0
    %v4188 = vmax.f32 %v3846, 0.0
    %v4189 = vmax.f32 %v3917, 0.0
    %v4190 = vmax.f32 %v3919, 0.0
    %v4191 = vmax.f32 %v3990, 0.0
    %v4192 = vmax.f32 %v3992, 0.0
    %v4193 = vmax.f32 %v4063, 0.0
    %v4194 = vmax.f32 %v4065, 0.0
    %v4195 = vpack.c.bf16 %v4083, %v4067
    %v4196 = vpack.c.bf16 %v4084, %v4068
    %v4197 = vpack.c.bf16 %v4085, %v4069
    %v4198 = vpack.c.bf16 %v4086, %v4070
    %v4199 = vpack.c.bf16 %v4087, %v4071
    %v4200 = vpack.c.bf16 %v4088, %v4072
    %v4201 = vpack.c.bf16 %v4089, %v4073
    %v4202 = vpack.c.bf16 %v4090, %v4074
    %v4203 = vpack.c.bf16 %v4091, %v4075
    %v4204 = vpack.c.bf16 %v4092, %v4076
    %v4205 = vpack.c.bf16 %v4093, %v4077
    %v4206 = vpack.c.bf16 %v4094, %v4078
    %v4207 = vpack.c.bf16 %v4095, %v4079
    %v4208 = vpack.c.bf16 %v4096, %v4080
    %v4209 = vpack.c.bf16 %v4097, %v4081
    %v4210 = vpack.c.bf16 %v4098, %v4082
    %v4211 = vpack.c.bf16 %v4115, %v4099
    %v4212 = vpack.c.bf16 %v4116, %v4100
    %v4213 = vpack.c.bf16 %v4117, %v4101
    %v4214 = vpack.c.bf16 %v4118, %v4102
    %v4215 = vpack.c.bf16 %v4119, %v4103
    %v4216 = vpack.c.bf16 %v4120, %v4104
    %v4217 = vpack.c.bf16 %v4121, %v4105
    %v4218 = vpack.c.bf16 %v4122, %v4106
    %v4219 = vpack.c.bf16 %v4123, %v4107
    %v4220 = vpack.c.bf16 %v4124, %v4108
    %v4221 = vpack.c.bf16 %v4125, %v4109
    %v4222 = vpack.c.bf16 %v4126, %v4110
    %v4223 = vpack.c.bf16 %v4127, %v4111
    %v4224 = vpack.c.bf16 %v4128, %v4112
    %v4225 = vpack.c.bf16 %v4129, %v4113
    %v4226 = vpack.c.bf16 %v4130, %v4114
    %v4227 = vpack.c.bf16 %v4147, %v4131
    %v4228 = vpack.c.bf16 %v4148, %v4132
    %v4229 = vpack.c.bf16 %v4149, %v4133
    %v4230 = vpack.c.bf16 %v4150, %v4134
    %v4231 = vpack.c.bf16 %v4151, %v4135
    %v4232 = vpack.c.bf16 %v4152, %v4136
    %v4233 = vpack.c.bf16 %v4153, %v4137
    %v4234 = vpack.c.bf16 %v4154, %v4138
    %v4235 = vpack.c.bf16 %v4155, %v4139
    %v4236 = vpack.c.bf16 %v4156, %v4140
    %v4237 = vpack.c.bf16 %v4157, %v4141
    %v4238 = vpack.c.bf16 %v4158, %v4142
    %v4239 = vpack.c.bf16 %v4159, %v4143
    %v4240 = vpack.c.bf16 %v4160, %v4144
    %v4241 = vpack.c.bf16 %v4161, %v4145
    %v4242 = vpack.c.bf16 %v4162, %v4146
    %v4243 = vpack.c.bf16 %v4179, %v4163
    %v4244 = vpack.c.bf16 %v4180, %v4164
    %v4245 = vpack.c.bf16 %v4181, %v4165
    %v4246 = vpack.c.bf16 %v4182, %v4166
    %v4247 = vpack.c.bf16 %v4183, %v4167
    %v4248 = vpack.c.bf16 %v4184, %v4168
    %v4249 = vpack.c.bf16 %v4185, %v4169
    %v4250 = vpack.c.bf16 %v4186, %v4170
    %v4251 = vpack.c.bf16 %v4187, %v4171
    %v4252 = vpack.c.bf16 %v4188, %v4172
    %v4253 = vpack.c.bf16 %v4189, %v4173
    %v4254 = vpack.c.bf16 %v4190, %v4174
    %v4255 = vpack.c.bf16 %v4191, %v4175
    %v4256 = vpack.c.bf16 %v4192, %v4176
    %v4257 = vpack.c.bf16 %v4193, %v4177
    %v4258 = vpack.c.bf16 %v4194, %v4178
    %v4267 = vunpack.c.l.b16 %v3286
    %v4268 = vunpack.c.h.b16 %v3286
    %v4269 = vunpack.c.l.b16 %v3287
    %v4270 = vunpack.c.h.b16 %v3287
    %v4271 = vunpack.c.l.b16 %v3288
    %v4272 = vunpack.c.h.b16 %v3288
    %v4273 = vunpack.c.l.b16 %v3289
    %v4274 = vunpack.c.h.b16 %v3289
    %v4275 = vunpack.c.l.b16 %v3290
    %v4276 = vunpack.c.h.b16 %v3290
    %v4277 = vunpack.c.l.b16 %v3291
    %v4278 = vunpack.c.h.b16 %v3291
    %v4279 = vunpack.c.l.b16 %v3292
    %v4280 = vunpack.c.h.b16 %v3292
    %v4281 = vunpack.c.l.b16 %v3293
    %v4282 = vunpack.c.h.b16 %v3293
    %v4283 = vpack.c.b16 %v4267, %v4267
    %v4284 = vpack.c.b16 %v4268, %v4268
    %v4285 = vpack.c.b16 %v4269, %v4269
    %v4286 = vpack.c.b16 %v4270, %v4270
    %v4287 = vpack.c.b16 %v4271, %v4271
    %v4288 = vpack.c.b16 %v4272, %v4272
    %v4289 = vpack.c.b16 %v4273, %v4273
    %v4290 = vpack.c.b16 %v4274, %v4274
    %v4291 = vpack.c.b16 %v4275, %v4275
    %v4292 = vpack.c.b16 %v4276, %v4276
    %v4293 = vpack.c.b16 %v4277, %v4277
    %v4294 = vpack.c.b16 %v4278, %v4278
    %v4295 = vpack.c.b16 %v4279, %v4279
    %v4296 = vpack.c.b16 %v4280, %v4280
    %v4297 = vpack.c.b16 %v4281, %v4281
    %v4298 = vpack.c.b16 %v4282, %v4282
    %4315 = vrot.lane.b32.xlu0 %v3006, 64
    %v4316 = vpop.permute.xlu0 %4315
    %4318 = vmatprep.subr.bf16.mxu0 %v4284
    %4319 = vmatpush1.bf16.xpose.msra.mxu0 %v4283
    %4320 = vmatprep.subr.bf16.mxu0 0
    %4321 = vmatpush1.bf16.xpose.msra.mxu0 0
    %4322 = vmatprep.subr.bf16.mxu0 0
    %4323 = vmatpush1.bf16.xpose.msra.mxu0 0
    %4324 = vmatprep.subr.bf16.mxu0 0
    %4325 = vmatpush1.bf16.xpose.msra.mxu0 0
    %4326 = vmatprep.subr.bf16.mxu0 0
    %4327 = vmatpush1.bf16.xpose.msra.mxu0 0
    %4328 = vmatprep.subr.bf16.mxu0 0
    %4329 = vmatpush1.bf16.xpose.msra.mxu0 0
    %4330 = vmatprep.subr.bf16.mxu0 0
    %4331 = vmatpush1.bf16.xpose.msra.mxu0 0
    %4332 = vmatprep.subr.bf16.mxu0 0
    %4333 = vmatpush1.bf16.xpose.msra.mxu0 0
    %4334 = vmatprep.subr.bf16.mxu0 0
    %4335 = vmatpush1.bf16.xpose.msra.mxu0 0
    %4336 = vmatprep.subr.bf16.mxu0 0
    %4337 = vmatpush1.bf16.xpose.msra.mxu0 0
    %4338 = vmatprep.subr.bf16.mxu0 0
    %4339 = vmatpush1.bf16.xpose.msra.mxu0 0
    %4340 = vmatprep.subr.bf16.mxu0 0
    %4341 = vmatpush1.bf16.xpose.msra.mxu0 0
    %4342 = vmatprep.subr.bf16.mxu0 0
    %4343 = vmatpush1.bf16.xpose.msra.mxu0 0
    %4344 = vmatprep.subr.bf16.mxu0 0
    %4345 = vmatpush1.bf16.xpose.msra.mxu0 0
    %4346 = vmatprep.subr.bf16.mxu0 0
    %4347 = vmatpush1.bf16.xpose.msra.mxu0 0
    %4348 = vmatprep.subr.bf16.mxu0 0
    %4349 = vmatpush1.bf16.xpose.msra.mxu0 0
    %4350 = vmatprep.mubr.bf16.mxu0 %v4196
    %4351 = vmatmul.mubr.bf16.gmra.mrb[0].mxu0 %v4195
    %v4352 = vpop.f32.mrb[0].mxu0
    %v4353 = vadd.f32 %v4316, %v4352
    %v4354 = vpop.f32.mrb[0].mxu0
    %v4355 = vpop.f32.mrb[0].mxu0
    %v4356 = vadd.f32 %v4316, %v4355
    %v4357 = vpop.f32.mrb[0].mxu0
    %4358 = vmatprep.mubr.bf16.mxu0 %v4212
    %4359 = vmatmul.mubr.bf16.gmra.mrb[0].mxu0 %v4211
    %v4360 = vpop.f32.mrb[0].mxu0
    %v4361 = vadd.f32 %v4316, %v4360
    %v4362 = vpop.f32.mrb[0].mxu0
    %v4363 = vpop.f32.mrb[0].mxu0
    %v4364 = vadd.f32 %v4316, %v4363
    %v4365 = vpop.f32.mrb[0].mxu0
    %4366 = vmatprep.mubr.bf16.mxu0 %v4228
    %4367 = vmatmul.mubr.bf16.gmra.mrb[0].mxu0 %v4227
    %v4368 = vpop.f32.mrb[0].mxu0
    %v4369 = vadd.f32 %v4316, %v4368
    %v4370 = vpop.f32.mrb[0].mxu0
    %v4371 = vpop.f32.mrb[0].mxu0
    %v4372 = vadd.f32 %v4316, %v4371
    %v4373 = vpop.f32.mrb[0].mxu0
    %4374 = vmatprep.mubr.bf16.mxu0 %v4244
    %4375 = vmatmul.mubr.bf16.gmra.mrb[0].mxu0 %v4243
    %v4376 = vpop.f32.mrb[0].mxu0
    %v4377 = vadd.f32 %v4316, %v4376
    %v4378 = vpop.f32.mrb[0].mxu0
    %v4379 = vpop.f32.mrb[0].mxu0
    %v4380 = vadd.f32 %v4316, %v4379
    %v4381 = vpop.f32.mrb[0].mxu0
    %4382 = vdwg.mxu0
    %4383 = vmatprep.subr.bf16.mxu0 %v4286
    %4384 = vmatpush1.bf16.xpose.msra.mxu0 %v4285
    %4385 = vmatprep.subr.bf16.mxu0 0
    %4386 = vmatpush1.bf16.xpose.msra.mxu0 0
    %4387 = vmatprep.subr.bf16.mxu0 0
    %4388 = vmatpush1.bf16.xpose.msra.mxu0 0
    %4389 = vmatprep.subr.bf16.mxu0 0
    %4390 = vmatpush1.bf16.xpose.msra.mxu0 0
    %4391 = vmatprep.subr.bf16.mxu0 0
    %4392 = vmatpush1.bf16.xpose.msra.mxu0 0
    %4393 = vmatprep.subr.bf16.mxu0 0
    %4394 = vmatpush1.bf16.xpose.msra.mxu0 0
    %4395 = vmatprep.subr.bf16.mxu0 0
    %4396 = vmatpush1.bf16.xpose.msra.mxu0 0
    %4397 = vmatprep.subr.bf16.mxu0 0
    %4398 = vmatpush1.bf16.xpose.msra.mxu0 0
    %4399 = vmatprep.subr.bf16.mxu0 0
    %4400 = vmatpush1.bf16.xpose.msra.mxu0 0
    %4401 = vmatprep.subr.bf16.mxu0 0
    %4402 = vmatpush1.bf16.xpose.msra.mxu0 0
    %4403 = vmatprep.subr.bf16.mxu0 0
    %4404 = vmatpush1.bf16.xpose.msra.mxu0 0
    %4405 = vmatprep.subr.bf16.mxu0 0
    %4406 = vmatpush1.bf16.xpose.msra.mxu0 0
    %4407 = vmatprep.subr.bf16.mxu0 0
    %4408 = vmatpush1.bf16.xpose.msra.mxu0 0
    %4409 = vmatprep.subr.bf16.mxu0 0
    %4410 = vmatpush1.bf16.xpose.msra.mxu0 0
    %4411 = vmatprep.subr.bf16.mxu0 0
    %4412 = vmatpush1.bf16.xpose.msra.mxu0 0
    %4413 = vmatprep.subr.bf16.mxu0 0
    %4414 = vmatpush1.bf16.xpose.msra.mxu0 0
    %4415 = vmatprep.mubr.bf16.mxu0 %v4198
    %4416 = vmatmul.mubr.bf16.gmra.mrb[0].mxu0 %v4197
    %v4417 = vpop.f32.mrb[0].mxu0
    %v4418 = vadd.f32 %v4353, %v4417
    %v4419 = vpop.f32.mrb[0].mxu0
    %v4420 = vpop.f32.mrb[0].mxu0
    %v4421 = vadd.f32 %v4356, %v4420
    %v4422 = vpop.f32.mrb[0].mxu0
    %4423 = vmatprep.mubr.bf16.mxu0 %v4214
    %4424 = vmatmul.mubr.bf16.gmra.mrb[0].mxu0 %v4213
    %v4425 = vpop.f32.mrb[0].mxu0
    %v4426 = vadd.f32 %v4361, %v4425
    %v4427 = vpop.f32.mrb[0].mxu0
    %v4428 = vpop.f32.mrb[0].mxu0
    %v4429 = vadd.f32 %v4364, %v4428
    %v4430 = vpop.f32.mrb[0].mxu0
    %4431 = vmatprep.mubr.bf16.mxu0 %v4230
    %4432 = vmatmul.mubr.bf16.gmra.mrb[0].mxu0 %v4229
    %v4433 = vpop.f32.mrb[0].mxu0
    %v4434 = vadd.f32 %v4369, %v4433
    %v4435 = vpop.f32.mrb[0].mxu0
    %v4436 = vpop.f32.mrb[0].mxu0
    %v4437 = vadd.f32 %v4372, %v4436
    %v4438 = vpop.f32.mrb[0].mxu0
    %4439 = vmatprep.mubr.bf16.mxu0 %v4246
    %4440 = vmatmul.mubr.bf16.gmra.mrb[0].mxu0 %v4245
    %v4441 = vpop.f32.mrb[0].mxu0
    %v4442 = vadd.f32 %v4377, %v4441
    %v4443 = vpop.f32.mrb[0].mxu0
    %v4444 = vpop.f32.mrb[0].mxu0
    %v4445 = vadd.f32 %v4380, %v4444
    %v4446 = vpop.f32.mrb[0].mxu0
    %4447 = vdwg.mxu0
    %4448 = vmatprep.subr.bf16.mxu0 %v4288
    %4449 = vmatpush1.bf16.xpose.msra.mxu0 %v4287
    %4450 = vmatprep.subr.bf16.mxu0 0
    %4451 = vmatpush1.bf16.xpose.msra.mxu0 0
    %4452 = vmatprep.subr.bf16.mxu0 0
    %4453 = vmatpush1.bf16.xpose.msra.mxu0 0
    %4454 = vmatprep.subr.bf16.mxu0 0
    %4455 = vmatpush1.bf16.xpose.msra.mxu0 0
    %4456 = vmatprep.subr.bf16.mxu0 0
    %4457 = vmatpush1.bf16.xpose.msra.mxu0 0
    %4458 = vmatprep.subr.bf16.mxu0 0
    %4459 = vmatpush1.bf16.xpose.msra.mxu0 0
    %4460 = vmatprep.subr.bf16.mxu0 0
    %4461 = vmatpush1.bf16.xpose.msra.mxu0 0
    %4462 = vmatprep.subr.bf16.mxu0 0
    %4463 = vmatpush1.bf16.xpose.msra.mxu0 0
    %4464 = vmatprep.subr.bf16.mxu0 0
    %4465 = vmatpush1.bf16.xpose.msra.mxu0 0
    %4466 = vmatprep.subr.bf16.mxu0 0
    %4467 = vmatpush1.bf16.xpose.msra.mxu0 0
    %4468 = vmatprep.subr.bf16.mxu0 0
    %4469 = vmatpush1.bf16.xpose.msra.mxu0 0
    %4470 = vmatprep.subr.bf16.mxu0 0
    %4471 = vmatpush1.bf16.xpose.msra.mxu0 0
    %4472 = vmatprep.subr.bf16.mxu0 0
    %4473 = vmatpush1.bf16.xpose.msra.mxu0 0
    %4474 = vmatprep.subr.bf16.mxu0 0
    %4475 = vmatpush1.bf16.xpose.msra.mxu0 0
    %4476 = vmatprep.subr.bf16.mxu0 0
    %4477 = vmatpush1.bf16.xpose.msra.mxu0 0
    %4478 = vmatprep.subr.bf16.mxu0 0
    %4479 = vmatpush1.bf16.xpose.msra.mxu0 0
    %4480 = vmatprep.mubr.bf16.mxu0 %v4200
    %4481 = vmatmul.mubr.bf16.gmra.mrb[0].mxu0 %v4199
    %v4482 = vpop.f32.mrb[0].mxu0
    %v4483 = vadd.f32 %v4418, %v4482
    %v4484 = vpop.f32.mrb[0].mxu0
    %v4485 = vpop.f32.mrb[0].mxu0
    %v4486 = vadd.f32 %v4421, %v4485
    %v4487 = vpop.f32.mrb[0].mxu0
    %4488 = vmatprep.mubr.bf16.mxu0 %v4216
    %4489 = vmatmul.mubr.bf16.gmra.mrb[0].mxu0 %v4215
    %v4490 = vpop.f32.mrb[0].mxu0
    %v4491 = vadd.f32 %v4426, %v4490
    %v4492 = vpop.f32.mrb[0].mxu0
    %v4493 = vpop.f32.mrb[0].mxu0
    %v4494 = vadd.f32 %v4429, %v4493
    %v4495 = vpop.f32.mrb[0].mxu0
    %4496 = vmatprep.mubr.bf16.mxu0 %v4232
    %4497 = vmatmul.mubr.bf16.gmra.mrb[0].mxu0 %v4231
    %v4498 = vpop.f32.mrb[0].mxu0
    %v4499 = vadd.f32 %v4434, %v4498
    %v4500 = vpop.f32.mrb[0].mxu0
    %v4501 = vpop.f32.mrb[0].mxu0
    %v4502 = vadd.f32 %v4437, %v4501
    %v4503 = vpop.f32.mrb[0].mxu0
    %4504 = vmatprep.mubr.bf16.mxu0 %v4248
    %4505 = vmatmul.mubr.bf16.gmra.mrb[0].mxu0 %v4247
    %v4506 = vpop.f32.mrb[0].mxu0
    %v4507 = vadd.f32 %v4442, %v4506
    %v4508 = vpop.f32.mrb[0].mxu0
    %v4509 = vpop.f32.mrb[0].mxu0
    %v4510 = vadd.f32 %v4445, %v4509
    %v4511 = vpop.f32.mrb[0].mxu0
    %4512 = vdwg.mxu0
    %4513 = vmatprep.subr.bf16.mxu0 %v4290
    %4514 = vmatpush1.bf16.xpose.msra.mxu0 %v4289
    %4515 = vmatprep.subr.bf16.mxu0 0
    %4516 = vmatpush1.bf16.xpose.msra.mxu0 0
    %4517 = vmatprep.subr.bf16.mxu0 0
    %4518 = vmatpush1.bf16.xpose.msra.mxu0 0
    %4519 = vmatprep.subr.bf16.mxu0 0
    %4520 = vmatpush1.bf16.xpose.msra.mxu0 0
    %4521 = vmatprep.subr.bf16.mxu0 0
    %4522 = vmatpush1.bf16.xpose.msra.mxu0 0
    %4523 = vmatprep.subr.bf16.mxu0 0
    %4524 = vmatpush1.bf16.xpose.msra.mxu0 0
    %4525 = vmatprep.subr.bf16.mxu0 0
    %4526 = vmatpush1.bf16.xpose.msra.mxu0 0
    %4527 = vmatprep.subr.bf16.mxu0 0
    %4528 = vmatpush1.bf16.xpose.msra.mxu0 0
    %4529 = vmatprep.subr.bf16.mxu0 0
    %4530 = vmatpush1.bf16.xpose.msra.mxu0 0
    %4531 = vmatprep.subr.bf16.mxu0 0
    %4532 = vmatpush1.bf16.xpose.msra.mxu0 0
    %4533 = vmatprep.subr.bf16.mxu0 0
    %4534 = vmatpush1.bf16.xpose.msra.mxu0 0
    %4535 = vmatprep.subr.bf16.mxu0 0
    %4536 = vmatpush1.bf16.xpose.msra.mxu0 0
    %4537 = vmatprep.subr.bf16.mxu0 0
    %4538 = vmatpush1.bf16.xpose.msra.mxu0 0
    %4539 = vmatprep.subr.bf16.mxu0 0
    %4540 = vmatpush1.bf16.xpose.msra.mxu0 0
    %4541 = vmatprep.subr.bf16.mxu0 0
    %4542 = vmatpush1.bf16.xpose.msra.mxu0 0
    %4543 = vmatprep.subr.bf16.mxu0 0
    %4544 = vmatpush1.bf16.xpose.msra.mxu0 0
    %4545 = vmatprep.mubr.bf16.mxu0 %v4202
    %4546 = vmatmul.mubr.bf16.gmra.mrb[0].mxu0 %v4201
    %v4547 = vpop.f32.mrb[0].mxu0
    %v4548 = vadd.f32 %v4483, %v4547
    %v4549 = vpop.f32.mrb[0].mxu0
    %v4550 = vpop.f32.mrb[0].mxu0
    %v4551 = vadd.f32 %v4486, %v4550
    %v4552 = vpop.f32.mrb[0].mxu0
    %4553 = vmatprep.mubr.bf16.mxu0 %v4218
    %4554 = vmatmul.mubr.bf16.gmra.mrb[0].mxu0 %v4217
    %v4555 = vpop.f32.mrb[0].mxu0
    %v4556 = vadd.f32 %v4491, %v4555
    %v4557 = vpop.f32.mrb[0].mxu0
    %v4558 = vpop.f32.mrb[0].mxu0
    %v4559 = vadd.f32 %v4494, %v4558
    %v4560 = vpop.f32.mrb[0].mxu0
    %4561 = vmatprep.mubr.bf16.mxu0 %v4234
    %4562 = vmatmul.mubr.bf16.gmra.mrb[0].mxu0 %v4233
    %v4563 = vpop.f32.mrb[0].mxu0
    %v4564 = vadd.f32 %v4499, %v4563
    %v4565 = vpop.f32.mrb[0].mxu0
    %v4566 = vpop.f32.mrb[0].mxu0
    %v4567 = vadd.f32 %v4502, %v4566
    %v4568 = vpop.f32.mrb[0].mxu0
    %4569 = vmatprep.mubr.bf16.mxu0 %v4250
    %4570 = vmatmul.mubr.bf16.gmra.mrb[0].mxu0 %v4249
    %v4571 = vpop.f32.mrb[0].mxu0
    %v4572 = vadd.f32 %v4507, %v4571
    %v4573 = vpop.f32.mrb[0].mxu0
    %v4574 = vpop.f32.mrb[0].mxu0
    %v4575 = vadd.f32 %v4510, %v4574
    %v4576 = vpop.f32.mrb[0].mxu0
    %4577 = vdwg.mxu0
    %4578 = vmatprep.subr.bf16.mxu0 %v4292
    %4579 = vmatpush1.bf16.xpose.msra.mxu0 %v4291
    %4580 = vmatprep.subr.bf16.mxu0 0
    %4581 = vmatpush1.bf16.xpose.msra.mxu0 0
    %4582 = vmatprep.subr.bf16.mxu0 0
    %4583 = vmatpush1.bf16.xpose.msra.mxu0 0
    %4584 = vmatprep.subr.bf16.mxu0 0
    %4585 = vmatpush1.bf16.xpose.msra.mxu0 0
    %4586 = vmatprep.subr.bf16.mxu0 0
    %4587 = vmatpush1.bf16.xpose.msra.mxu0 0
    %4588 = vmatprep.subr.bf16.mxu0 0
    %4589 = vmatpush1.bf16.xpose.msra.mxu0 0
    %4590 = vmatprep.subr.bf16.mxu0 0
    %4591 = vmatpush1.bf16.xpose.msra.mxu0 0
    %4592 = vmatprep.subr.bf16.mxu0 0
    %4593 = vmatpush1.bf16.xpose.msra.mxu0 0
    %4594 = vmatprep.subr.bf16.mxu0 0
    %4595 = vmatpush1.bf16.xpose.msra.mxu0 0
    %4596 = vmatprep.subr.bf16.mxu0 0
    %4597 = vmatpush1.bf16.xpose.msra.mxu0 0
    %4598 = vmatprep.subr.bf16.mxu0 0
    %4599 = vmatpush1.bf16.xpose.msra.mxu0 0
    %4600 = vmatprep.subr.bf16.mxu0 0
    %4601 = vmatpush1.bf16.xpose.msra.mxu0 0
    %4602 = vmatprep.subr.bf16.mxu0 0
    %4603 = vmatpush1.bf16.xpose.msra.mxu0 0
    %4604 = vmatprep.subr.bf16.mxu0 0
    %4605 = vmatpush1.bf16.xpose.msra.mxu0 0
    %4606 = vmatprep.subr.bf16.mxu0 0
    %4607 = vmatpush1.bf16.xpose.msra.mxu0 0
    %4608 = vmatprep.subr.bf16.mxu0 0
    %4609 = vmatpush1.bf16.xpose.msra.mxu0 0
    %4610 = vmatprep.mubr.bf16.mxu0 %v4204
    %4611 = vmatmul.mubr.bf16.gmra.mrb[0].mxu0 %v4203
    %v4612 = vpop.f32.mrb[0].mxu0
    %v4613 = vadd.f32 %v4548, %v4612
    %v4614 = vpop.f32.mrb[0].mxu0
    %v4615 = vpop.f32.mrb[0].mxu0
    %v4616 = vadd.f32 %v4551, %v4615
    %v4617 = vpop.f32.mrb[0].mxu0
    %4618 = vmatprep.mubr.bf16.mxu0 %v4220
    %4619 = vmatmul.mubr.bf16.gmra.mrb[0].mxu0 %v4219
    %v4620 = vpop.f32.mrb[0].mxu0
    %v4621 = vadd.f32 %v4556, %v4620
    %v4622 = vpop.f32.mrb[0].mxu0
    %v4623 = vpop.f32.mrb[0].mxu0
    %v4624 = vadd.f32 %v4559, %v4623
    %v4625 = vpop.f32.mrb[0].mxu0
    %4626 = vmatprep.mubr.bf16.mxu0 %v4236
    %4627 = vmatmul.mubr.bf16.gmra.mrb[0].mxu0 %v4235
    %v4628 = vpop.f32.mrb[0].mxu0
    %v4629 = vadd.f32 %v4564, %v4628
    %v4630 = vpop.f32.mrb[0].mxu0
    %v4631 = vpop.f32.mrb[0].mxu0
    %v4632 = vadd.f32 %v4567, %v4631
    %v4633 = vpop.f32.mrb[0].mxu0
    %4634 = vmatprep.mubr.bf16.mxu0 %v4252
    %4635 = vmatmul.mubr.bf16.gmra.mrb[0].mxu0 %v4251
    %v4636 = vpop.f32.mrb[0].mxu0
    %v4637 = vadd.f32 %v4572, %v4636
    %v4638 = vpop.f32.mrb[0].mxu0
    %v4639 = vpop.f32.mrb[0].mxu0
    %v4640 = vadd.f32 %v4575, %v4639
    %v4641 = vpop.f32.mrb[0].mxu0
    %4642 = vdwg.mxu0
    %4643 = vmatprep.subr.bf16.mxu0 %v4294
    %4644 = vmatpush1.bf16.xpose.msra.mxu0 %v4293
    %4645 = vmatprep.subr.bf16.mxu0 0
    %4646 = vmatpush1.bf16.xpose.msra.mxu0 0
    %4647 = vmatprep.subr.bf16.mxu0 0
    %4648 = vmatpush1.bf16.xpose.msra.mxu0 0
    %4649 = vmatprep.subr.bf16.mxu0 0
    %4650 = vmatpush1.bf16.xpose.msra.mxu0 0
    %4651 = vmatprep.subr.bf16.mxu0 0
    %4652 = vmatpush1.bf16.xpose.msra.mxu0 0
    %4653 = vmatprep.subr.bf16.mxu0 0
    %4654 = vmatpush1.bf16.xpose.msra.mxu0 0
    %4655 = vmatprep.subr.bf16.mxu0 0
    %4656 = vmatpush1.bf16.xpose.msra.mxu0 0
    %4657 = vmatprep.subr.bf16.mxu0 0
    %4658 = vmatpush1.bf16.xpose.msra.mxu0 0
    %4659 = vmatprep.subr.bf16.mxu0 0
    %4660 = vmatpush1.bf16.xpose.msra.mxu0 0
    %4661 = vmatprep.subr.bf16.mxu0 0
    %4662 = vmatpush1.bf16.xpose.msra.mxu0 0
    %4663 = vmatprep.subr.bf16.mxu0 0
    %4664 = vmatpush1.bf16.xpose.msra.mxu0 0
    %4665 = vmatprep.subr.bf16.mxu0 0
    %4666 = vmatpush1.bf16.xpose.msra.mxu0 0
    %4667 = vmatprep.subr.bf16.mxu0 0
    %4668 = vmatpush1.bf16.xpose.msra.mxu0 0
    %4669 = vmatprep.subr.bf16.mxu0 0
    %4670 = vmatpush1.bf16.xpose.msra.mxu0 0
    %4671 = vmatprep.subr.bf16.mxu0 0
    %4672 = vmatpush1.bf16.xpose.msra.mxu0 0
    %4673 = vmatprep.subr.bf16.mxu0 0
    %4674 = vmatpush1.bf16.xpose.msra.mxu0 0
    %4675 = vmatprep.mubr.bf16.mxu0 %v4206
    %4676 = vmatmul.mubr.bf16.gmra.mrb[0].mxu0 %v4205
    %v4677 = vpop.f32.mrb[0].mxu0
    %v4678 = vadd.f32 %v4613, %v4677
    %v4679 = vpop.f32.mrb[0].mxu0
    %v4680 = vpop.f32.mrb[0].mxu0
    %v4681 = vadd.f32 %v4616, %v4680
    %v4682 = vpop.f32.mrb[0].mxu0
    %4683 = vmatprep.mubr.bf16.mxu0 %v4222
    %4684 = vmatmul.mubr.bf16.gmra.mrb[0].mxu0 %v4221
    %v4685 = vpop.f32.mrb[0].mxu0
    %v4686 = vadd.f32 %v4621, %v4685
    %v4687 = vpop.f32.mrb[0].mxu0
    %v4688 = vpop.f32.mrb[0].mxu0
    %v4689 = vadd.f32 %v4624, %v4688
    %v4690 = vpop.f32.mrb[0].mxu0
    %4691 = vmatprep.mubr.bf16.mxu0 %v4238
    %4692 = vmatmul.mubr.bf16.gmra.mrb[0].mxu0 %v4237
    %v4693 = vpop.f32.mrb[0].mxu0
    %v4694 = vadd.f32 %v4629, %v4693
    %v4695 = vpop.f32.mrb[0].mxu0
    %v4696 = vpop.f32.mrb[0].mxu0
    %v4697 = vadd.f32 %v4632, %v4696
    %v4698 = vpop.f32.mrb[0].mxu0
    %4699 = vmatprep.mubr.bf16.mxu0 %v4254
    %4700 = vmatmul.mubr.bf16.gmra.mrb[0].mxu0 %v4253
    %v4701 = vpop.f32.mrb[0].mxu0
    %v4702 = vadd.f32 %v4637, %v4701
    %v4703 = vpop.f32.mrb[0].mxu0
    %v4704 = vpop.f32.mrb[0].mxu0
    %v4705 = vadd.f32 %v4640, %v4704
    %v4706 = vpop.f32.mrb[0].mxu0
    %4707 = vdwg.mxu0
    %4708 = vmatprep.subr.bf16.mxu0 %v4296
    %4709 = vmatpush1.bf16.xpose.msra.mxu0 %v4295
    %4710 = vmatprep.subr.bf16.mxu0 0
    %4711 = vmatpush1.bf16.xpose.msra.mxu0 0
    %4712 = vmatprep.subr.bf16.mxu0 0
    %4713 = vmatpush1.bf16.xpose.msra.mxu0 0
    %4714 = vmatprep.subr.bf16.mxu0 0
    %4715 = vmatpush1.bf16.xpose.msra.mxu0 0
    %4716 = vmatprep.subr.bf16.mxu0 0
    %4717 = vmatpush1.bf16.xpose.msra.mxu0 0
    %4718 = vmatprep.subr.bf16.mxu0 0
    %4719 = vmatpush1.bf16.xpose.msra.mxu0 0
    %4720 = vmatprep.subr.bf16.mxu0 0
    %4721 = vmatpush1.bf16.xpose.msra.mxu0 0
    %4722 = vmatprep.subr.bf16.mxu0 0
    %4723 = vmatpush1.bf16.xpose.msra.mxu0 0
    %4724 = vmatprep.subr.bf16.mxu0 0
    %4725 = vmatpush1.bf16.xpose.msra.mxu0 0
    %4726 = vmatprep.subr.bf16.mxu0 0
    %4727 = vmatpush1.bf16.xpose.msra.mxu0 0
    %4728 = vmatprep.subr.bf16.mxu0 0
    %4729 = vmatpush1.bf16.xpose.msra.mxu0 0
    %4730 = vmatprep.subr.bf16.mxu0 0
    %4731 = vmatpush1.bf16.xpose.msra.mxu0 0
    %4732 = vmatprep.subr.bf16.mxu0 0
    %4733 = vmatpush1.bf16.xpose.msra.mxu0 0
    %4734 = vmatprep.subr.bf16.mxu0 0
    %4735 = vmatpush1.bf16.xpose.msra.mxu0 0
    %4736 = vmatprep.subr.bf16.mxu0 0
    %4737 = vmatpush1.bf16.xpose.msra.mxu0 0
    %4738 = vmatprep.subr.bf16.mxu0 0
    %4739 = vmatpush1.bf16.xpose.msra.mxu0 0
    %4740 = vmatprep.mubr.bf16.mxu0 %v4208
    %4741 = vmatmul.mubr.bf16.gmra.mrb[0].mxu0 %v4207
    %v4742 = vpop.f32.mrb[0].mxu0
    %v4743 = vadd.f32 %v4678, %v4742
    %v4744 = vpop.f32.mrb[0].mxu0
    %v4745 = vpop.f32.mrb[0].mxu0
    %v4746 = vadd.f32 %v4681, %v4745
    %v4747 = vpop.f32.mrb[0].mxu0
    %4748 = vmatprep.mubr.bf16.mxu0 %v4224
    %4749 = vmatmul.mubr.bf16.gmra.mrb[0].mxu0 %v4223
    %v4750 = vpop.f32.mrb[0].mxu0
    %v4751 = vadd.f32 %v4686, %v4750
    %v4752 = vpop.f32.mrb[0].mxu0
    %v4753 = vpop.f32.mrb[0].mxu0
    %v4754 = vadd.f32 %v4689, %v4753
    %v4755 = vpop.f32.mrb[0].mxu0
    %4756 = vmatprep.mubr.bf16.mxu0 %v4240
    %4757 = vmatmul.mubr.bf16.gmra.mrb[0].mxu0 %v4239
    %v4758 = vpop.f32.mrb[0].mxu0
    %v4759 = vadd.f32 %v4694, %v4758
    %v4760 = vpop.f32.mrb[0].mxu0
    %v4761 = vpop.f32.mrb[0].mxu0
    %v4762 = vadd.f32 %v4697, %v4761
    %v4763 = vpop.f32.mrb[0].mxu0
    %4764 = vmatprep.mubr.bf16.mxu0 %v4256
    %4765 = vmatmul.mubr.bf16.gmra.mrb[0].mxu0 %v4255
    %v4766 = vpop.f32.mrb[0].mxu0
    %v4767 = vadd.f32 %v4702, %v4766
    %v4768 = vpop.f32.mrb[0].mxu0
    %v4769 = vpop.f32.mrb[0].mxu0
    %v4770 = vadd.f32 %v4705, %v4769
    %v4771 = vpop.f32.mrb[0].mxu0
    %4772 = vdwg.mxu0
    %4773 = vmatprep.subr.bf16.mxu0 %v4298
    %4774 = vmatpush1.bf16.xpose.msra.mxu0 %v4297
    %4775 = vmatprep.subr.bf16.mxu0 0
    %4776 = vmatpush1.bf16.xpose.msra.mxu0 0
    %4777 = vmatprep.subr.bf16.mxu0 0
    %4778 = vmatpush1.bf16.xpose.msra.mxu0 0
    %4779 = vmatprep.subr.bf16.mxu0 0
    %4780 = vmatpush1.bf16.xpose.msra.mxu0 0
    %4781 = vmatprep.subr.bf16.mxu0 0
    %4782 = vmatpush1.bf16.xpose.msra.mxu0 0
    %4783 = vmatprep.subr.bf16.mxu0 0
    %4784 = vmatpush1.bf16.xpose.msra.mxu0 0
    %4785 = vmatprep.subr.bf16.mxu0 0
    %4786 = vmatpush1.bf16.xpose.msra.mxu0 0
    %4787 = vmatprep.subr.bf16.mxu0 0
    %4788 = vmatpush1.bf16.xpose.msra.mxu0 0
    %4789 = vmatprep.subr.bf16.mxu0 0
    %4790 = vmatpush1.bf16.xpose.msra.mxu0 0
    %4791 = vmatprep.subr.bf16.mxu0 0
    %4792 = vmatpush1.bf16.xpose.msra.mxu0 0
    %4793 = vmatprep.subr.bf16.mxu0 0
    %4794 = vmatpush1.bf16.xpose.msra.mxu0 0
    %4795 = vmatprep.subr.bf16.mxu0 0
    %4796 = vmatpush1.bf16.xpose.msra.mxu0 0
    %4797 = vmatprep.subr.bf16.mxu0 0
    %4798 = vmatpush1.bf16.xpose.msra.mxu0 0
    %4799 = vmatprep.subr.bf16.mxu0 0
    %4800 = vmatpush1.bf16.xpose.msra.mxu0 0
    %4801 = vmatprep.subr.bf16.mxu0 0
    %4802 = vmatpush1.bf16.xpose.msra.mxu0 0
    %4803 = vmatprep.subr.bf16.mxu0 0
    %4804 = vmatpush1.bf16.xpose.msra.mxu0 0
    %4805 = vmatprep.mubr.bf16.mxu0 %v4210
    %4806 = vmatmul.mubr.bf16.gmra.mrb[0].mxu0 %v4209
    %v4807 = vpop.f32.mrb[0].mxu0
    %v4808 = vadd.f32 %v4743, %v4807
    %v4809 = vpop.f32.mrb[0].mxu0
    %v4810 = vpop.f32.mrb[0].mxu0
    %v4811 = vadd.f32 %v4746, %v4810
    %v4812 = vpop.f32.mrb[0].mxu0
    %4813 = vmatprep.mubr.bf16.mxu0 %v4226
    %4814 = vmatmul.mubr.bf16.gmra.mrb[0].mxu0 %v4225
    %v4815 = vpop.f32.mrb[0].mxu0
    %v4816 = vadd.f32 %v4751, %v4815
    %v4817 = vpop.f32.mrb[0].mxu0
    %v4818 = vpop.f32.mrb[0].mxu0
    %v4819 = vadd.f32 %v4754, %v4818
    %v4820 = vpop.f32.mrb[0].mxu0
    %4821 = vmatprep.mubr.bf16.mxu0 %v4242
    %4822 = vmatmul.mubr.bf16.gmra.mrb[0].mxu0 %v4241
    %v4823 = vpop.f32.mrb[0].mxu0
    %v4824 = vadd.f32 %v4759, %v4823
    %v4825 = vpop.f32.mrb[0].mxu0
    %v4826 = vpop.f32.mrb[0].mxu0
    %v4827 = vadd.f32 %v4762, %v4826
    %v4828 = vpop.f32.mrb[0].mxu0
    %4829 = vmatprep.mubr.bf16.mxu0 %v4258
    %4830 = vmatmul.mubr.bf16.gmra.mrb[0].mxu0 %v4257
    %v4831 = vpop.f32.mrb[0].mxu0
    %v4832 = vadd.f32 %v4767, %v4831
    %v4833 = vpop.f32.mrb[0].mxu0
    %v4834 = vpop.f32.mrb[0].mxu0
    %v4835 = vadd.f32 %v4770, %v4834
    %v4836 = vpop.f32.mrb[0].mxu0
    %4837 = vdwg.mxu0
    %v4838 = vadd.f32 %v3270, %v4808
    %v4839 = vadd.f32 %v3271, %v4811
    %v4840 = vadd.f32 %v3272, %v4816
    %v4841 = vadd.f32 %v3273, %v4819
    %v4842 = vadd.f32 %v3274, %v4824
    %v4843 = vadd.f32 %v3275, %v4827
    %v4844 = vadd.f32 %v3276, %v4832
    %v4845 = vadd.f32 %v3277, %v4835
    %v4846 = vsel %vm1222, %v4838, 0.0
    %4847 = vadd.xlane.f32.xlu0 %v4846
    %v4848 = vpop.xlane.xlu0 %4847
    %v4849 = vsel %vm1222, %v4839, 0.0
    %4850 = vadd.xlane.f32.xlu0 %v4849
    %v4851 = vpop.xlane.xlu0 %4850
    %v4852 = vsel %vm1222, %v4840, 0.0
    %4853 = vadd.xlane.f32.xlu0 %v4852
    %v4854 = vpop.xlane.xlu0 %4853
    %v4855 = vsel %vm1222, %v4841, 0.0
    %4856 = vadd.xlane.f32.xlu0 %v4855
    %v4857 = vpop.xlane.xlu0 %4856
    %v4858 = vsel %vm1222, %v4842, 0.0
    %4859 = vadd.xlane.f32.xlu0 %v4858
    %v4860 = vpop.xlane.xlu0 %4859
    %v4861 = vsel %vm1222, %v4843, 0.0
    %4862 = vadd.xlane.f32.xlu0 %v4861
    %v4863 = vpop.xlane.xlu0 %4862
    %v4864 = vsel %vm1222, %v4844, 0.0
    %4865 = vadd.xlane.f32.xlu0 %v4864
    %v4866 = vpop.xlane.xlu0 %4865
    %v4867 = vsel %vm1222, %v4845, 0.0
    %4868 = vadd.xlane.f32.xlu0 %v4867
    %v4869 = vpop.xlane.xlu0 %4868
    %v4870 = vmul.f32 %v4848, %v3175
    %v4871 = vmul.f32 %v4851, %v3175
    %v4872 = vmul.f32 %v4854, %v3175
    %v4873 = vmul.f32 %v4857, %v3175
    %v4874 = vmul.f32 %v4860, %v3175
    %v4875 = vmul.f32 %v4863, %v3175
    %v4876 = vmul.f32 %v4866, %v3175
    %v4877 = vmul.f32 %v4869, %v3175
    %v4878 = vsub.f32 %v4838, %v4870
    %v4879 = vsub.f32 %v4839, %v4871
    %v4880 = vsub.f32 %v4840, %v4872
    %v4881 = vsub.f32 %v4841, %v4873
    %v4882 = vsub.f32 %v4842, %v4874
    %v4883 = vsub.f32 %v4843, %v4875
    %v4884 = vsub.f32 %v4844, %v4876
    %v4885 = vsub.f32 %v4845, %v4877
    %v4886 = vmul.f32 %v4878, %v4878
    %v4887 = vmul.f32 %v4879, %v4879
    %v4888 = vmul.f32 %v4880, %v4880
    %v4889 = vmul.f32 %v4881, %v4881
    %v4890 = vmul.f32 %v4882, %v4882
    %v4891 = vmul.f32 %v4883, %v4883
    %v4892 = vmul.f32 %v4884, %v4884
    %v4893 = vmul.f32 %v4885, %v4885
    %v4894 = vsel %vm1222, %v4886, 0.0
    %4895 = vadd.xlane.f32.xlu0 %v4894
    %v4896 = vpop.xlane.xlu0 %4895
    %v4897 = vsel %vm1222, %v4887, 0.0
    %4898 = vadd.xlane.f32.xlu0 %v4897
    %v4899 = vpop.xlane.xlu0 %4898
    %v4900 = vsel %vm1222, %v4888, 0.0
    %4901 = vadd.xlane.f32.xlu0 %v4900
    %v4902 = vpop.xlane.xlu0 %4901
    %v4903 = vsel %vm1222, %v4889, 0.0
    %4904 = vadd.xlane.f32.xlu0 %v4903
    %v4905 = vpop.xlane.xlu0 %4904
    %v4906 = vsel %vm1222, %v4890, 0.0
    %4907 = vadd.xlane.f32.xlu0 %v4906
    %v4908 = vpop.xlane.xlu0 %4907
    %v4909 = vsel %vm1222, %v4891, 0.0
    %4910 = vadd.xlane.f32.xlu0 %v4909
    %v4911 = vpop.xlane.xlu0 %4910
    %v4912 = vsel %vm1222, %v4892, 0.0
    %4913 = vadd.xlane.f32.xlu0 %v4912
    %v4914 = vpop.xlane.xlu0 %4913
    %v4915 = vsel %vm1222, %v4893, 0.0
    %4916 = vadd.xlane.f32.xlu0 %v4915
    %v4917 = vpop.xlane.xlu0 %4916
    %v4918 = vmul.f32 %v4896, %v3175
    %v4919 = vmul.f32 %v4899, %v3175
    %v4920 = vmul.f32 %v4902, %v3175
    %v4921 = vmul.f32 %v4905, %v3175
    %v4922 = vmul.f32 %v4908, %v3175
    %v4923 = vmul.f32 %v4911, %v3175
    %v4924 = vmul.f32 %v4914, %v3175
    %v4925 = vmul.f32 %v4917, %v3175
    %v4926 = vadd.f32 %v4918, 1e-05
    %v4927 = vadd.f32 %v4919, 1e-05
    %v4928 = vadd.f32 %v4920, 1e-05
    %v4929 = vadd.f32 %v4921, 1e-05
    %v4930 = vadd.f32 %v4922, 1e-05
    %v4931 = vadd.f32 %v4923, 1e-05
    %v4932 = vadd.f32 %v4924, 1e-05
    %v4933 = vadd.f32 %v4925, 1e-05
    %v4934 = vrsqrt.pop %v4926
    %v4935 = vrsqrt.pop %v4927
    %v4936 = vrsqrt.pop %v4928
    %v4937 = vrsqrt.pop %v4929
    %v4938 = vrsqrt.pop %v4930
    %v4939 = vrsqrt.pop %v4931
    %v4940 = vrsqrt.pop %v4932
    %v4941 = vrsqrt.pop %v4933
    %v4942 = vmul.f32 %v4878, %v4934
    %v4943 = vmul.f32 %v4879, %v4935
    %v4944 = vmul.f32 %v4880, %v4936
    %v4945 = vmul.f32 %v4881, %v4937
    %v4946 = vmul.f32 %v4882, %v4938
    %v4947 = vmul.f32 %v4883, %v4939
    %v4948 = vmul.f32 %v4884, %v4940
    %v4949 = vmul.f32 %v4885, %v4941
    %4950 = vrot.lane.b32.xlu0 %v3006, 80
    %v4951 = vpop.permute.xlu0 %4950
    %v4953 = vmul.f32 %v4942, %v4951
    %v4954 = vmul.f32 %v4943, %v4951
    %v4955 = vmul.f32 %v4944, %v4951
    %v4956 = vmul.f32 %v4945, %v4951
    %v4957 = vmul.f32 %v4946, %v4951
    %v4958 = vmul.f32 %v4947, %v4951
    %v4959 = vmul.f32 %v4948, %v4951
    %v4960 = vmul.f32 %v4949, %v4951
    %4961 = vrot.lane.b32.xlu0 %v3006, 72
    %v4962 = vpop.permute.xlu0 %4961
    %v4964 = vadd.f32 %v4953, %v4962
    %v4965 = vadd.f32 %v4954, %v4962
    %v4966 = vadd.f32 %v4955, %v4962
    %v4967 = vadd.f32 %v4956, %v4962
    %v4968 = vadd.f32 %v4957, %v4962
    %v4969 = vadd.f32 %v4958, %v4962
    %v4970 = vadd.f32 %v4959, %v4962
    %v4971 = vadd.f32 %v4960, %v4962
    %v4972 = vsel %vm1222, %v4964, 0.0
    %4973 = vadd.xlane.f32.xlu0 %v4972
    %v4974 = vpop.xlane.xlu0 %4973
    %v4975 = vsel %vm1222, %v4965, 0.0
    %4976 = vadd.xlane.f32.xlu0 %v4975
    %v4977 = vpop.xlane.xlu0 %4976
    %v4978 = vsel %vm1222, %v4966, 0.0
    %4979 = vadd.xlane.f32.xlu0 %v4978
    %v4980 = vpop.xlane.xlu0 %4979
    %v4981 = vsel %vm1222, %v4967, 0.0
    %4982 = vadd.xlane.f32.xlu0 %v4981
    %v4983 = vpop.xlane.xlu0 %4982
    %v4984 = vsel %vm1222, %v4968, 0.0
    %4985 = vadd.xlane.f32.xlu0 %v4984
    %v4986 = vpop.xlane.xlu0 %4985
    %v4987 = vsel %vm1222, %v4969, 0.0
    %4988 = vadd.xlane.f32.xlu0 %v4987
    %v4989 = vpop.xlane.xlu0 %4988
    %v4990 = vsel %vm1222, %v4970, 0.0
    %4991 = vadd.xlane.f32.xlu0 %v4990
    %v4992 = vpop.xlane.xlu0 %4991
    %v4993 = vsel %vm1222, %v4971, 0.0
    %4994 = vadd.xlane.f32.xlu0 %v4993
    %v4995 = vpop.xlane.xlu0 %4994
    %v4996 = vmul.f32 %v4974, %v3175
    %v4997 = vmul.f32 %v4977, %v3175
    %v4998 = vmul.f32 %v4980, %v3175
    %v4999 = vmul.f32 %v4983, %v3175
    %v5000 = vmul.f32 %v4986, %v3175
    %v5001 = vmul.f32 %v4989, %v3175
    %v5002 = vmul.f32 %v4992, %v3175
    %v5003 = vmul.f32 %v4995, %v3175
    %v5004 = vld [vmem:[#allocation6] sm:$0xff]
    %v5005 = vld [vmem:[#allocation6 + $0x8] sm:$0xff]
    %v5014 = vlaneseq
    %v5015 = vand.u32 %v5014, 127
    %v5016 = vlaneseq
    %v5017 = vshrl.u32 %v5016, 7
    %v5018 = vsub.s32 %v5015, %v5017
    %v5019 = vrot.slane %v4996, %v5018
    %v5020 = vadd.s32 %v5015, 4294967288
    %v5021 = vlaneseq
    %v5022 = vshrl.u32 %v5021, 7
    %v5023 = vsub.s32 %v5020, %v5022
    %v5024 = vrot.slane %v4997, %v5023
    %vm5025 = vcmask 130112
    %v5026 = vsel %vm5025, %v5024, %v5019
    %v5027 = vlaneseq
    %v5028 = vshrl.u32 %v5027, 7
    %v5029 = vsub.s32 %v5015, %v5028
    %v5030 = vrot.slane %v4998, %v5029
    %v5031 = vlaneseq
    %v5032 = vshrl.u32 %v5031, 7
    %v5033 = vsub.s32 %v5020, %v5032
    %v5034 = vrot.slane %v4999, %v5033
    %v5035 = vsel %vm5025, %v5034, %v5030
    %v5036 = vlaneseq
    %v5037 = vshrl.u32 %v5036, 7
    %v5038 = vsub.s32 %v5015, %v5037
    %v5039 = vrot.slane %v5000, %v5038
    %v5040 = vlaneseq
    %v5041 = vshrl.u32 %v5040, 7
    %v5042 = vsub.s32 %v5020, %v5041
    %v5043 = vrot.slane %v5001, %v5042
    %v5044 = vsel %vm5025, %v5043, %v5039
    %v5045 = vlaneseq
    %v5046 = vshrl.u32 %v5045, 7
    %v5047 = vsub.s32 %v5015, %v5046
    %v5048 = vrot.slane %v5002, %v5047
    %v5049 = vlaneseq
    %v5050 = vshrl.u32 %v5049, 7
    %v5051 = vsub.s32 %v5020, %v5050
    %v5052 = vrot.slane %v5003, %v5051
    %v5053 = vsel %vm5025, %v5052, %v5048
    %vm5054 = vcmask 1041409
    %v5055 = vsel %vm5054, %v5035, %v5026
    %vm5056 = vcmask 1042434
    %v5057 = vsel %vm5056, %v5044, %v5055
    %vm5058 = vcmask 1043459
    %v5059 = vsel %vm5058, %v5053, %v5057
    %5060 = vrot.lane.b32.xlu0 %v3006, 56
    %v5061 = vpop.permute.xlu0 %5060
    %v5063 = vsel %vm188, %v5059, 0
    %5065 = vmatprep.subr.mxu0 0.0
    %5066 = vmatpush1.msra.mxu0 %v5004
    %5067 = vmatprep.subr.mxu0 0.0
    %5068 = vmatpush1.msra.mxu0 %v5005
    %5069 = vmatprep.subr.mxu0 0.0
    %5070 = vmatpush1.msra.mxu0 0.0
    %5071 = vmatprep.subr.mxu0 0.0
    %5072 = vmatpush1.msra.mxu0 0.0
    %5073 = vmatprep.subr.mxu0 0.0
    %5074 = vmatpush1.msra.mxu0 0.0
    %5075 = vmatprep.subr.mxu0 0.0
    %5076 = vmatpush1.msra.mxu0 0.0
    %5077 = vmatprep.subr.mxu0 0.0
    %5078 = vmatpush1.msra.mxu0 0.0
    %5079 = vmatprep.subr.mxu0 0.0
    %5080 = vmatpush1.msra.mxu0 0.0
    %5081 = vmatprep.subr.mxu0 0.0
    %5082 = vmatpush1.msra.mxu0 0.0
    %5083 = vmatprep.subr.mxu0 0.0
    %5084 = vmatpush1.msra.mxu0 0.0
    %5085 = vmatprep.subr.mxu0 0.0
    %5086 = vmatpush1.msra.mxu0 0.0
    %5087 = vmatprep.subr.mxu0 0.0
    %5088 = vmatpush1.msra.mxu0 0.0
    %5089 = vmatprep.subr.mxu0 0.0
    %5090 = vmatpush1.msra.mxu0 0.0
    %5091 = vmatprep.subr.mxu0 0.0
    %5092 = vmatpush1.msra.mxu0 0.0
    %5093 = vmatprep.subr.mxu0 0.0
    %5094 = vmatpush1.msra.mxu0 0.0
    %5095 = vmatprep.subr.mxu0 0.0
    %5096 = vmatpush1.msra.mxu0 0.0
    %5097 = vmatprep.subr.mxu0 0.0
    %5098 = vmatpush1.msra.mxu0 0.0
    %5099 = vmatprep.subr.mxu0 0.0
    %5100 = vmatpush1.msra.mxu0 0.0
    %5101 = vmatprep.subr.mxu0 0.0
    %5102 = vmatpush1.msra.mxu0 0.0
    %5103 = vmatprep.subr.mxu0 0.0
    %5104 = vmatpush1.msra.mxu0 0.0
    %5105 = vmatprep.subr.mxu0 0.0
    %5106 = vmatpush1.msra.mxu0 0.0
    %5107 = vmatprep.subr.mxu0 0.0
    %5108 = vmatpush1.msra.mxu0 0.0
    %5109 = vmatprep.subr.mxu0 0.0
    %5110 = vmatpush1.msra.mxu0 0.0
    %5111 = vmatprep.subr.mxu0 0.0
    %5112 = vmatpush1.msra.mxu0 0.0
    %5113 = vmatprep.subr.mxu0 0.0
    %5114 = vmatpush1.msra.mxu0 0.0
    %5115 = vmatprep.subr.mxu0 0.0
    %5116 = vmatpush1.msra.mxu0 0.0
    %5117 = vmatprep.subr.mxu0 0.0
    %5118 = vmatpush1.msra.mxu0 0.0
    %5119 = vmatprep.subr.mxu0 0.0
    %5120 = vmatpush1.msra.mxu0 0.0
    %5121 = vmatprep.subr.mxu0 0.0
    %5122 = vmatpush1.msra.mxu0 0.0
    %5123 = vmatprep.subr.mxu0 0.0
    %5124 = vmatpush1.msra.mxu0 0.0
    %5125 = vmatprep.subr.mxu0 0.0
    %5126 = vmatpush1.msra.mxu0 0.0
    %5127 = vmatprep.subr.mxu0 0.0
    %5128 = vmatpush1.msra.mxu0 0.0
    %5129 = vmatprep.mubr.f32.mxu0 0.0
    %5130 = vmatmul.mubr.f32.gmra.mrb[0].mxu0 %v5063
    %v5131 = vpop.f32.mrb[0].mxu0
    %v5132 = vadd.f32 %v5061, %v5131
    %v5133 = vpop.f32.mrb[0].mxu0
    %5134 = vdwg.mxu0
    %v5135 = vmax.f32 %v5132, 0.0
    %v5136 = vld [vmem:[%s8 + $0x11] sm:$0x3]
    %v5138 = vlaneseq
    %v5139 = vshrl.u32 %v5138, 7
    %v5140 = vsub.s32 0, %v5139
    %v5141 = vrot.slane %v5136, %v5140
    %v5142 = vlaneseq
    %v5143 = vshrl.u32 %v5142, 7
    %v5144 = vsub.s32 1, %v5143
    %v5145 = vrot.slane %v5136, %v5144
    %5146 = vrot.lane.b32.xlu0 %v5141, 24
    %v5147 = vpop.permute.xlu0 %5146
    %5148 = vrot.lane.b32.xlu0 %v5145, 24
    %v5149 = vpop.permute.xlu0 %5148
    %vm5150 = vcmask 195584
    %v5151 = vsel %vm5150, %v5147, %v5149
    %v5153 = vmul.f32 %v5135, %v5151
    %vm5154 = vcmask 257024
    %v5155 = vsel %vm5154, %v5153, 0.0
    %5156 = vadd.xlane.f32.xlu0 %v5155
    %v5157 = vpop.xlane.xlu0 %5156
    %v5158 = vld [vmem:[%s8 + $0x12] sm:$0x1]
    %v5160 = vlaneseq
    %v5161 = vshrl.u32 %v5160, 7
    %v5162 = vsub.s32 0, %v5161
    %v5163 = vrot.slane %v5158, %v5162
    %v5165 = vadd.f32 %v5157, %v5163
    %5167 = vrot.lane.b32.xlu0 %v5165, 120
    %v5168 = vpop.permute.xlu0 %5167
    %vm5170 = vcmask 3072
    %5171 = vst.msk [vmem:[%s9] sm:$0xf] %vm5170, %v5168
    // Predicated region
    $region50: #{transformer_encoder_lstm_2_forward.1} parent=1 // pred_check
      _
    $region51: #{transformer_encoder_lstm_2_forward.1} parent=1 // pred_check_branch
      %5173 = sbr.rel (0) target = $region53
    $region52: #{transformer_encoder_lstm_2_forward.1} parent=1 // pred_region
      _
    $region53: #{transformer_encoder_lstm_2_forward.1} parent=1 // pred_fallthru
      _
    // Predicated region
    $region54: #{transformer_encoder_lstm_2_forward.1} parent=1 // pred_check
      _
    $region55: #{transformer_encoder_lstm_2_forward.1} parent=1 // pred_check_branch
      %5175 = sbr.rel (0) target = $region57
    $region56: #{transformer_encoder_lstm_2_forward.1} parent=1 // pred_region
      _
    $region57: #{transformer_encoder_lstm_2_forward.1} parent=1 // pred_fallthru
      _
    %5176 = vsyncpa [#allocation3], 1
    %5177 = vsyncpa [#allocation5], 1

</llo_original>
